<compile_context>
chip_gen: v5e
topology: v5e:2x2
jax: 0.10.0
libtpu: 0.0.40
codegen_flags: <defaults>
</compile_context>

<pallas_src>
import math

import jax
import jax.numpy as jnp
from jax.experimental import pallas as pl
from jax.experimental.pallas import tpu as pltpu

NEG_SLOPE = 1.0               # nn.LeakyReLU(True) -> negative_slope=1.0 (identity)
MM_DTYPE = jnp.bfloat16       # MXU operand dtype; accumulation stays f32


def make_kernel(nhead, d_model, seq_tgt, seq_mem, batch_tile):
    H, E = nhead, d_model
    Dh = E // H
    B, L, S = batch_tile, seq_tgt, seq_mem

    def mm(a, b):
        # lane-dense matmul: bf16 operands, f32 accumulation on the MXU
        return jnp.dot(a.astype(MM_DTYPE), b, preferred_element_type=jnp.float32)

    def split_heads(slab, T):
        # (B*T, E) -> (H*B, T, Dh); lane slices + sublane concat + leading reshape.
        # (seq lengths that are multiples of 8 keep the reshape a pure re-tiling)
        cols = [slab[:, h * Dh:(h + 1) * Dh] for h in range(H)]
        return jnp.concatenate(cols, axis=0).reshape(H * B, T, Dh)

    def merge_heads(o, T):
        # (H*B, T, Dh) -> (B*T, E) with head h at lanes [h*Dh, (h+1)*Dh)
        o2 = o.reshape(H * B * T, Dh)
        rows = [o2[h * B * T:(h + 1) * B * T] for h in range(H)]
        return jnp.concatenate(rows, axis=-1)

    def attend(qh, kh, vh):
        # qh: (H*B, Lq, Dh), kh/vh: (H*B, Lk, Dh)  (scale already folded into q)
        s = jax.lax.dot_general(qh.astype(MM_DTYPE), kh.astype(MM_DTYPE),
                                (((2,), (2,)), ((0,), (0,))),
                                preferred_element_type=jnp.float32)      # (HB,Lq,Lk)
        s = s - jnp.max(s, axis=-1, keepdims=True)
        p = jnp.exp(s)
        denom = jnp.sum(p, axis=-1, keepdims=True)
        p = p * pl.reciprocal(denom, approx=True)                        # EUP slot
        return jax.lax.dot_general(p.astype(MM_DTYPE), vh.astype(MM_DTYPE),
                                   (((2,), (1,)), ((0,), (0,))),
                                   preferred_element_type=jnp.float32)   # (HB,Lq,Dh)

    def kernel(tgt_ref, mem_ref,
               sa_wqkv, sa_bqkv, sa_wo, sa_bo,
               ca_wq, ca_bq, ca_wkv, ca_bkv, ca_wo, ca_bo,
               w1t, b1, w2t, b2,
               out_ref):
        x = tgt_ref[...]          # (B*L, E) f32
        mem = mem_ref[...]        # (B*S, E) f32

        # ---- self-attention: one fused lane-dense QKV matmul + residual ----
        qkv = mm(x, sa_wqkv[...]) + sa_bqkv[...]            # (B*L, 3E)
        q = split_heads(qkv[:, :E], L)
        k = split_heads(qkv[:, E:2 * E], L)
        v = split_heads(qkv[:, 2 * E:], L)
        o = attend(q, k, v)
        sa = mm(merge_heads(o, L), sa_wo[...]) + sa_bo[...]  # full-depth out-proj
        x = x + sa                                           # dropout1 p=0 -> identity

        # ---- cross-attention: Q from x, fused KV from memory + residual ----
        qx = mm(x, ca_wq[...]) + ca_bq[...]                  # (B*L, E)
        kv = mm(mem, ca_wkv[...]) + ca_bkv[...]              # (B*S, 2E)
        q = split_heads(qx, L)
        k = split_heads(kv[:, :E], S)
        v = split_heads(kv[:, E:], S)
        o = attend(q, k, v)
        ca = mm(merge_heads(o, L), ca_wo[...]) + ca_bo[...]
        x = x + ca                                           # dropout2 p=0 -> identity

        # ---- feed-forward on the whole slab + residual ----
        h1 = mm(x, w1t[...]) + b1[...]
        # nn.LeakyReLU(True): negative_slope == 1.0 -> identity, no op emitted.
        ff = mm(h1, w2t[...]) + b2[...]
        out_ref[...] = x + ff                                # dropout3 p=0 -> identity

    return kernel


def tranad_decoder_layer(tgt, memory, params, nhead, batch_tile=1):
    """tgt: (L, N, E), memory: (S, N, E)  -> (L, N, E)   (PyTorch layout)."""
    L, N, E = tgt.shape
    S = memory.shape[0]
    H = nhead
    Dh = E // H
    F = params['w1'].shape[0]
    assert N % batch_tile == 0
    num_steps = N // batch_tile
    scale = 1.0 / math.sqrt(Dh)

    f32 = jnp.float32
    w_ = lambda a: a.astype(MM_DTYPE)                 # weights -> bf16 operands
    b_ = lambda a: a.reshape(1, -1).astype(f32)       # biases stay f32

    sp, cp = params['self_attn'], params['cross_attn']

    # fused lane-dense weights; 1/sqrt(Dh) folded into the query block
    sa_wqkv = w_(jnp.concatenate([sp['wq'].T * scale, sp['wk'].T, sp['wv'].T], axis=1))
    sa_bqkv = b_(jnp.concatenate([sp['bq'] * scale, sp['bk'], sp['bv']]))
    sa_wo, sa_bo = w_(sp['wo'].T), b_(sp['bo'])

    ca_wq, ca_bq = w_(cp['wq'].T * scale), b_(cp['bq'] * scale)
    ca_wkv = w_(jnp.concatenate([cp['wk'].T, cp['wv'].T], axis=1))
    ca_bkv = b_(jnp.concatenate([cp['bk'], cp['bv']]))
    ca_wo, ca_bo = w_(cp['wo'].T), b_(cp['bo'])

    w1t, b1 = w_(params['w1'].T), b_(params['b1'])
    w2t, b2 = w_(params['w2'].T), b_(params['b2'])

    # lane-dense 2-D activation slabs, batch-major rows
    tgt2 = jnp.transpose(tgt, (1, 0, 2)).reshape(N * L, E).astype(f32)
    mem2 = jnp.transpose(memory, (1, 0, 2)).reshape(N * S, E).astype(f32)

    operands = [tgt2, mem2,
                sa_wqkv, sa_bqkv, sa_wo, sa_bo,
                ca_wq, ca_bq, ca_wkv, ca_bkv, ca_wo, ca_bo,
                w1t, b1, w2t, b2]

    kernel = make_kernel(H, E, L, S, batch_tile)

    # VMEM budget: resident weights + double-buffered activation blocks + headroom.
    weight_bytes = sum(int(a.size) * a.dtype.itemsize for a in operands[2:])
    act_bytes = 2 * batch_tile * (2 * L + S) * E * 4
    vmem_limit = int(min(100 * 2**20,
                         max(32 * 2**20, 2 * weight_bytes + 2 * act_bytes + (16 << 20))))

    def build(weight_mode):
        def full_spec(a):
            shape = a.shape
            if weight_mode is None:
                return pl.BlockSpec(shape, lambda n: (0,) * len(shape))
            return pl.BlockSpec(shape, lambda n: (0,) * len(shape),
                                pipeline_mode=weight_mode)

        in_specs = ([pl.BlockSpec((batch_tile * L, E), lambda n: (n, 0)),
                     pl.BlockSpec((batch_tile * S, E), lambda n: (n, 0))]
                    + [full_spec(a) for a in operands[2:]])

        return pl.pallas_call(
            kernel,
            out_shape=jax.ShapeDtypeStruct((N * L, E), jnp.float32),
            grid=(num_steps,),
            in_specs=in_specs,
            out_specs=pl.BlockSpec((batch_tile * L, E), lambda n: (n, 0)),
            compiler_params=pltpu.CompilerParams(
                dimension_semantics=("parallel",),
                vmem_limit_bytes=vmem_limit),
        )

    try:
        # Grid-invariant weights: single-buffer to halve their resident VMEM.
        out2 = build(pl.Buffered(1))(*operands)
    except Exception:
        # Fallback if this jax version rejects Buffered(1) at top-level pallas_call.
        out2 = build(None)(*operands)

    return jnp.transpose(out2.reshape(N, L, E), (1, 0, 2))


# ----------------- deterministic parameter init (synthetic weights) -----------------
def init_params(key, d_model, dim_feedforward):
    ks = jax.random.split(key, 12)

    def t(k, shape):
        return jax.random.normal(k, shape, jnp.float32) * 0.1

    def mha_params(k1, k2, k3, k4):
        in_w = t(k1, (3 * d_model, d_model))   # like in_proj_weight
        in_b = t(k2, (3 * d_model,))           # like in_proj_bias
        return dict(
            wq=in_w[:d_model], wk=in_w[d_model:2 * d_model], wv=in_w[2 * d_model:],
            bq=in_b[:d_model], bk=in_b[d_model:2 * d_model], bv=in_b[2 * d_model:],
            wo=t(k3, (d_model, d_model)), bo=t(k4, (d_model,)))

    return dict(
        self_attn=mha_params(ks[0], ks[1], ks[2], ks[3]),
        cross_attn=mha_params(ks[4], ks[5], ks[6], ks[7]),
        w1=t(ks[8], (dim_feedforward, d_model)), b1=t(ks[9], (dim_feedforward,)),
        w2=t(ks[10], (d_model, dim_feedforward)), b2=t(ks[11], (d_model,)))


# ----------------- pure-JAX reference (mirrors PyTorch semantics, f32) -----------------
def _mha_ref(query, key, value, p, nhead):
    L, N, E = query.shape
    S = key.shape[0]
    Dh = E // nhead
    q = query @ p['wq'].T + p['bq']
    k = key @ p['wk'].T + p['bk']
    v = value @ p['wv'].T + p['bv']
    q = q.reshape(L, N * nhead, Dh).transpose(1, 0, 2) / math.sqrt(Dh)
    k = k.reshape(S, N * nhead, Dh).transpose(1, 0, 2)
    v = v.reshape(S, N * nhead, Dh).transpose(1, 0, 2)
    s = jnp.einsum('bld,bsd->bls', q, k)
    a = jax.nn.softmax(s, axis=-1)
    o = jnp.einsum('bls,bsd->bld', a, v)
    o = o.transpose(1, 0, 2).reshape(L, N, E)
    return o @ p['wo'].T + p['bo']


def decoder_layer_ref(tgt, memory, params, nhead):
    x = tgt + _mha_ref(tgt, tgt, tgt, params['self_attn'], nhead)
    x = x + _mha_ref(x, memory, memory, params['cross_attn'], nhead)
    h = x @ params['w1'].T + params['b1']
    h = jnp.where(h >= 0, h, NEG_SLOPE * h)   # slope 1.0 == identity (TranAD quirk)
    f = h @ params['w2'].T + params['b2']
    return x + f


if __name__ == "__main__":
    L, S, N = 8, 8, 4          # tgt seq, memory seq, batch
    d_model, nhead, dim_ff = 32, 4, 16
    batch_tile = 2             # 2 batch elems per grid step -> grid=(2,), both parallel

    key = jax.random.PRNGKey(0)
    k_tgt, k_mem, k_par = jax.random.split(key, 3)
    tgt = jax.random.normal(k_tgt, (L, N, d_model), jnp.float32)
    memory = jax.random.normal(k_mem, (S, N, d_model), jnp.float32)
    params = init_params(k_par, d_model, dim_ff)

    out = tranad_decoder_layer(tgt, memory, params, nhead, batch_tile=batch_tile)
    out = jax.block_until_ready(out)

    ref = decoder_layer_ref(tgt, memory, params, nhead)
    assert out.shape == (L, N, d_model)
    max_err = float(jnp.max(jnp.abs(out - ref)))
    # bf16 matmul operands + approx reciprocal -> looser tolerance than pure f32
    assert jnp.allclose(out, ref, atol=4e-2, rtol=4e-2), f"max_err={max_err}"
    print("KERNEL_OK")
</pallas_src>

<mosaic_0001>
module attributes {stable_mosaic.version = 11 : i64} {
  func.func @kernel(%arg0: i32, %arg1: memref<16x32xf32, #tpu.memory_space<vmem>>, %arg2: memref<16x32xf32, #tpu.memory_space<vmem>>, %arg3: memref<32x96xbf16, #tpu.memory_space<vmem>>, %arg4: memref<1x96xf32, #tpu.memory_space<vmem>>, %arg5: memref<32x32xbf16, #tpu.memory_space<vmem>>, %arg6: memref<1x32xf32, #tpu.memory_space<vmem>>, %arg7: memref<32x32xbf16, #tpu.memory_space<vmem>>, %arg8: memref<1x32xf32, #tpu.memory_space<vmem>>, %arg9: memref<32x64xbf16, #tpu.memory_space<vmem>>, %arg10: memref<1x64xf32, #tpu.memory_space<vmem>>, %arg11: memref<32x32xbf16, #tpu.memory_space<vmem>>, %arg12: memref<1x32xf32, #tpu.memory_space<vmem>>, %arg13: memref<32x16xbf16, #tpu.memory_space<vmem>>, %arg14: memref<1x16xf32, #tpu.memory_space<vmem>>, %arg15: memref<16x32xbf16, #tpu.memory_space<vmem>>, %arg16: memref<1x32xf32, #tpu.memory_space<vmem>>, %arg17: memref<16x32xf32, #tpu.memory_space<vmem>>) attributes {dimension_semantics = [#tpu.dimension_semantics<parallel>], iteration_bounds = array<i64: 2>, scalar_prefetch = 0 : i64, scratch_operands = 0 : i64, tpu.core_type = #tpu.core_type<tc>, window_params = [{transform_indices = @transform_0, window_bounds = array<i64: 16, 32>}, {transform_indices = @transform_1, window_bounds = array<i64: 16, 32>}, {pipeline_mode = #tpu.pipeline_mode<synchronous>, transform_indices = @transform_2, window_bounds = array<i64: 32, 96>}, {pipeline_mode = #tpu.pipeline_mode<synchronous>, transform_indices = @transform_3, window_bounds = array<i64: 1, 96>}, {pipeline_mode = #tpu.pipeline_mode<synchronous>, transform_indices = @transform_4, window_bounds = array<i64: 32, 32>}, {pipeline_mode = #tpu.pipeline_mode<synchronous>, transform_indices = @transform_5, window_bounds = array<i64: 1, 32>}, {pipeline_mode = #tpu.pipeline_mode<synchronous>, transform_indices = @transform_6, window_bounds = array<i64: 32, 32>}, {pipeline_mode = #tpu.pipeline_mode<synchronous>, transform_indices = @transform_7, window_bounds = array<i64: 1, 32>}, {pipeline_mode = #tpu.pipeline_mode<synchronous>, transform_indices = @transform_8, window_bounds = array<i64: 32, 64>}, {pipeline_mode = #tpu.pipeline_mode<synchronous>, transform_indices = @transform_9, window_bounds = array<i64: 1, 64>}, {pipeline_mode = #tpu.pipeline_mode<synchronous>, transform_indices = @transform_10, window_bounds = array<i64: 32, 32>}, {pipeline_mode = #tpu.pipeline_mode<synchronous>, transform_indices = @transform_11, window_bounds = array<i64: 1, 32>}, {pipeline_mode = #tpu.pipeline_mode<synchronous>, transform_indices = @transform_12, window_bounds = array<i64: 32, 16>}, {pipeline_mode = #tpu.pipeline_mode<synchronous>, transform_indices = @transform_13, window_bounds = array<i64: 1, 16>}, {pipeline_mode = #tpu.pipeline_mode<synchronous>, transform_indices = @transform_14, window_bounds = array<i64: 16, 32>}, {pipeline_mode = #tpu.pipeline_mode<synchronous>, transform_indices = @transform_15, window_bounds = array<i64: 1, 32>}, {transform_indices = @transform_16, window_bounds = array<i64: 16, 32>}]} {
    %c0 = arith.constant 0 : index
    %c0_0 = arith.constant 0 : index
    %0 = vector.load %arg1[%c0, %c0_0] : memref<16x32xf32, #tpu.memory_space<vmem>>, vector<16x32xf32>
    %c0_1 = arith.constant 0 : index
    %c0_2 = arith.constant 0 : index
    %1 = vector.load %arg2[%c0_1, %c0_2] : memref<16x32xf32, #tpu.memory_space<vmem>>, vector<16x32xf32>
    %c0_3 = arith.constant 0 : index
    %c0_4 = arith.constant 0 : index
    %2 = vector.load %arg3[%c0_3, %c0_4] : memref<32x96xbf16, #tpu.memory_space<vmem>>, vector<32x96xbf16>
    %3 = arith.truncf %0 : vector<16x32xf32> to vector<16x32xbf16>
    %cst = arith.constant dense<0.000000e+00> : vector<16x96xf32>
    %4 = tpu.matmul %3, %2, %cst {dimension_numbers = #tpu.dot_dimension_numbers<[1], [0], [0], [1], [0, 0, 1, 1], [], []>} : vector<16x32xbf16>, vector<32x96xbf16>, vector<16x96xf32> -> vector<16x96xf32>
    %c0_5 = arith.constant 0 : index
    %c0_6 = arith.constant 0 : index
    %5 = vector.load %arg4[%c0_5, %c0_6] : memref<1x96xf32, #tpu.memory_space<vmem>>, vector<1x96xf32>
    %6 = vector.broadcast %5 : vector<1x96xf32> to vector<16x96xf32>
    %7 = arith.addf %4, %6 : vector<16x96xf32>
    %8 = vector.extract_strided_slice %7 {offsets = [0, 0], sizes = [16, 32], strides = [1, 1]} : vector<16x96xf32> to vector<16x32xf32>
    %9 = vector.extract_strided_slice %8 {offsets = [0, 0], sizes = [16, 8], strides = [1, 1]} : vector<16x32xf32> to vector<16x8xf32>
    %10 = vector.extract_strided_slice %8 {offsets = [0, 8], sizes = [16, 8], strides = [1, 1]} : vector<16x32xf32> to vector<16x8xf32>
    %11 = vector.extract_strided_slice %8 {offsets = [0, 16], sizes = [16, 8], strides = [1, 1]} : vector<16x32xf32> to vector<16x8xf32>
    %12 = vector.extract_strided_slice %8 {offsets = [0, 24], sizes = [16, 8], strides = [1, 1]} : vector<16x32xf32> to vector<16x8xf32>
    %13 = tpu.concatenate %9, %10, %11, %12 in 0 : vector<16x8xf32>, vector<16x8xf32>, vector<16x8xf32>, vector<16x8xf32> -> vector<64x8xf32>
    %14 = vector.shape_cast %13 : vector<64x8xf32> to vector<8x8x8xf32>
    %15 = vector.extract_strided_slice %7 {offsets = [0, 32], sizes = [16, 32], strides = [1, 1]} : vector<16x96xf32> to vector<16x32xf32>
    %16 = vector.extract_strided_slice %15 {offsets = [0, 0], sizes = [16, 8], strides = [1, 1]} : vector<16x32xf32> to vector<16x8xf32>
    %17 = vector.extract_strided_slice %15 {offsets = [0, 8], sizes = [16, 8], strides = [1, 1]} : vector<16x32xf32> to vector<16x8xf32>
    %18 = vector.extract_strided_slice %15 {offsets = [0, 16], sizes = [16, 8], strides = [1, 1]} : vector<16x32xf32> to vector<16x8xf32>
    %19 = vector.extract_strided_slice %15 {offsets = [0, 24], sizes = [16, 8], strides = [1, 1]} : vector<16x32xf32> to vector<16x8xf32>
    %20 = tpu.concatenate %16, %17, %18, %19 in 0 : vector<16x8xf32>, vector<16x8xf32>, vector<16x8xf32>, vector<16x8xf32> -> vector<64x8xf32>
    %21 = vector.shape_cast %20 : vector<64x8xf32> to vector<8x8x8xf32>
    %22 = vector.extract_strided_slice %7 {offsets = [0, 64], sizes = [16, 32], strides = [1, 1]} : vector<16x96xf32> to vector<16x32xf32>
    %23 = vector.extract_strided_slice %22 {offsets = [0, 0], sizes = [16, 8], strides = [1, 1]} : vector<16x32xf32> to vector<16x8xf32>
    %24 = vector.extract_strided_slice %22 {offsets = [0, 8], sizes = [16, 8], strides = [1, 1]} : vector<16x32xf32> to vector<16x8xf32>
    %25 = vector.extract_strided_slice %22 {offsets = [0, 16], sizes = [16, 8], strides = [1, 1]} : vector<16x32xf32> to vector<16x8xf32>
    %26 = vector.extract_strided_slice %22 {offsets = [0, 24], sizes = [16, 8], strides = [1, 1]} : vector<16x32xf32> to vector<16x8xf32>
    %27 = tpu.concatenate %23, %24, %25, %26 in 0 : vector<16x8xf32>, vector<16x8xf32>, vector<16x8xf32>, vector<16x8xf32> -> vector<64x8xf32>
    %28 = vector.shape_cast %27 : vector<64x8xf32> to vector<8x8x8xf32>
    %29 = arith.truncf %14 : vector<8x8x8xf32> to vector<8x8x8xbf16>
    %30 = arith.truncf %21 : vector<8x8x8xf32> to vector<8x8x8xbf16>
    %cst_7 = arith.constant dense<0.000000e+00> : vector<8x8x8xf32>
    %31 = tpu.matmul %29, %30, %cst_7 {dimension_numbers = #tpu.dot_dimension_numbers<[2], [2], [1], [1], [0, 0, 0, 1, 1, 1], [0], [0]>} : vector<8x8x8xbf16>, vector<8x8x8xbf16>, vector<8x8x8xf32> -> vector<8x8x8xf32>
    %cst_8 = arith.constant dense<0xFF800000> : vector<8x8xf32>
    %32 = vector.multi_reduction <maximumf>, %31, %cst_8 [2] : vector<8x8x8xf32> to vector<8x8xf32>
    %33 = vector.shape_cast %32 : vector<8x8xf32> to vector<8x8x1xf32>
    %34 = vector.broadcast %33 : vector<8x8x1xf32> to vector<8x8x8xf32>
    %35 = arith.subf %31, %34 : vector<8x8x8xf32>
    %36 = math.exp %35 : vector<8x8x8xf32>
    %cst_9 = arith.constant dense<0.000000e+00> : vector<8x8xf32>
    %37 = vector.multi_reduction <add>, %36, %cst_9 [2] : vector<8x8x8xf32> to vector<8x8xf32>
    %38 = vector.shape_cast %37 : vector<8x8xf32> to vector<8x8x1xf32>
    %39 = tpu.reciprocal %38 {approx = true} : vector<8x8x1xf32> -> vector<8x8x1xf32>
    %40 = vector.broadcast %39 : vector<8x8x1xf32> to vector<8x8x8xf32>
    %41 = arith.mulf %36, %40 : vector<8x8x8xf32>
    %42 = arith.truncf %41 : vector<8x8x8xf32> to vector<8x8x8xbf16>
    %43 = arith.truncf %28 : vector<8x8x8xf32> to vector<8x8x8xbf16>
    %cst_10 = arith.constant dense<0.000000e+00> : vector<8x8x8xf32>
    %44 = tpu.matmul %42, %43, %cst_10 {dimension_numbers = #tpu.dot_dimension_numbers<[2], [1], [1], [2], [0, 0, 0, 1, 1, 2], [0], [0]>} : vector<8x8x8xbf16>, vector<8x8x8xbf16>, vector<8x8x8xf32> -> vector<8x8x8xf32>
    %45 = vector.shape_cast %44 : vector<8x8x8xf32> to vector<64x8xf32>
    %46 = vector.extract_strided_slice %45 {offsets = [0, 0], sizes = [16, 8], strides = [1, 1]} : vector<64x8xf32> to vector<16x8xf32>
    %47 = vector.extract_strided_slice %45 {offsets = [16, 0], sizes = [16, 8], strides = [1, 1]} : vector<64x8xf32> to vector<16x8xf32>
    %48 = vector.extract_strided_slice %45 {offsets = [32, 0], sizes = [16, 8], strides = [1, 1]} : vector<64x8xf32> to vector<16x8xf32>
    %49 = vector.extract_strided_slice %45 {offsets = [48, 0], sizes = [16, 8], strides = [1, 1]} : vector<64x8xf32> to vector<16x8xf32>
    %50 = tpu.concatenate %46, %47, %48, %49 in 1 : vector<16x8xf32>, vector<16x8xf32>, vector<16x8xf32>, vector<16x8xf32> -> vector<16x32xf32>
    %c0_11 = arith.constant 0 : index
    %c0_12 = arith.constant 0 : index
    %51 = vector.load %arg5[%c0_11, %c0_12] : memref<32x32xbf16, #tpu.memory_space<vmem>>, vector<32x32xbf16>
    %52 = arith.truncf %50 : vector<16x32xf32> to vector<16x32xbf16>
    %cst_13 = arith.constant dense<0.000000e+00> : vector<16x32xf32>
    %53 = tpu.matmul %52, %51, %cst_13 {dimension_numbers = #tpu.dot_dimension_numbers<[1], [0], [0], [1], [0, 0, 1, 1], [], []>} : vector<16x32xbf16>, vector<32x32xbf16>, vector<16x32xf32> -> vector<16x32xf32>
    %c0_14 = arith.constant 0 : index
    %c0_15 = arith.constant 0 : index
    %54 = vector.load %arg6[%c0_14, %c0_15] : memref<1x32xf32, #tpu.memory_space<vmem>>, vector<1x32xf32>
    %55 = vector.broadcast %54 : vector<1x32xf32> to vector<16x32xf32>
    %56 = arith.addf %53, %55 : vector<16x32xf32>
    %57 = arith.addf %0, %56 : vector<16x32xf32>
    %c0_16 = arith.constant 0 : index
    %c0_17 = arith.constant 0 : index
    %58 = vector.load %arg7[%c0_16, %c0_17] : memref<32x32xbf16, #tpu.memory_space<vmem>>, vector<32x32xbf16>
    %59 = arith.truncf %57 : vector<16x32xf32> to vector<16x32xbf16>
    %cst_18 = arith.constant dense<0.000000e+00> : vector<16x32xf32>
    %60 = tpu.matmul %59, %58, %cst_18 {dimension_numbers = #tpu.dot_dimension_numbers<[1], [0], [0], [1], [0, 0, 1, 1], [], []>} : vector<16x32xbf16>, vector<32x32xbf16>, vector<16x32xf32> -> vector<16x32xf32>
    %c0_19 = arith.constant 0 : index
    %c0_20 = arith.constant 0 : index
    %61 = vector.load %arg8[%c0_19, %c0_20] : memref<1x32xf32, #tpu.memory_space<vmem>>, vector<1x32xf32>
    %62 = vector.broadcast %61 : vector<1x32xf32> to vector<16x32xf32>
    %63 = arith.addf %60, %62 : vector<16x32xf32>
    %c0_21 = arith.constant 0 : index
    %c0_22 = arith.constant 0 : index
    %64 = vector.load %arg9[%c0_21, %c0_22] : memref<32x64xbf16, #tpu.memory_space<vmem>>, vector<32x64xbf16>
    %65 = arith.truncf %1 : vector<16x32xf32> to vector<16x32xbf16>
    %cst_23 = arith.constant dense<0.000000e+00> : vector<16x64xf32>
    %66 = tpu.matmul %65, %64, %cst_23 {dimension_numbers = #tpu.dot_dimension_numbers<[1], [0], [0], [1], [0, 0, 1, 1], [], []>} : vector<16x32xbf16>, vector<32x64xbf16>, vector<16x64xf32> -> vector<16x64xf32>
    %c0_24 = arith.constant 0 : index
    %c0_25 = arith.constant 0 : index
    %67 = vector.load %arg10[%c0_24, %c0_25] : memref<1x64xf32, #tpu.memory_space<vmem>>, vector<1x64xf32>
    %68 = vector.broadcast %67 : vector<1x64xf32> to vector<16x64xf32>
    %69 = arith.addf %66, %68 : vector<16x64xf32>
    %70 = vector.extract_strided_slice %63 {offsets = [0, 0], sizes = [16, 8], strides = [1, 1]} : vector<16x32xf32> to vector<16x8xf32>
    %71 = vector.extract_strided_slice %63 {offsets = [0, 8], sizes = [16, 8], strides = [1, 1]} : vector<16x32xf32> to vector<16x8xf32>
    %72 = vector.extract_strided_slice %63 {offsets = [0, 16], sizes = [16, 8], strides = [1, 1]} : vector<16x32xf32> to vector<16x8xf32>
    %73 = vector.extract_strided_slice %63 {offsets = [0, 24], sizes = [16, 8], strides = [1, 1]} : vector<16x32xf32> to vector<16x8xf32>
    %74 = tpu.concatenate %70, %71, %72, %73 in 0 : vector<16x8xf32>, vector<16x8xf32>, vector<16x8xf32>, vector<16x8xf32> -> vector<64x8xf32>
    %75 = vector.shape_cast %74 : vector<64x8xf32> to vector<8x8x8xf32>
    %76 = vector.extract_strided_slice %69 {offsets = [0, 0], sizes = [16, 32], strides = [1, 1]} : vector<16x64xf32> to vector<16x32xf32>
    %77 = vector.extract_strided_slice %76 {offsets = [0, 0], sizes = [16, 8], strides = [1, 1]} : vector<16x32xf32> to vector<16x8xf32>
    %78 = vector.extract_strided_slice %76 {offsets = [0, 8], sizes = [16, 8], strides = [1, 1]} : vector<16x32xf32> to vector<16x8xf32>
    %79 = vector.extract_strided_slice %76 {offsets = [0, 16], sizes = [16, 8], strides = [1, 1]} : vector<16x32xf32> to vector<16x8xf32>
    %80 = vector.extract_strided_slice %76 {offsets = [0, 24], sizes = [16, 8], strides = [1, 1]} : vector<16x32xf32> to vector<16x8xf32>
    %81 = tpu.concatenate %77, %78, %79, %80 in 0 : vector<16x8xf32>, vector<16x8xf32>, vector<16x8xf32>, vector<16x8xf32> -> vector<64x8xf32>
    %82 = vector.shape_cast %81 : vector<64x8xf32> to vector<8x8x8xf32>
    %83 = vector.extract_strided_slice %69 {offsets = [0, 32], sizes = [16, 32], strides = [1, 1]} : vector<16x64xf32> to vector<16x32xf32>
    %84 = vector.extract_strided_slice %83 {offsets = [0, 0], sizes = [16, 8], strides = [1, 1]} : vector<16x32xf32> to vector<16x8xf32>
    %85 = vector.extract_strided_slice %83 {offsets = [0, 8], sizes = [16, 8], strides = [1, 1]} : vector<16x32xf32> to vector<16x8xf32>
    %86 = vector.extract_strided_slice %83 {offsets = [0, 16], sizes = [16, 8], strides = [1, 1]} : vector<16x32xf32> to vector<16x8xf32>
    %87 = vector.extract_strided_slice %83 {offsets = [0, 24], sizes = [16, 8], strides = [1, 1]} : vector<16x32xf32> to vector<16x8xf32>
    %88 = tpu.concatenate %84, %85, %86, %87 in 0 : vector<16x8xf32>, vector<16x8xf32>, vector<16x8xf32>, vector<16x8xf32> -> vector<64x8xf32>
    %89 = vector.shape_cast %88 : vector<64x8xf32> to vector<8x8x8xf32>
    %90 = arith.truncf %75 : vector<8x8x8xf32> to vector<8x8x8xbf16>
    %91 = arith.truncf %82 : vector<8x8x8xf32> to vector<8x8x8xbf16>
    %cst_26 = arith.constant dense<0.000000e+00> : vector<8x8x8xf32>
    %92 = tpu.matmul %90, %91, %cst_26 {dimension_numbers = #tpu.dot_dimension_numbers<[2], [2], [1], [1], [0, 0, 0, 1, 1, 1], [0], [0]>} : vector<8x8x8xbf16>, vector<8x8x8xbf16>, vector<8x8x8xf32> -> vector<8x8x8xf32>
    %cst_27 = arith.constant dense<0xFF800000> : vector<8x8xf32>
    %93 = vector.multi_reduction <maximumf>, %92, %cst_27 [2] : vector<8x8x8xf32> to vector<8x8xf32>
    %94 = vector.shape_cast %93 : vector<8x8xf32> to vector<8x8x1xf32>
    %95 = vector.broadcast %94 : vector<8x8x1xf32> to vector<8x8x8xf32>
    %96 = arith.subf %92, %95 : vector<8x8x8xf32>
    %97 = math.exp %96 : vector<8x8x8xf32>
    %cst_28 = arith.constant dense<0.000000e+00> : vector<8x8xf32>
    %98 = vector.multi_reduction <add>, %97, %cst_28 [2] : vector<8x8x8xf32> to vector<8x8xf32>
    %99 = vector.shape_cast %98 : vector<8x8xf32> to vector<8x8x1xf32>
    %100 = tpu.reciprocal %99 {approx = true} : vector<8x8x1xf32> -> vector<8x8x1xf32>
    %101 = vector.broadcast %100 : vector<8x8x1xf32> to vector<8x8x8xf32>
    %102 = arith.mulf %97, %101 : vector<8x8x8xf32>
    %103 = arith.truncf %102 : vector<8x8x8xf32> to vector<8x8x8xbf16>
    %104 = arith.truncf %89 : vector<8x8x8xf32> to vector<8x8x8xbf16>
    %cst_29 = arith.constant dense<0.000000e+00> : vector<8x8x8xf32>
    %105 = tpu.matmul %103, %104, %cst_29 {dimension_numbers = #tpu.dot_dimension_numbers<[2], [1], [1], [2], [0, 0, 0, 1, 1, 2], [0], [0]>} : vector<8x8x8xbf16>, vector<8x8x8xbf16>, vector<8x8x8xf32> -> vector<8x8x8xf32>
    %106 = vector.shape_cast %105 : vector<8x8x8xf32> to vector<64x8xf32>
    %107 = vector.extract_strided_slice %106 {offsets = [0, 0], sizes = [16, 8], strides = [1, 1]} : vector<64x8xf32> to vector<16x8xf32>
    %108 = vector.extract_strided_slice %106 {offsets = [16, 0], sizes = [16, 8], strides = [1, 1]} : vector<64x8xf32> to vector<16x8xf32>
    %109 = vector.extract_strided_slice %106 {offsets = [32, 0], sizes = [16, 8], strides = [1, 1]} : vector<64x8xf32> to vector<16x8xf32>
    %110 = vector.extract_strided_slice %106 {offsets = [48, 0], sizes = [16, 8], strides = [1, 1]} : vector<64x8xf32> to vector<16x8xf32>
    %111 = tpu.concatenate %107, %108, %109, %110 in 1 : vector<16x8xf32>, vector<16x8xf32>, vector<16x8xf32>, vector<16x8xf32> -> vector<16x32xf32>
    %c0_30 = arith.constant 0 : index
    %c0_31 = arith.constant 0 : index
    %112 = vector.load %arg11[%c0_30, %c0_31] : memref<32x32xbf16, #tpu.memory_space<vmem>>, vector<32x32xbf16>
    %113 = arith.truncf %111 : vector<16x32xf32> to vector<16x32xbf16>
    %cst_32 = arith.constant dense<0.000000e+00> : vector<16x32xf32>
    %114 = tpu.matmul %113, %112, %cst_32 {dimension_numbers = #tpu.dot_dimension_numbers<[1], [0], [0], [1], [0, 0, 1, 1], [], []>} : vector<16x32xbf16>, vector<32x32xbf16>, vector<16x32xf32> -> vector<16x32xf32>
    %c0_33 = arith.constant 0 : index
    %c0_34 = arith.constant 0 : index
    %115 = vector.load %arg12[%c0_33, %c0_34] : memref<1x32xf32, #tpu.memory_space<vmem>>, vector<1x32xf32>
    %116 = vector.broadcast %115 : vector<1x32xf32> to vector<16x32xf32>
    %117 = arith.addf %114, %116 : vector<16x32xf32>
    %118 = arith.addf %57, %117 : vector<16x32xf32>
    %c0_35 = arith.constant 0 : index
    %c0_36 = arith.constant 0 : index
    %119 = vector.load %arg13[%c0_35, %c0_36] : memref<32x16xbf16, #tpu.memory_space<vmem>>, vector<32x16xbf16>
    %120 = arith.truncf %118 : vector<16x32xf32> to vector<16x32xbf16>
    %cst_37 = arith.constant dense<0.000000e+00> : vector<16x16xf32>
    %121 = tpu.matmul %120, %119, %cst_37 {dimension_numbers = #tpu.dot_dimension_numbers<[1], [0], [0], [1], [0, 0, 1, 1], [], []>} : vector<16x32xbf16>, vector<32x16xbf16>, vector<16x16xf32> -> vector<16x16xf32>
    %c0_38 = arith.constant 0 : index
    %c0_39 = arith.constant 0 : index
    %122 = vector.load %arg14[%c0_38, %c0_39] : memref<1x16xf32, #tpu.memory_space<vmem>>, vector<1x16xf32>
    %123 = vector.broadcast %122 : vector<1x16xf32> to vector<16x16xf32>
    %124 = arith.addf %121, %123 : vector<16x16xf32>
    %c0_40 = arith.constant 0 : index
    %c0_41 = arith.constant 0 : index
    %125 = vector.load %arg15[%c0_40, %c0_41] : memref<16x32xbf16, #tpu.memory_space<vmem>>, vector<16x32xbf16>
    %126 = arith.truncf %124 : vector<16x16xf32> to vector<16x16xbf16>
    %cst_42 = arith.constant dense<0.000000e+00> : vector<16x32xf32>
    %127 = tpu.matmul %126, %125, %cst_42 {dimension_numbers = #tpu.dot_dimension_numbers<[1], [0], [0], [1], [0, 0, 1, 1], [], []>} : vector<16x16xbf16>, vector<16x32xbf16>, vector<16x32xf32> -> vector<16x32xf32>
    %c0_43 = arith.constant 0 : index
    %c0_44 = arith.constant 0 : index
    %128 = vector.load %arg16[%c0_43, %c0_44] : memref<1x32xf32, #tpu.memory_space<vmem>>, vector<1x32xf32>
    %129 = vector.broadcast %128 : vector<1x32xf32> to vector<16x32xf32>
    %130 = arith.addf %127, %129 : vector<16x32xf32>
    %131 = arith.addf %118, %130 : vector<16x32xf32>
    %c0_45 = arith.constant 0 : index
    %c0_46 = arith.constant 0 : index
    %132 = vector.load %arg17[%c0_45, %c0_46] : memref<16x32xf32, #tpu.memory_space<vmem>>, vector<16x32xf32>
    tpu.vector_store %arg17[%c0_45, %c0_46], %131 {strides = array<i32>} : memref<16x32xf32, #tpu.memory_space<vmem>>, vector<16x32xf32>,
    return
  }
  func.func @transform_0(%arg0: i32) -> (i32, i32) {
    %c0_i32 = arith.constant 0 : i32
    %c0_i32_0 = arith.constant 0 : i32
    return %arg0, %c0_i32 : i32, i32
  }
  func.func @transform_1(%arg0: i32) -> (i32, i32) {
    %c0_i32 = arith.constant 0 : i32
    %c0_i32_0 = arith.constant 0 : i32
    return %arg0, %c0_i32 : i32, i32
  }
  func.func @transform_2(%arg0: i32) -> (i32, i32) {
    %c0_i32 = arith.constant 0 : i32
    %c0_i32_0 = arith.constant 0 : i32
    %c0_i32_1 = arith.constant 0 : i32
    return %c0_i32, %c0_i32_0 : i32, i32
  }
  func.func @transform_3(%arg0: i32) -> (i32, i32) {
    %c0_i32 = arith.constant 0 : i32
    %c0_i32_0 = arith.constant 0 : i32
    %c0_i32_1 = arith.constant 0 : i32
    return %c0_i32, %c0_i32_0 : i32, i32
  }
  func.func @transform_4(%arg0: i32) -> (i32, i32) {
    %c0_i32 = arith.constant 0 : i32
    %c0_i32_0 = arith.constant 0 : i32
    %c0_i32_1 = arith.constant 0 : i32
    return %c0_i32, %c0_i32_0 : i32, i32
  }
  func.func @transform_5(%arg0: i32) -> (i32, i32) {
    %c0_i32 = arith.constant 0 : i32
    %c0_i32_0 = arith.constant 0 : i32
    %c0_i32_1 = arith.constant 0 : i32
    return %c0_i32, %c0_i32_0 : i32, i32
  }
  func.func @transform_6(%arg0: i32) -> (i32, i32) {
    %c0_i32 = arith.constant 0 : i32
    %c0_i32_0 = arith.constant 0 : i32
    %c0_i32_1 = arith.constant 0 : i32
    return %c0_i32, %c0_i32_0 : i32, i32
  }
  func.func @transform_7(%arg0: i32) -> (i32, i32) {
    %c0_i32 = arith.constant 0 : i32
    %c0_i32_0 = arith.constant 0 : i32
    %c0_i32_1 = arith.constant 0 : i32
    return %c0_i32, %c0_i32_0 : i32, i32
  }
  func.func @transform_8(%arg0: i32) -> (i32, i32) {
    %c0_i32 = arith.constant 0 : i32
    %c0_i32_0 = arith.constant 0 : i32
    %c0_i32_1 = arith.constant 0 : i32
    return %c0_i32, %c0_i32_0 : i32, i32
  }
  func.func @transform_9(%arg0: i32) -> (i32, i32) {
    %c0_i32 = arith.constant 0 : i32
    %c0_i32_0 = arith.constant 0 : i32
    %c0_i32_1 = arith.constant 0 : i32
    return %c0_i32, %c0_i32_0 : i32, i32
  }
  func.func @transform_10(%arg0: i32) -> (i32, i32) {
    %c0_i32 = arith.constant 0 : i32
    %c0_i32_0 = arith.constant 0 : i32
    %c0_i32_1 = arith.constant 0 : i32
    return %c0_i32, %c0_i32_0 : i32, i32
  }
  func.func @transform_11(%arg0: i32) -> (i32, i32) {
    %c0_i32 = arith.constant 0 : i32
    %c0_i32_0 = arith.constant 0 : i32
    %c0_i32_1 = arith.constant 0 : i32
    return %c0_i32, %c0_i32_0 : i32, i32
  }
  func.func @transform_12(%arg0: i32) -> (i32, i32) {
    %c0_i32 = arith.constant 0 : i32
    %c0_i32_0 = arith.constant 0 : i32
    %c0_i32_1 = arith.constant 0 : i32
    return %c0_i32, %c0_i32_0 : i32, i32
  }
  func.func @transform_13(%arg0: i32) -> (i32, i32) {
    %c0_i32 = arith.constant 0 : i32
    %c0_i32_0 = arith.constant 0 : i32
    %c0_i32_1 = arith.constant 0 : i32
    return %c0_i32, %c0_i32_0 : i32, i32
  }
  func.func @transform_14(%arg0: i32) -> (i32, i32) {
    %c0_i32 = arith.constant 0 : i32
    %c0_i32_0 = arith.constant 0 : i32
    %c0_i32_1 = arith.constant 0 : i32
    return %c0_i32, %c0_i32_0 : i32, i32
  }
  func.func @transform_15(%arg0: i32) -> (i32, i32) {
    %c0_i32 = arith.constant 0 : i32
    %c0_i32_0 = arith.constant 0 : i32
    %c0_i32_1 = arith.constant 0 : i32
    return %c0_i32, %c0_i32_0 : i32, i32
  }
  func.func @transform_16(%arg0: i32) -> (i32, i32) {
    %c0_i32 = arith.constant 0 : i32
    %c0_i32_0 = arith.constant 0 : i32
    return %arg0, %c0_i32 : i32, i32
  }
}

module attributes {stable_mosaic.version = 11 : i64} {
  func.func @kernel(%arg0: i32, %arg1: memref<16x32xf32, #tpu.memory_space<vmem>>, %arg2: memref<16x32xf32, #tpu.memory_space<vmem>>, %arg3: memref<32x96xbf16, #tpu.memory_space<vmem>>, %arg4: memref<1x96xf32, #tpu.memory_space<vmem>>, %arg5: memref<32x32xbf16, #tpu.memory_space<vmem>>, %arg6: memref<1x32xf32, #tpu.memory_space<vmem>>, %arg7: memref<32x32xbf16, #tpu.memory_space<vmem>>, %arg8: memref<1x32xf32, #tpu.memory_space<vmem>>, %arg9: memref<32x64xbf16, #tpu.memory_space<vmem>>, %arg10: memref<1x64xf32, #tpu.memory_space<vmem>>, %arg11: memref<32x32xbf16, #tpu.memory_space<vmem>>, %arg12: memref<1x32xf32, #tpu.memory_space<vmem>>, %arg13: memref<32x16xbf16, #tpu.memory_space<vmem>>, %arg14: memref<1x16xf32, #tpu.memory_space<vmem>>, %arg15: memref<16x32xbf16, #tpu.memory_space<vmem>>, %arg16: memref<1x32xf32, #tpu.memory_space<vmem>>, %arg17: memref<16x32xf32, #tpu.memory_space<vmem>>) attributes {dimension_semantics = [#tpu.dimension_semantics<parallel>], iteration_bounds = array<i64: 2>, scalar_prefetch = 0 : i64, scratch_operands = 0 : i64, tpu.core_type = #tpu.core_type<tc>, window_params = [{transform_indices = @transform_0, window_bounds = array<i64: 16, 32>}, {transform_indices = @transform_1, window_bounds = array<i64: 16, 32>}, {pipeline_mode = #tpu.pipeline_mode<synchronous>, transform_indices = @transform_2, window_bounds = array<i64: 32, 96>}, {pipeline_mode = #tpu.pipeline_mode<synchronous>, transform_indices = @transform_3, window_bounds = array<i64: 1, 96>}, {pipeline_mode = #tpu.pipeline_mode<synchronous>, transform_indices = @transform_4, window_bounds = array<i64: 32, 32>}, {pipeline_mode = #tpu.pipeline_mode<synchronous>, transform_indices = @transform_5, window_bounds = array<i64: 1, 32>}, {pipeline_mode = #tpu.pipeline_mode<synchronous>, transform_indices = @transform_6, window_bounds = array<i64: 32, 32>}, {pipeline_mode = #tpu.pipeline_mode<synchronous>, transform_indices = @transform_7, window_bounds = array<i64: 1, 32>}, {pipeline_mode = #tpu.pipeline_mode<synchronous>, transform_indices = @transform_8, window_bounds = array<i64: 32, 64>}, {pipeline_mode = #tpu.pipeline_mode<synchronous>, transform_indices = @transform_9, window_bounds = array<i64: 1, 64>}, {pipeline_mode = #tpu.pipeline_mode<synchronous>, transform_indices = @transform_10, window_bounds = array<i64: 32, 32>}, {pipeline_mode = #tpu.pipeline_mode<synchronous>, transform_indices = @transform_11, window_bounds = array<i64: 1, 32>}, {pipeline_mode = #tpu.pipeline_mode<synchronous>, transform_indices = @transform_12, window_bounds = array<i64: 32, 16>}, {pipeline_mode = #tpu.pipeline_mode<synchronous>, transform_indices = @transform_13, window_bounds = array<i64: 1, 16>}, {pipeline_mode = #tpu.pipeline_mode<synchronous>, transform_indices = @transform_14, window_bounds = array<i64: 16, 32>}, {pipeline_mode = #tpu.pipeline_mode<synchronous>, transform_indices = @transform_15, window_bounds = array<i64: 1, 32>}, {transform_indices = @transform_16, window_bounds = array<i64: 16, 32>}]} {
    %c0 = arith.constant 0 : index
    %c0_0 = arith.constant 0 : index
    %0 = vector.load %arg1[%c0, %c0_0] : memref<16x32xf32, #tpu.memory_space<vmem>>, vector<16x32xf32>
    %c0_1 = arith.constant 0 : index
    %c0_2 = arith.constant 0 : index
    %1 = vector.load %arg2[%c0_1, %c0_2] : memref<16x32xf32, #tpu.memory_space<vmem>>, vector<16x32xf32>
    %c0_3 = arith.constant 0 : index
    %c0_4 = arith.constant 0 : index
    %2 = vector.load %arg3[%c0_3, %c0_4] : memref<32x96xbf16, #tpu.memory_space<vmem>>, vector<32x96xbf16>
    %3 = arith.truncf %0 : vector<16x32xf32> to vector<16x32xbf16>
    %cst = arith.constant dense<0.000000e+00> : vector<16x96xf32>
    %4 = tpu.matmul %3, %2, %cst {dimension_numbers = #tpu.dot_dimension_numbers<[1], [0], [0], [1], [0, 0, 1, 1], [], []>} : vector<16x32xbf16>, vector<32x96xbf16>, vector<16x96xf32> -> vector<16x96xf32>
    %c0_5 = arith.constant 0 : index
    %c0_6 = arith.constant 0 : index
    %5 = vector.load %arg4[%c0_5, %c0_6] : memref<1x96xf32, #tpu.memory_space<vmem>>, vector<1x96xf32>
    %6 = vector.broadcast %5 : vector<1x96xf32> to vector<16x96xf32>
    %7 = arith.addf %4, %6 : vector<16x96xf32>
    %8 = vector.extract_strided_slice %7 {offsets = [0, 0], sizes = [16, 32], strides = [1, 1]} : vector<16x96xf32> to vector<16x32xf32>
    %9 = vector.extract_strided_slice %8 {offsets = [0, 0], sizes = [16, 8], strides = [1, 1]} : vector<16x32xf32> to vector<16x8xf32>
    %10 = vector.extract_strided_slice %8 {offsets = [0, 8], sizes = [16, 8], strides = [1, 1]} : vector<16x32xf32> to vector<16x8xf32>
    %11 = vector.extract_strided_slice %8 {offsets = [0, 16], sizes = [16, 8], strides = [1, 1]} : vector<16x32xf32> to vector<16x8xf32>
    %12 = vector.extract_strided_slice %8 {offsets = [0, 24], sizes = [16, 8], strides = [1, 1]} : vector<16x32xf32> to vector<16x8xf32>
    %13 = tpu.concatenate %9, %10, %11, %12 in 0 : vector<16x8xf32>, vector<16x8xf32>, vector<16x8xf32>, vector<16x8xf32> -> vector<64x8xf32>
    %14 = vector.shape_cast %13 : vector<64x8xf32> to vector<8x8x8xf32>
    %15 = vector.extract_strided_slice %7 {offsets = [0, 32], sizes = [16, 32], strides = [1, 1]} : vector<16x96xf32> to vector<16x32xf32>
    %16 = vector.extract_strided_slice %15 {offsets = [0, 0], sizes = [16, 8], strides = [1, 1]} : vector<16x32xf32> to vector<16x8xf32>
    %17 = vector.extract_strided_slice %15 {offsets = [0, 8], sizes = [16, 8], strides = [1, 1]} : vector<16x32xf32> to vector<16x8xf32>
    %18 = vector.extract_strided_slice %15 {offsets = [0, 16], sizes = [16, 8], strides = [1, 1]} : vector<16x32xf32> to vector<16x8xf32>
    %19 = vector.extract_strided_slice %15 {offsets = [0, 24], sizes = [16, 8], strides = [1, 1]} : vector<16x32xf32> to vector<16x8xf32>
    %20 = tpu.concatenate %16, %17, %18, %19 in 0 : vector<16x8xf32>, vector<16x8xf32>, vector<16x8xf32>, vector<16x8xf32> -> vector<64x8xf32>
    %21 = vector.shape_cast %20 : vector<64x8xf32> to vector<8x8x8xf32>
    %22 = vector.extract_strided_slice %7 {offsets = [0, 64], sizes = [16, 32], strides = [1, 1]} : vector<16x96xf32> to vector<16x32xf32>
    %23 = vector.extract_strided_slice %22 {offsets = [0, 0], sizes = [16, 8], strides = [1, 1]} : vector<16x32xf32> to vector<16x8xf32>
    %24 = vector.extract_strided_slice %22 {offsets = [0, 8], sizes = [16, 8], strides = [1, 1]} : vector<16x32xf32> to vector<16x8xf32>
    %25 = vector.extract_strided_slice %22 {offsets = [0, 16], sizes = [16, 8], strides = [1, 1]} : vector<16x32xf32> to vector<16x8xf32>
    %26 = vector.extract_strided_slice %22 {offsets = [0, 24], sizes = [16, 8], strides = [1, 1]} : vector<16x32xf32> to vector<16x8xf32>
    %27 = tpu.concatenate %23, %24, %25, %26 in 0 : vector<16x8xf32>, vector<16x8xf32>, vector<16x8xf32>, vector<16x8xf32> -> vector<64x8xf32>
    %28 = vector.shape_cast %27 : vector<64x8xf32> to vector<8x8x8xf32>
    %29 = arith.truncf %14 : vector<8x8x8xf32> to vector<8x8x8xbf16>
    %30 = arith.truncf %21 : vector<8x8x8xf32> to vector<8x8x8xbf16>
    %cst_7 = arith.constant dense<0.000000e+00> : vector<8x8x8xf32>
    %31 = tpu.matmul %29, %30, %cst_7 {dimension_numbers = #tpu.dot_dimension_numbers<[2], [2], [1], [1], [0, 0, 0, 1, 1, 1], [0], [0]>} : vector<8x8x8xbf16>, vector<8x8x8xbf16>, vector<8x8x8xf32> -> vector<8x8x8xf32>
    %cst_8 = arith.constant dense<0xFF800000> : vector<8x8xf32>
    %32 = vector.multi_reduction <maximumf>, %31, %cst_8 [2] : vector<8x8x8xf32> to vector<8x8xf32>
    %33 = vector.shape_cast %32 : vector<8x8xf32> to vector<8x8x1xf32>
    %34 = vector.broadcast %33 : vector<8x8x1xf32> to vector<8x8x8xf32>
    %35 = arith.subf %31, %34 : vector<8x8x8xf32>
    %36 = math.exp %35 : vector<8x8x8xf32>
    %cst_9 = arith.constant dense<0.000000e+00> : vector<8x8xf32>
    %37 = vector.multi_reduction <add>, %36, %cst_9 [2] : vector<8x8x8xf32> to vector<8x8xf32>
    %38 = vector.shape_cast %37 : vector<8x8xf32> to vector<8x8x1xf32>
    %39 = tpu.reciprocal %38 {approx = true} : vector<8x8x1xf32> -> vector<8x8x1xf32>
    %40 = vector.broadcast %39 : vector<8x8x1xf32> to vector<8x8x8xf32>
    %41 = arith.mulf %36, %40 : vector<8x8x8xf32>
    %42 = arith.truncf %41 : vector<8x8x8xf32> to vector<8x8x8xbf16>
    %43 = arith.truncf %28 : vector<8x8x8xf32> to vector<8x8x8xbf16>
    %cst_10 = arith.constant dense<0.000000e+00> : vector<8x8x8xf32>
    %44 = tpu.matmul %42, %43, %cst_10 {dimension_numbers = #tpu.dot_dimension_numbers<[2], [1], [1], [2], [0, 0, 0, 1, 1, 2], [0], [0]>} : vector<8x8x8xbf16>, vector<8x8x8xbf16>, vector<8x8x8xf32> -> vector<8x8x8xf32>
    %45 = vector.shape_cast %44 : vector<8x8x8xf32> to vector<64x8xf32>
    %46 = vector.extract_strided_slice %45 {offsets = [0, 0], sizes = [16, 8], strides = [1, 1]} : vector<64x8xf32> to vector<16x8xf32>
    %47 = vector.extract_strided_slice %45 {offsets = [16, 0], sizes = [16, 8], strides = [1, 1]} : vector<64x8xf32> to vector<16x8xf32>
    %48 = vector.extract_strided_slice %45 {offsets = [32, 0], sizes = [16, 8], strides = [1, 1]} : vector<64x8xf32> to vector<16x8xf32>
    %49 = vector.extract_strided_slice %45 {offsets = [48, 0], sizes = [16, 8], strides = [1, 1]} : vector<64x8xf32> to vector<16x8xf32>
    %50 = tpu.concatenate %46, %47, %48, %49 in 1 : vector<16x8xf32>, vector<16x8xf32>, vector<16x8xf32>, vector<16x8xf32> -> vector<16x32xf32>
    %c0_11 = arith.constant 0 : index
    %c0_12 = arith.constant 0 : index
    %51 = vector.load %arg5[%c0_11, %c0_12] : memref<32x32xbf16, #tpu.memory_space<vmem>>, vector<32x32xbf16>
    %52 = arith.truncf %50 : vector<16x32xf32> to vector<16x32xbf16>
    %cst_13 = arith.constant dense<0.000000e+00> : vector<16x32xf32>
    %53 = tpu.matmul %52, %51, %cst_13 {dimension_numbers = #tpu.dot_dimension_numbers<[1], [0], [0], [1], [0, 0, 1, 1], [], []>} : vector<16x32xbf16>, vector<32x32xbf16>, vector<16x32xf32> -> vector<16x32xf32>
    %c0_14 = arith.constant 0 : index
    %c0_15 = arith.constant 0 : index
    %54 = vector.load %arg6[%c0_14, %c0_15] : memref<1x32xf32, #tpu.memory_space<vmem>>, vector<1x32xf32>
    %55 = vector.broadcast %54 : vector<1x32xf32> to vector<16x32xf32>
    %56 = arith.addf %53, %55 : vector<16x32xf32>
    %57 = arith.addf %0, %56 : vector<16x32xf32>
    %c0_16 = arith.constant 0 : index
    %c0_17 = arith.constant 0 : index
    %58 = vector.load %arg7[%c0_16, %c0_17] : memref<32x32xbf16, #tpu.memory_space<vmem>>, vector<32x32xbf16>
    %59 = arith.truncf %57 : vector<16x32xf32> to vector<16x32xbf16>
    %cst_18 = arith.constant dense<0.000000e+00> : vector<16x32xf32>
    %60 = tpu.matmul %59, %58, %cst_18 {dimension_numbers = #tpu.dot_dimension_numbers<[1], [0], [0], [1], [0, 0, 1, 1], [], []>} : vector<16x32xbf16>, vector<32x32xbf16>, vector<16x32xf32> -> vector<16x32xf32>
    %c0_19 = arith.constant 0 : index
    %c0_20 = arith.constant 0 : index
    %61 = vector.load %arg8[%c0_19, %c0_20] : memref<1x32xf32, #tpu.memory_space<vmem>>, vector<1x32xf32>
    %62 = vector.broadcast %61 : vector<1x32xf32> to vector<16x32xf32>
    %63 = arith.addf %60, %62 : vector<16x32xf32>
    %c0_21 = arith.constant 0 : index
    %c0_22 = arith.constant 0 : index
    %64 = vector.load %arg9[%c0_21, %c0_22] : memref<32x64xbf16, #tpu.memory_space<vmem>>, vector<32x64xbf16>
    %65 = arith.truncf %1 : vector<16x32xf32> to vector<16x32xbf16>
    %cst_23 = arith.constant dense<0.000000e+00> : vector<16x64xf32>
    %66 = tpu.matmul %65, %64, %cst_23 {dimension_numbers = #tpu.dot_dimension_numbers<[1], [0], [0], [1], [0, 0, 1, 1], [], []>} : vector<16x32xbf16>, vector<32x64xbf16>, vector<16x64xf32> -> vector<16x64xf32>
    %c0_24 = arith.constant 0 : index
    %c0_25 = arith.constant 0 : index
    %67 = vector.load %arg10[%c0_24, %c0_25] : memref<1x64xf32, #tpu.memory_space<vmem>>, vector<1x64xf32>
    %68 = vector.broadcast %67 : vector<1x64xf32> to vector<16x64xf32>
    %69 = arith.addf %66, %68 : vector<16x64xf32>
    %70 = vector.extract_strided_slice %63 {offsets = [0, 0], sizes = [16, 8], strides = [1, 1]} : vector<16x32xf32> to vector<16x8xf32>
    %71 = vector.extract_strided_slice %63 {offsets = [0, 8], sizes = [16, 8], strides = [1, 1]} : vector<16x32xf32> to vector<16x8xf32>
    %72 = vector.extract_strided_slice %63 {offsets = [0, 16], sizes = [16, 8], strides = [1, 1]} : vector<16x32xf32> to vector<16x8xf32>
    %73 = vector.extract_strided_slice %63 {offsets = [0, 24], sizes = [16, 8], strides = [1, 1]} : vector<16x32xf32> to vector<16x8xf32>
    %74 = tpu.concatenate %70, %71, %72, %73 in 0 : vector<16x8xf32>, vector<16x8xf32>, vector<16x8xf32>, vector<16x8xf32> -> vector<64x8xf32>
    %75 = vector.shape_cast %74 : vector<64x8xf32> to vector<8x8x8xf32>
    %76 = vector.extract_strided_slice %69 {offsets = [0, 0], sizes = [16, 32], strides = [1, 1]} : vector<16x64xf32> to vector<16x32xf32>
    %77 = vector.extract_strided_slice %76 {offsets = [0, 0], sizes = [16, 8], strides = [1, 1]} : vector<16x32xf32> to vector<16x8xf32>
    %78 = vector.extract_strided_slice %76 {offsets = [0, 8], sizes = [16, 8], strides = [1, 1]} : vector<16x32xf32> to vector<16x8xf32>
    %79 = vector.extract_strided_slice %76 {offsets = [0, 16], sizes = [16, 8], strides = [1, 1]} : vector<16x32xf32> to vector<16x8xf32>
    %80 = vector.extract_strided_slice %76 {offsets = [0, 24], sizes = [16, 8], strides = [1, 1]} : vector<16x32xf32> to vector<16x8xf32>
    %81 = tpu.concatenate %77, %78, %79, %80 in 0 : vector<16x8xf32>, vector<16x8xf32>, vector<16x8xf32>, vector<16x8xf32> -> vector<64x8xf32>
    %82 = vector.shape_cast %81 : vector<64x8xf32> to vector<8x8x8xf32>
    %83 = vector.extract_strided_slice %69 {offsets = [0, 32], sizes = [16, 32], strides = [1, 1]} : vector<16x64xf32> to vector<16x32xf32>
    %84 = vector.extract_strided_slice %83 {offsets = [0, 0], sizes = [16, 8], strides = [1, 1]} : vector<16x32xf32> to vector<16x8xf32>
    %85 = vector.extract_strided_slice %83 {offsets = [0, 8], sizes = [16, 8], strides = [1, 1]} : vector<16x32xf32> to vector<16x8xf32>
    %86 = vector.extract_strided_slice %83 {offsets = [0, 16], sizes = [16, 8], strides = [1, 1]} : vector<16x32xf32> to vector<16x8xf32>
    %87 = vector.extract_strided_slice %83 {offsets = [0, 24], sizes = [16, 8], strides = [1, 1]} : vector<16x32xf32> to vector<16x8xf32>
    %88 = tpu.concatenate %84, %85, %86, %87 in 0 : vector<16x8xf32>, vector<16x8xf32>, vector<16x8xf32>, vector<16x8xf32> -> vector<64x8xf32>
    %89 = vector.shape_cast %88 : vector<64x8xf32> to vector<8x8x8xf32>
    %90 = arith.truncf %75 : vector<8x8x8xf32> to vector<8x8x8xbf16>
    %91 = arith.truncf %82 : vector<8x8x8xf32> to vector<8x8x8xbf16>
    %cst_26 = arith.constant dense<0.000000e+00> : vector<8x8x8xf32>
    %92 = tpu.matmul %90, %91, %cst_26 {dimension_numbers = #tpu.dot_dimension_numbers<[2], [2], [1], [1], [0, 0, 0, 1, 1, 1], [0], [0]>} : vector<8x8x8xbf16>, vector<8x8x8xbf16>, vector<8x8x8xf32> -> vector<8x8x8xf32>
    %cst_27 = arith.constant dense<0xFF800000> : vector<8x8xf32>
    %93 = vector.multi_reduction <maximumf>, %92, %cst_27 [2] : vector<8x8x8xf32> to vector<8x8xf32>
    %94 = vector.shape_cast %93 : vector<8x8xf32> to vector<8x8x1xf32>
    %95 = vector.broadcast %94 : vector<8x8x1xf32> to vector<8x8x8xf32>
    %96 = arith.subf %92, %95 : vector<8x8x8xf32>
    %97 = math.exp %96 : vector<8x8x8xf32>
    %cst_28 = arith.constant dense<0.000000e+00> : vector<8x8xf32>
    %98 = vector.multi_reduction <add>, %97, %cst_28 [2] : vector<8x8x8xf32> to vector<8x8xf32>
    %99 = vector.shape_cast %98 : vector<8x8xf32> to vector<8x8x1xf32>
    %100 = tpu.reciprocal %99 {approx = true} : vector<8x8x1xf32> -> vector<8x8x1xf32>
    %101 = vector.broadcast %100 : vector<8x8x1xf32> to vector<8x8x8xf32>
    %102 = arith.mulf %97, %101 : vector<8x8x8xf32>
    %103 = arith.truncf %102 : vector<8x8x8xf32> to vector<8x8x8xbf16>
    %104 = arith.truncf %89 : vector<8x8x8xf32> to vector<8x8x8xbf16>
    %cst_29 = arith.constant dense<0.000000e+00> : vector<8x8x8xf32>
    %105 = tpu.matmul %103, %104, %cst_29 {dimension_numbers = #tpu.dot_dimension_numbers<[2], [1], [1], [2], [0, 0, 0, 1, 1, 2], [0], [0]>} : vector<8x8x8xbf16>, vector<8x8x8xbf16>, vector<8x8x8xf32> -> vector<8x8x8xf32>
    %106 = vector.shape_cast %105 : vector<8x8x8xf32> to vector<64x8xf32>
    %107 = vector.extract_strided_slice %106 {offsets = [0, 0], sizes = [16, 8], strides = [1, 1]} : vector<64x8xf32> to vector<16x8xf32>
    %108 = vector.extract_strided_slice %106 {offsets = [16, 0], sizes = [16, 8], strides = [1, 1]} : vector<64x8xf32> to vector<16x8xf32>
    %109 = vector.extract_strided_slice %106 {offsets = [32, 0], sizes = [16, 8], strides = [1, 1]} : vector<64x8xf32> to vector<16x8xf32>
    %110 = vector.extract_strided_slice %106 {offsets = [48, 0], sizes = [16, 8], strides = [1, 1]} : vector<64x8xf32> to vector<16x8xf32>
    %111 = tpu.concatenate %107, %108, %109, %110 in 1 : vector<16x8xf32>, vector<16x8xf32>, vector<16x8xf32>, vector<16x8xf32> -> vector<16x32xf32>
    %c0_30 = arith.constant 0 : index
    %c0_31 = arith.constant 0 : index
    %112 = vector.load %arg11[%c0_30, %c0_31] : memref<32x32xbf16, #tpu.memory_space<vmem>>, vector<32x32xbf16>
    %113 = arith.truncf %111 : vector<16x32xf32> to vector<16x32xbf16>
    %cst_32 = arith.constant dense<0.000000e+00> : vector<16x32xf32>
    %114 = tpu.matmul %113, %112, %cst_32 {dimension_numbers = #tpu.dot_dimension_numbers<[1], [0], [0], [1], [0, 0, 1, 1], [], []>} : vector<16x32xbf16>, vector<32x32xbf16>, vector<16x32xf32> -> vector<16x32xf32>
    %c0_33 = arith.constant 0 : index
    %c0_34 = arith.constant 0 : index
    %115 = vector.load %arg12[%c0_33, %c0_34] : memref<1x32xf32, #tpu.memory_space<vmem>>, vector<1x32xf32>
    %116 = vector.broadcast %115 : vector<1x32xf32> to vector<16x32xf32>
    %117 = arith.addf %114, %116 : vector<16x32xf32>
    %118 = arith.addf %57, %117 : vector<16x32xf32>
    %c0_35 = arith.constant 0 : index
    %c0_36 = arith.constant 0 : index
    %119 = vector.load %arg13[%c0_35, %c0_36] : memref<32x16xbf16, #tpu.memory_space<vmem>>, vector<32x16xbf16>
    %120 = arith.truncf %118 : vector<16x32xf32> to vector<16x32xbf16>
    %cst_37 = arith.constant dense<0.000000e+00> : vector<16x16xf32>
    %121 = tpu.matmul %120, %119, %cst_37 {dimension_numbers = #tpu.dot_dimension_numbers<[1], [0], [0], [1], [0, 0, 1, 1], [], []>} : vector<16x32xbf16>, vector<32x16xbf16>, vector<16x16xf32> -> vector<16x16xf32>
    %c0_38 = arith.constant 0 : index
    %c0_39 = arith.constant 0 : index
    %122 = vector.load %arg14[%c0_38, %c0_39] : memref<1x16xf32, #tpu.memory_space<vmem>>, vector<1x16xf32>
    %123 = vector.broadcast %122 : vector<1x16xf32> to vector<16x16xf32>
    %124 = arith.addf %121, %123 : vector<16x16xf32>
    %c0_40 = arith.constant 0 : index
    %c0_41 = arith.constant 0 : index
    %125 = vector.load %arg15[%c0_40, %c0_41] : memref<16x32xbf16, #tpu.memory_space<vmem>>, vector<16x32xbf16>
    %126 = arith.truncf %124 : vector<16x16xf32> to vector<16x16xbf16>
    %cst_42 = arith.constant dense<0.000000e+00> : vector<16x32xf32>
    %127 = tpu.matmul %126, %125, %cst_42 {dimension_numbers = #tpu.dot_dimension_numbers<[1], [0], [0], [1], [0, 0, 1, 1], [], []>} : vector<16x16xbf16>, vector<16x32xbf16>, vector<16x32xf32> -> vector<16x32xf32>
    %c0_43 = arith.constant 0 : index
    %c0_44 = arith.constant 0 : index
    %128 = vector.load %arg16[%c0_43, %c0_44] : memref<1x32xf32, #tpu.memory_space<vmem>>, vector<1x32xf32>
    %129 = vector.broadcast %128 : vector<1x32xf32> to vector<16x32xf32>
    %130 = arith.addf %127, %129 : vector<16x32xf32>
    %131 = arith.addf %118, %130 : vector<16x32xf32>
    %c0_45 = arith.constant 0 : index
    %c0_46 = arith.constant 0 : index
    %132 = vector.load %arg17[%c0_45, %c0_46] : memref<16x32xf32, #tpu.memory_space<vmem>>, vector<16x32xf32>
    tpu.vector_store %arg17[%c0_45, %c0_46], %131 {strides = array<i32>} : memref<16x32xf32, #tpu.memory_space<vmem>>, vector<16x32xf32>,
    return
  }
  func.func @transform_0(%arg0: i32) -> (i32, i32) {
    %c0_i32 = arith.constant 0 : i32
    %c0_i32_0 = arith.constant 0 : i32
    return %arg0, %c0_i32 : i32, i32
  }
  func.func @transform_1(%arg0: i32) -> (i32, i32) {
    %c0_i32 = arith.constant 0 : i32
    %c0_i32_0 = arith.constant 0 : i32
    return %arg0, %c0_i32 : i32, i32
  }
  func.func @transform_2(%arg0: i32) -> (i32, i32) {
    %c0_i32 = arith.constant 0 : i32
    %c0_i32_0 = arith.constant 0 : i32
    %c0_i32_1 = arith.constant 0 : i32
    return %c0_i32, %c0_i32_0 : i32, i32
  }
  func.func @transform_3(%arg0: i32) -> (i32, i32) {
    %c0_i32 = arith.constant 0 : i32
    %c0_i32_0 = arith.constant 0 : i32
    %c0_i32_1 = arith.constant 0 : i32
    return %c0_i32, %c0_i32_0 : i32, i32
  }
  func.func @transform_4(%arg0: i32) -> (i32, i32) {
    %c0_i32 = arith.constant 0 : i32
    %c0_i32_0 = arith.constant 0 : i32
    %c0_i32_1 = arith.constant 0 : i32
    return %c0_i32, %c0_i32_0 : i32, i32
  }
  func.func @transform_5(%arg0: i32) -> (i32, i32) {
    %c0_i32 = arith.constant 0 : i32
    %c0_i32_0 = arith.constant 0 : i32
    %c0_i32_1 = arith.constant 0 : i32
    return %c0_i32, %c0_i32_0 : i32, i32
  }
  func.func @transform_6(%arg0: i32) -> (i32, i32) {
    %c0_i32 = arith.constant 0 : i32
    %c0_i32_0 = arith.constant 0 : i32
    %c0_i32_1 = arith.constant 0 : i32
    return %c0_i32, %c0_i32_0 : i32, i32
  }
  func.func @transform_7(%arg0: i32) -> (i32, i32) {
    %c0_i32 = arith.constant 0 : i32
    %c0_i32_0 = arith.constant 0 : i32
    %c0_i32_1 = arith.constant 0 : i32
    return %c0_i32, %c0_i32_0 : i32, i32
  }
  func.func @transform_8(%arg0: i32) -> (i32, i32) {
    %c0_i32 = arith.constant 0 : i32
    %c0_i32_0 = arith.constant 0 : i32
    %c0_i32_1 = arith.constant 0 : i32
    return %c0_i32, %c0_i32_0 : i32, i32
  }
  func.func @transform_9(%arg0: i32) -> (i32, i32) {
    %c0_i32 = arith.constant 0 : i32
    %c0_i32_0 = arith.constant 0 : i32
    %c0_i32_1 = arith.constant 0 : i32
    return %c0_i32, %c0_i32_0 : i32, i32
  }
  func.func @transform_10(%arg0: i32) -> (i32, i32) {
    %c0_i32 = arith.constant 0 : i32
    %c0_i32_0 = arith.constant 0 : i32
    %c0_i32_1 = arith.constant 0 : i32
    return %c0_i32, %c0_i32_0 : i32, i32
  }
  func.func @transform_11(%arg0: i32) -> (i32, i32) {
    %c0_i32 = arith.constant 0 : i32
    %c0_i32_0 = arith.constant 0 : i32
    %c0_i32_1 = arith.constant 0 : i32
    return %c0_i32, %c0_i32_0 : i32, i32
  }
  func.func @transform_12(%arg0: i32) -> (i32, i32) {
    %c0_i32 = arith.constant 0 : i32
    %c0_i32_0 = arith.constant 0 : i32
    %c0_i32_1 = arith.constant 0 : i32
    return %c0_i32, %c0_i32_0 : i32, i32
  }
  func.func @transform_13(%arg0: i32) -> (i32, i32) {
    %c0_i32 = arith.constant 0 : i32
    %c0_i32_0 = arith.constant 0 : i32
    %c0_i32_1 = arith.constant 0 : i32
    return %c0_i32, %c0_i32_0 : i32, i32
  }
  func.func @transform_14(%arg0: i32) -> (i32, i32) {
    %c0_i32 = arith.constant 0 : i32
    %c0_i32_0 = arith.constant 0 : i32
    %c0_i32_1 = arith.constant 0 : i32
    return %c0_i32, %c0_i32_0 : i32, i32
  }
  func.func @transform_15(%arg0: i32) -> (i32, i32) {
    %c0_i32 = arith.constant 0 : i32
    %c0_i32_0 = arith.constant 0 : i32
    %c0_i32_1 = arith.constant 0 : i32
    return %c0_i32, %c0_i32_0 : i32, i32
  }
  func.func @transform_16(%arg0: i32) -> (i32, i32) {
    %c0_i32 = arith.constant 0 : i32
    %c0_i32_0 = arith.constant 0 : i32
    return %arg0, %c0_i32 : i32, i32
  }
}

</mosaic_0001>

<llo_original>
// kernel: tpu_custom_call.1
$region0: #{tpu_custom_call.1}
  #allocation0 [shape = 'u32[]', space=smem, size = 0x4, offset = 0x4, fixed_abs, tag = 'smem constant byte address 0x4 - core index']
  #allocation1 [shape = 'u32[72,128]{1,0:T(1,128)}', space=vmem, size = 0x9000, scoped, tag = 'internal scratch']
  %s0 = inlined_call_operand.hbm [shape: f32[32,32], index: 0, kind: input, shape index: {}]
  %s1 = inlined_call_operand.hbm [shape: f32[32,32], index: 1, kind: input, shape index: {}]
  %s2 = inlined_call_operand.vmem [shape: bf16[32,96], index: 2, kind: input, shape index: {}]
  %s3 = inlined_call_operand.vmem [shape: f32[1,96], index: 3, kind: input, shape index: {}]
  %s4 = inlined_call_operand.hbm [shape: bf16[32,32], index: 4, kind: input, shape index: {}]
  %s5 = inlined_call_operand.vmem [shape: f32[1,32], index: 5, kind: input, shape index: {}]
  %s6 = inlined_call_operand.hbm [shape: bf16[32,32], index: 6, kind: input, shape index: {}]
  %s7 = inlined_call_operand.vmem [shape: f32[1,32], index: 7, kind: input, shape index: {}]
  %s8 = inlined_call_operand.hbm [shape: bf16[32,64], index: 8, kind: input, shape index: {}]
  %s9 = inlined_call_operand.hbm [shape: f32[1,64], index: 9, kind: input, shape index: {}]
  %s10 = inlined_call_operand.hbm [shape: bf16[32,32], index: 10, kind: input, shape index: {}]
  %s11 = inlined_call_operand.hbm [shape: f32[1,32], index: 11, kind: input, shape index: {}]
  %s12 = inlined_call_operand.vmem [shape: bf16[32,16], index: 12, kind: input, shape index: {}]
  %s13 = inlined_call_operand.vmem [shape: f32[1,16], index: 13, kind: input, shape index: {}]
  %s14 = inlined_call_operand.vmem [shape: bf16[16,32], index: 14, kind: input, shape index: {}]
  %s15 = inlined_call_operand.vmem [shape: f32[1,32], index: 15, kind: input, shape index: {}]
  %s16 = inlined_call_operand.hbm [shape: f32[32,32], index: 16, kind: output, shape index: {}]
  %s17 = sld [smem:[#allocation0]]
  $region129: #{tpu_custom_call.1} parent=0
    _
  %s19 = ssub.s32 1, %s17
  %s20 = scalar_select 0, %s19, %s17
  $region1: #{tpu_custom_call.1} parent=0
    #allocation2 [shape = 'u8[16384]{0}', space=vmem, size = 0x4000, scoped, tag = 'input window, operand 0']
    #allocation3 [shape = 's32[2]{0}', space=sflag, size = 0x8, scoped, tag = 'scoped memory for tpu_custom_call.1']
    #allocation4 [shape = 's32[2]{0}', space=sflag, size = 0x8, scoped, tag = 'scoped memory for tpu_custom_call.1']
    #allocation5 [shape = 'u8[16384]{0}', space=vmem, size = 0x4000, scoped, tag = 'input window, operand 1']
    #allocation6 [shape = 's32[2]{0}', space=sflag, size = 0x8, scoped, tag = 'scoped memory for tpu_custom_call.1']
    #allocation7 [shape = 'u8[8192]{0}', space=vmem, size = 0x2000, scoped, tag = 'input window, operand 4, single buffered']
    #allocation8 [shape = 'u8[8192]{0}', space=vmem, size = 0x2000, scoped, tag = 'input window, operand 6, single buffered']
    #allocation9 [shape = 's32[1]{0}', space=sflag, size = 0x4, scoped, tag = 'scoped memory for tpu_custom_call.1']
    #allocation10 [shape = 'u8[8192]{0}', space=vmem, size = 0x2000, scoped, tag = 'input window, operand 8, single buffered']
    #allocation11 [shape = 'u8[512]{0}', space=vmem, size = 0x400, scoped, tag = 'input window, operand 9, single buffered']
    #allocation12 [shape = 's32[1]{0}', space=sflag, size = 0x4, scoped, tag = 'scoped memory for tpu_custom_call.1']
    #allocation13 [shape = 'u8[8192]{0}', space=vmem, size = 0x2000, scoped, tag = 'input window, operand 10, single buffered']
    #allocation14 [shape = 'u8[512]{0}', space=vmem, size = 0x400, scoped, tag = 'input window, operand 11, single buffered']
    #allocation15 [shape = 's32[1]{0}', space=sflag, size = 0x4, scoped, tag = 'scoped memory for tpu_custom_call.1']
    #allocation16 [shape = 'u8[16384]{0}', space=vmem, size = 0x4000, scoped, tag = 'output window, operand 0']
    %21 = vsyncpa [#allocation3], 0
    %s22 = scalar_lea.sflag [#allocation3], 1
    %23 = vsyncpa %s22, 0
    %24 = vsyncpa [#allocation6], 0
    %s25 = scalar_lea.sflag [#allocation6], 1
    %26 = vsyncpa %s25, 0
    %27 = vsyncpa [#allocation9], 0
    %28 = vsyncpa [#allocation12], 0
    %29 = vsyncpa [#allocation15], 0
    %30 = vsyncpa [#allocation4], 0
    %s31 = scalar_lea.sflag [#allocation4], 1
    %32 = vsyncpa %s31, 0
    loop: start=0, step=1, limit=4
    $region2: #{tpu_custom_call.1} parent=1 // loop_pre_header
      _
    $region3: #{tpu_custom_call.1} parent=1 // loop_header
      %s34 = sphi 0, %s38
      %p35 = scmp.ge.s32.totalorder %s34, 4
      %s44 = sphi 0, %s46
      %s47 = sphi 0, %s44
      %s48 = sphi 0, %s47
      %s64 = sphi 0, %s48
      %s70 = sphi 0, %s72
      %s73 = sphi 0, %s70
      %s74 = sphi 0, %s73
      %s90 = sphi 0, %s74
      %s94 = sphi 0, %s94
      %s96 = sphi 0, %s94
      %s97 = sphi 0, %s96
      %s111 = sphi 0, %s97
      %s115 = sphi 0, %s115
      %s117 = sphi 0, %s115
      %s118 = sphi 0, %s117
      %s132 = sphi 0, %s118
      %s136 = sphi 0, %s136
      %s138 = sphi 0, %s136
      %s139 = sphi 0, %s138
      %s153 = sphi 0, %s139
      %s157 = sphi 0, %s157
      %s159 = sphi 0, %s157
      %s160 = sphi 0, %s159
      %s174 = sphi 0, %s160
      %s178 = sphi 0, %s178
      %s180 = sphi 0, %s178
      %s181 = sphi 0, %s180
      %s195 = sphi 0, %s181
      %s199 = sphi 0, %s199
      %s201 = sphi 0, %s199
      %s202 = sphi 0, %s201
      %s216 = sphi 0, %s202
      %s220 = sphi 0, %s220
      %s222 = sphi 0, %s220
      %s223 = sphi 0, %s222
      %s237 = sphi 0, %s223
      %s241 = sphi 0, %s241
      %s243 = sphi 0, %s241
      %s244 = sphi 0, %s243
      %s258 = sphi 0, %s244
      %s262 = sphi 0, %s262
      %s264 = sphi 0, %s262
      %s265 = sphi 0, %s264
      %s279 = sphi 0, %s265
      %s283 = sphi 0, %s283
      %s285 = sphi 0, %s283
      %s286 = sphi 0, %s285
      %s300 = sphi 0, %s286
      %s304 = sphi 0, %s304
      %s306 = sphi 0, %s304
      %s307 = sphi 0, %s306
      %s321 = sphi 0, %s307
      %s325 = sphi 0, %s325
      %s327 = sphi 0, %s325
      %s328 = sphi 0, %s327
      %s342 = sphi 0, %s328
      %s346 = sphi 0, %s346
      %s348 = sphi 0, %s346
      %s349 = sphi 0, %s348
      %s363 = sphi 0, %s349
      %s367 = sphi 0, %s367
      %s369 = sphi 0, %s367
      %s370 = sphi 0, %s369
      %s384 = sphi 0, %s370
      %s390 = sphi 0, %s392
      %s393 = sphi 0, %s390
      %s394 = sphi 0, %s393
      %s410 = sphi 0, %s394
    $region4: #{tpu_custom_call.1} parent=1 // loop_header_branch
      %37 = sbr.rel (%p35) target = $region8
    $region5: #{tpu_custom_call.1} parent=1 // loop_body
      %s39 = ssub.s32 %s34, 1
      %s40 = ssub.s32 %s34, 2
      %s41 = sadd.s32 %s34, 1
      %s42 = ssub.s32 %s34, %s41
      %p43 = scmp.eq.s32.totalorder %s42, 0
      %s45 = sadd.s32 %s44, 1
      %s46 = scalar_select %p43, %s44, %s45
      %p49 = pneg %p43
      %p50 = scmp.eq.s32.totalorder %s34, 1
      %p51 = por %p49, %p50
      %p52 = scmp.ne.s32.totalorder %s44, %s47
      %p53 = scmp.eq.s32.totalorder %s34, 0
      %p54 = por %p52, %p53
      %p55 = scmp.ne.s32.totalorder %s44, %s47
      %p56 = scmp.eq.s32.totalorder %s39, 1
      %p57 = por %p55, %p56
      %p58 = scmp.ne.s32.totalorder %s47, %s48
      %p59 = scmp.eq.s32.totalorder %s39, 0
      %p60 = por %p58, %p59
      %p61 = scmp.ne.s32.totalorder %s47, %s48
      %p62 = scmp.eq.s32.totalorder %s40, 1
      %p63 = por %p61, %p62
      %p65 = scmp.ne.s32.totalorder %s48, %s64
      %p66 = scmp.eq.s32.totalorder %s40, 0
      %p67 = por %p65, %p66
      %s68 = ssub.s32 %s34, %s41
      %p69 = scmp.eq.s32.totalorder %s68, 0
      %s71 = sadd.s32 %s70, 1
      %s72 = scalar_select %p69, %s70, %s71
      %p75 = pneg %p69
      %p76 = scmp.eq.s32.totalorder %s34, 1
      %p77 = por %p75, %p76
      %p78 = scmp.ne.s32.totalorder %s70, %s73
      %p79 = scmp.eq.s32.totalorder %s34, 0
      %p80 = por %p78, %p79
      %p81 = scmp.ne.s32.totalorder %s70, %s73
      %p82 = scmp.eq.s32.totalorder %s39, 1
      %p83 = por %p81, %p82
      %p84 = scmp.ne.s32.totalorder %s73, %s74
      %p85 = scmp.eq.s32.totalorder %s39, 0
      %p86 = por %p84, %p85
      %p87 = scmp.ne.s32.totalorder %s73, %s74
      %p88 = scmp.eq.s32.totalorder %s40, 1
      %p89 = por %p87, %p88
      %p91 = scmp.ne.s32.totalorder %s74, %s90
      %p92 = scmp.eq.s32.totalorder %s40, 0
      %p93 = por %p91, %p92
      %s95 = sadd.s32 %s94, 1
      %p98 = scmp.eq.s32.totalorder %s34, 1
      %p99 = scmp.ne.s32.totalorder %s94, %s96
      %p100 = scmp.eq.s32.totalorder %s34, 0
      %p101 = por %p99, %p100
      %p102 = scmp.ne.s32.totalorder %s94, %s96
      %p103 = scmp.eq.s32.totalorder %s39, 1
      %p104 = por %p102, %p103
      %p105 = scmp.ne.s32.totalorder %s96, %s97
      %p106 = scmp.eq.s32.totalorder %s39, 0
      %p107 = por %p105, %p106
      %p108 = scmp.ne.s32.totalorder %s96, %s97
      %p109 = scmp.eq.s32.totalorder %s40, 1
      %p110 = por %p108, %p109
      %p112 = scmp.ne.s32.totalorder %s97, %s111
      %p113 = scmp.eq.s32.totalorder %s40, 0
      %p114 = por %p112, %p113
      %s116 = sadd.s32 %s115, 1
      %p119 = scmp.eq.s32.totalorder %s34, 1
      %p120 = scmp.ne.s32.totalorder %s115, %s117
      %p121 = scmp.eq.s32.totalorder %s34, 0
      %p122 = por %p120, %p121
      %p123 = scmp.ne.s32.totalorder %s115, %s117
      %p124 = scmp.eq.s32.totalorder %s39, 1
      %p125 = por %p123, %p124
      %p126 = scmp.ne.s32.totalorder %s117, %s118
      %p127 = scmp.eq.s32.totalorder %s39, 0
      %p128 = por %p126, %p127
      %p129 = scmp.ne.s32.totalorder %s117, %s118
      %p130 = scmp.eq.s32.totalorder %s40, 1
      %p131 = por %p129, %p130
      %p133 = scmp.ne.s32.totalorder %s118, %s132
      %p134 = scmp.eq.s32.totalorder %s40, 0
      %p135 = por %p133, %p134
      %s137 = sadd.s32 %s136, 1
      %p140 = scmp.eq.s32.totalorder %s34, 1
      %p141 = scmp.ne.s32.totalorder %s136, %s138
      %p142 = scmp.eq.s32.totalorder %s34, 0
      %p143 = por %p141, %p142
      %p144 = scmp.ne.s32.totalorder %s136, %s138
      %p145 = scmp.eq.s32.totalorder %s39, 1
      %p146 = por %p144, %p145
      %p147 = scmp.ne.s32.totalorder %s138, %s139
      %p148 = scmp.eq.s32.totalorder %s39, 0
      %p149 = por %p147, %p148
      %p150 = scmp.ne.s32.totalorder %s138, %s139
      %p151 = scmp.eq.s32.totalorder %s40, 1
      %p152 = por %p150, %p151
      %p154 = scmp.ne.s32.totalorder %s139, %s153
      %p155 = scmp.eq.s32.totalorder %s40, 0
      %p156 = por %p154, %p155
      %s158 = sadd.s32 %s157, 1
      %p161 = scmp.eq.s32.totalorder %s34, 1
      %p162 = scmp.ne.s32.totalorder %s157, %s159
      %p163 = scmp.eq.s32.totalorder %s34, 0
      %p164 = por %p162, %p163
      %p165 = scmp.ne.s32.totalorder %s157, %s159
      %p166 = scmp.eq.s32.totalorder %s39, 1
      %p167 = por %p165, %p166
      %p168 = scmp.ne.s32.totalorder %s159, %s160
      %p169 = scmp.eq.s32.totalorder %s39, 0
      %p170 = por %p168, %p169
      %p171 = scmp.ne.s32.totalorder %s159, %s160
      %p172 = scmp.eq.s32.totalorder %s40, 1
      %p173 = por %p171, %p172
      %p175 = scmp.ne.s32.totalorder %s160, %s174
      %p176 = scmp.eq.s32.totalorder %s40, 0
      %p177 = por %p175, %p176
      %s179 = sadd.s32 %s178, 1
      %p182 = scmp.eq.s32.totalorder %s34, 1
      %p183 = scmp.ne.s32.totalorder %s178, %s180
      %p184 = scmp.eq.s32.totalorder %s34, 0
      %p185 = por %p183, %p184
      %p186 = scmp.ne.s32.totalorder %s178, %s180
      %p187 = scmp.eq.s32.totalorder %s39, 1
      %p188 = por %p186, %p187
      %p189 = scmp.ne.s32.totalorder %s180, %s181
      %p190 = scmp.eq.s32.totalorder %s39, 0
      %p191 = por %p189, %p190
      %p192 = scmp.ne.s32.totalorder %s180, %s181
      %p193 = scmp.eq.s32.totalorder %s40, 1
      %p194 = por %p192, %p193
      %p196 = scmp.ne.s32.totalorder %s181, %s195
      %p197 = scmp.eq.s32.totalorder %s40, 0
      %p198 = por %p196, %p197
      %s200 = sadd.s32 %s199, 1
      %p203 = scmp.eq.s32.totalorder %s34, 1
      %p204 = scmp.ne.s32.totalorder %s199, %s201
      %p205 = scmp.eq.s32.totalorder %s34, 0
      %p206 = por %p204, %p205
      %p207 = scmp.ne.s32.totalorder %s199, %s201
      %p208 = scmp.eq.s32.totalorder %s39, 1
      %p209 = por %p207, %p208
      %p210 = scmp.ne.s32.totalorder %s201, %s202
      %p211 = scmp.eq.s32.totalorder %s39, 0
      %p212 = por %p210, %p211
      %p213 = scmp.ne.s32.totalorder %s201, %s202
      %p214 = scmp.eq.s32.totalorder %s40, 1
      %p215 = por %p213, %p214
      %p217 = scmp.ne.s32.totalorder %s202, %s216
      %p218 = scmp.eq.s32.totalorder %s40, 0
      %p219 = por %p217, %p218
      %s221 = sadd.s32 %s220, 1
      %p224 = scmp.eq.s32.totalorder %s34, 1
      %p225 = scmp.ne.s32.totalorder %s220, %s222
      %p226 = scmp.eq.s32.totalorder %s34, 0
      %p227 = por %p225, %p226
      %p228 = scmp.ne.s32.totalorder %s220, %s222
      %p229 = scmp.eq.s32.totalorder %s39, 1
      %p230 = por %p228, %p229
      %p231 = scmp.ne.s32.totalorder %s222, %s223
      %p232 = scmp.eq.s32.totalorder %s39, 0
      %p233 = por %p231, %p232
      %p234 = scmp.ne.s32.totalorder %s222, %s223
      %p235 = scmp.eq.s32.totalorder %s40, 1
      %p236 = por %p234, %p235
      %p238 = scmp.ne.s32.totalorder %s223, %s237
      %p239 = scmp.eq.s32.totalorder %s40, 0
      %p240 = por %p238, %p239
      %s242 = sadd.s32 %s241, 1
      %p245 = scmp.eq.s32.totalorder %s34, 1
      %p246 = scmp.ne.s32.totalorder %s241, %s243
      %p247 = scmp.eq.s32.totalorder %s34, 0
      %p248 = por %p246, %p247
      %p249 = scmp.ne.s32.totalorder %s241, %s243
      %p250 = scmp.eq.s32.totalorder %s39, 1
      %p251 = por %p249, %p250
      %p252 = scmp.ne.s32.totalorder %s243, %s244
      %p253 = scmp.eq.s32.totalorder %s39, 0
      %p254 = por %p252, %p253
      %p255 = scmp.ne.s32.totalorder %s243, %s244
      %p256 = scmp.eq.s32.totalorder %s40, 1
      %p257 = por %p255, %p256
      %p259 = scmp.ne.s32.totalorder %s244, %s258
      %p260 = scmp.eq.s32.totalorder %s40, 0
      %p261 = por %p259, %p260
      %s263 = sadd.s32 %s262, 1
      %p266 = scmp.eq.s32.totalorder %s34, 1
      %p267 = scmp.ne.s32.totalorder %s262, %s264
      %p268 = scmp.eq.s32.totalorder %s34, 0
      %p269 = por %p267, %p268
      %p270 = scmp.ne.s32.totalorder %s262, %s264
      %p271 = scmp.eq.s32.totalorder %s39, 1
      %p272 = por %p270, %p271
      %p273 = scmp.ne.s32.totalorder %s264, %s265
      %p274 = scmp.eq.s32.totalorder %s39, 0
      %p275 = por %p273, %p274
      %p276 = scmp.ne.s32.totalorder %s264, %s265
      %p277 = scmp.eq.s32.totalorder %s40, 1
      %p278 = por %p276, %p277
      %p280 = scmp.ne.s32.totalorder %s265, %s279
      %p281 = scmp.eq.s32.totalorder %s40, 0
      %p282 = por %p280, %p281
      %s284 = sadd.s32 %s283, 1
      %p287 = scmp.eq.s32.totalorder %s34, 1
      %p288 = scmp.ne.s32.totalorder %s283, %s285
      %p289 = scmp.eq.s32.totalorder %s34, 0
      %p290 = por %p288, %p289
      %p291 = scmp.ne.s32.totalorder %s283, %s285
      %p292 = scmp.eq.s32.totalorder %s39, 1
      %p293 = por %p291, %p292
      %p294 = scmp.ne.s32.totalorder %s285, %s286
      %p295 = scmp.eq.s32.totalorder %s39, 0
      %p296 = por %p294, %p295
      %p297 = scmp.ne.s32.totalorder %s285, %s286
      %p298 = scmp.eq.s32.totalorder %s40, 1
      %p299 = por %p297, %p298
      %p301 = scmp.ne.s32.totalorder %s286, %s300
      %p302 = scmp.eq.s32.totalorder %s40, 0
      %p303 = por %p301, %p302
      %s305 = sadd.s32 %s304, 1
      %p308 = scmp.eq.s32.totalorder %s34, 1
      %p309 = scmp.ne.s32.totalorder %s304, %s306
      %p310 = scmp.eq.s32.totalorder %s34, 0
      %p311 = por %p309, %p310
      %p312 = scmp.ne.s32.totalorder %s304, %s306
      %p313 = scmp.eq.s32.totalorder %s39, 1
      %p314 = por %p312, %p313
      %p315 = scmp.ne.s32.totalorder %s306, %s307
      %p316 = scmp.eq.s32.totalorder %s39, 0
      %p317 = por %p315, %p316
      %p318 = scmp.ne.s32.totalorder %s306, %s307
      %p319 = scmp.eq.s32.totalorder %s40, 1
      %p320 = por %p318, %p319
      %p322 = scmp.ne.s32.totalorder %s307, %s321
      %p323 = scmp.eq.s32.totalorder %s40, 0
      %p324 = por %p322, %p323
      %s326 = sadd.s32 %s325, 1
      %p329 = scmp.eq.s32.totalorder %s34, 1
      %p330 = scmp.ne.s32.totalorder %s325, %s327
      %p331 = scmp.eq.s32.totalorder %s34, 0
      %p332 = por %p330, %p331
      %p333 = scmp.ne.s32.totalorder %s325, %s327
      %p334 = scmp.eq.s32.totalorder %s39, 1
      %p335 = por %p333, %p334
      %p336 = scmp.ne.s32.totalorder %s327, %s328
      %p337 = scmp.eq.s32.totalorder %s39, 0
      %p338 = por %p336, %p337
      %p339 = scmp.ne.s32.totalorder %s327, %s328
      %p340 = scmp.eq.s32.totalorder %s40, 1
      %p341 = por %p339, %p340
      %p343 = scmp.ne.s32.totalorder %s328, %s342
      %p344 = scmp.eq.s32.totalorder %s40, 0
      %p345 = por %p343, %p344
      %s347 = sadd.s32 %s346, 1
      %p350 = scmp.eq.s32.totalorder %s34, 1
      %p351 = scmp.ne.s32.totalorder %s346, %s348
      %p352 = scmp.eq.s32.totalorder %s34, 0
      %p353 = por %p351, %p352
      %p354 = scmp.ne.s32.totalorder %s346, %s348
      %p355 = scmp.eq.s32.totalorder %s39, 1
      %p356 = por %p354, %p355
      %p357 = scmp.ne.s32.totalorder %s348, %s349
      %p358 = scmp.eq.s32.totalorder %s39, 0
      %p359 = por %p357, %p358
      %p360 = scmp.ne.s32.totalorder %s348, %s349
      %p361 = scmp.eq.s32.totalorder %s40, 1
      %p362 = por %p360, %p361
      %p364 = scmp.ne.s32.totalorder %s349, %s363
      %p365 = scmp.eq.s32.totalorder %s40, 0
      %p366 = por %p364, %p365
      %s368 = sadd.s32 %s367, 1
      %p371 = scmp.eq.s32.totalorder %s34, 1
      %p372 = scmp.ne.s32.totalorder %s367, %s369
      %p373 = scmp.eq.s32.totalorder %s34, 0
      %p374 = por %p372, %p373
      %p375 = scmp.ne.s32.totalorder %s367, %s369
      %p376 = scmp.eq.s32.totalorder %s39, 1
      %p377 = por %p375, %p376
      %p378 = scmp.ne.s32.totalorder %s369, %s370
      %p379 = scmp.eq.s32.totalorder %s39, 0
      %p380 = por %p378, %p379
      %p381 = scmp.ne.s32.totalorder %s369, %s370
      %p382 = scmp.eq.s32.totalorder %s40, 1
      %p383 = por %p381, %p382
      %p385 = scmp.ne.s32.totalorder %s370, %s384
      %p386 = scmp.eq.s32.totalorder %s40, 0
      %p387 = por %p385, %p386
      %s388 = ssub.s32 %s34, %s41
      %p389 = scmp.eq.s32.totalorder %s388, 0
      %s391 = sadd.s32 %s390, 1
      %s392 = scalar_select %p389, %s390, %s391
      %p395 = pneg %p389
      %p396 = scmp.eq.s32.totalorder %s34, 1
      %p397 = por %p395, %p396
      %p398 = scmp.ne.s32.totalorder %s390, %s393
      %p399 = scmp.eq.s32.totalorder %s34, 0
      %p400 = por %p398, %p399
      %p401 = scmp.ne.s32.totalorder %s390, %s393
      %p402 = scmp.eq.s32.totalorder %s39, 1
      %p403 = por %p401, %p402
      %p404 = scmp.ne.s32.totalorder %s393, %s394
      %p405 = scmp.eq.s32.totalorder %s39, 0
      %p406 = por %p404, %p405
      %p407 = scmp.ne.s32.totalorder %s393, %s394
      %p408 = scmp.eq.s32.totalorder %s40, 1
      %p409 = por %p407, %p408
      %p411 = scmp.ne.s32.totalorder %s394, %s410
      %p412 = scmp.eq.s32.totalorder %s40, 0
      %p413 = por %p411, %p412
      %p414 = scmp.le.s32.totalorder 1, %s34
      %p415 = scmp.lt.s32.totalorder %s34, 3
      %p416 = pnand %p414, %p415
      %p417 = pneg %p416
      // Predicated region
      $region9: #{tpu_custom_call.1} parent=5 // pred_check
        _
      $region10: #{tpu_custom_call.1} parent=5 // pred_check_branch
        %419 = sbr.rel (%p416) target = $region12
      $region11: #{tpu_custom_call.1} parent=5 // pred_region
        %s420 = ssub.s32 %s34, 1
        // Predicated region
        $region13: #{tpu_custom_call.1} parent=11 // pred_check
          %p421 = pneg %p107
        $region14: #{tpu_custom_call.1} parent=11 // pred_check_branch
          %423 = sbr.rel (%p421) target = $region16
        $region15: #{tpu_custom_call.1} parent=11 // pred_region
          _
        $region16: #{tpu_custom_call.1} parent=11 // pred_fallthru
          _
        // Predicated region
        $region17: #{tpu_custom_call.1} parent=11 // pred_check
          %p424 = pneg %p128
        $region18: #{tpu_custom_call.1} parent=11 // pred_check_branch
          %426 = sbr.rel (%p424) target = $region20
        $region19: #{tpu_custom_call.1} parent=11 // pred_region
          _
        $region20: #{tpu_custom_call.1} parent=11 // pred_fallthru
          _
        // Predicated region
        $region21: #{tpu_custom_call.1} parent=11 // pred_check
          %p427 = pneg %p149
        $region22: #{tpu_custom_call.1} parent=11 // pred_check_branch
          %429 = sbr.rel (%p427) target = $region24
        $region23: #{tpu_custom_call.1} parent=11 // pred_region
          %431 = vsyncadd [#allocation6], 0
          %s432 = sshll.u32 %s4, 4
          %s433 = int_to_ptr.hbm [resolvable:$true] %s432
          %s434 = sshll.u32 [#allocation7], 4
          %s435 = int_to_ptr.vmem [resolvable:$true] %s434
          %440 = dma.hbm_to_vmem [thread:$0]  %s433, 256, %s435, [#allocation6], 64, 64, 4
        $region24: #{tpu_custom_call.1} parent=11 // pred_fallthru
          _
        // Predicated region
        $region25: #{tpu_custom_call.1} parent=11 // pred_check
          %p441 = pneg %p170
        $region26: #{tpu_custom_call.1} parent=11 // pred_check_branch
          %443 = sbr.rel (%p441) target = $region28
        $region27: #{tpu_custom_call.1} parent=11 // pred_region
          _
        $region28: #{tpu_custom_call.1} parent=11 // pred_fallthru
          _
        // Predicated region
        $region29: #{tpu_custom_call.1} parent=11 // pred_check
          %p444 = pneg %p191
        $region30: #{tpu_custom_call.1} parent=11 // pred_check_branch
          %446 = sbr.rel (%p444) target = $region32
        $region31: #{tpu_custom_call.1} parent=11 // pred_region
          %448 = vsyncadd [#allocation9], 0
          %s449 = sshll.u32 %s6, 4
          %s450 = int_to_ptr.hbm [resolvable:$true] %s449
          %s451 = sshll.u32 [#allocation8], 4
          %s452 = int_to_ptr.vmem [resolvable:$true] %s451
          %457 = dma.hbm_to_vmem [thread:$0]  %s450, 256, %s452, [#allocation9], 64, 64, 4
        $region32: #{tpu_custom_call.1} parent=11 // pred_fallthru
          _
        // Predicated region
        $region33: #{tpu_custom_call.1} parent=11 // pred_check
          %p458 = pneg %p212
        $region34: #{tpu_custom_call.1} parent=11 // pred_check_branch
          %460 = sbr.rel (%p458) target = $region36
        $region35: #{tpu_custom_call.1} parent=11 // pred_region
          _
        $region36: #{tpu_custom_call.1} parent=11 // pred_fallthru
          _
        // Predicated region
        $region37: #{tpu_custom_call.1} parent=11 // pred_check
          %p461 = pneg %p233
        $region38: #{tpu_custom_call.1} parent=11 // pred_check_branch
          %463 = sbr.rel (%p461) target = $region40
        $region39: #{tpu_custom_call.1} parent=11 // pred_region
          %465 = vsyncadd [#allocation9], 0
          %s466 = sshll.u32 %s8, 4
          %s467 = int_to_ptr.hbm [resolvable:$true] %s466
          %s468 = sshll.u32 [#allocation10], 4
          %s469 = int_to_ptr.vmem [resolvable:$true] %s468
          %474 = dma.hbm_to_vmem [thread:$0]  %s467, 256, %s469, [#allocation9], 64, 64, 4
        $region40: #{tpu_custom_call.1} parent=11 // pred_fallthru
          _
        // Predicated region
        $region41: #{tpu_custom_call.1} parent=11 // pred_check
          %p475 = pneg %p254
        $region42: #{tpu_custom_call.1} parent=11 // pred_check_branch
          %477 = sbr.rel (%p475) target = $region44
        $region43: #{tpu_custom_call.1} parent=11 // pred_region
          %479 = vsyncadd [#allocation12], 0
          %s481 = sshll.u32 %s9, 4
          %s482 = int_to_ptr.hbm [resolvable:$true] %s481
          %s483 = sshll.u32 [#allocation11], 4
          %s484 = int_to_ptr.vmem [resolvable:$true] %s483
          %486 = dma.hbm_to_vmem [thread:$0]  %s482, 16, %s484, [#allocation12]
        $region44: #{tpu_custom_call.1} parent=11 // pred_fallthru
          _
        // Predicated region
        $region45: #{tpu_custom_call.1} parent=11 // pred_check
          %p487 = pneg %p275
        $region46: #{tpu_custom_call.1} parent=11 // pred_check_branch
          %489 = sbr.rel (%p487) target = $region48
        $region47: #{tpu_custom_call.1} parent=11 // pred_region
          %491 = vsyncadd [#allocation12], 0
          %s492 = sshll.u32 %s10, 4
          %s493 = int_to_ptr.hbm [resolvable:$true] %s492
          %s494 = sshll.u32 [#allocation13], 4
          %s495 = int_to_ptr.vmem [resolvable:$true] %s494
          %500 = dma.hbm_to_vmem [thread:$0]  %s493, 256, %s495, [#allocation12], 64, 64, 4
        $region48: #{tpu_custom_call.1} parent=11 // pred_fallthru
          _
        // Predicated region
        $region49: #{tpu_custom_call.1} parent=11 // pred_check
          %p501 = pneg %p296
        $region50: #{tpu_custom_call.1} parent=11 // pred_check_branch
          %503 = sbr.rel (%p501) target = $region52
        $region51: #{tpu_custom_call.1} parent=11 // pred_region
          %505 = vsyncadd [#allocation15], 0
          %s507 = sshll.u32 %s11, 4
          %s508 = int_to_ptr.hbm [resolvable:$true] %s507
          %s509 = sshll.u32 [#allocation14], 4
          %s510 = int_to_ptr.vmem [resolvable:$true] %s509
          %512 = dma.hbm_to_vmem [thread:$0]  %s508, 16, %s510, [#allocation15]
        $region52: #{tpu_custom_call.1} parent=11 // pred_fallthru
          _
        // Predicated region
        $region53: #{tpu_custom_call.1} parent=11 // pred_check
          %p513 = pneg %p317
        $region54: #{tpu_custom_call.1} parent=11 // pred_check_branch
          %515 = sbr.rel (%p513) target = $region56
        $region55: #{tpu_custom_call.1} parent=11 // pred_region
          _
        $region56: #{tpu_custom_call.1} parent=11 // pred_fallthru
          _
        // Predicated region
        $region57: #{tpu_custom_call.1} parent=11 // pred_check
          %p516 = pneg %p338
        $region58: #{tpu_custom_call.1} parent=11 // pred_check_branch
          %518 = sbr.rel (%p516) target = $region60
        $region59: #{tpu_custom_call.1} parent=11 // pred_region
          _
        $region60: #{tpu_custom_call.1} parent=11 // pred_fallthru
          _
        // Predicated region
        $region61: #{tpu_custom_call.1} parent=11 // pred_check
          %p519 = pneg %p359
        $region62: #{tpu_custom_call.1} parent=11 // pred_check_branch
          %521 = sbr.rel (%p519) target = $region64
        $region63: #{tpu_custom_call.1} parent=11 // pred_region
          _
        $region64: #{tpu_custom_call.1} parent=11 // pred_fallthru
          _
        // Predicated region
        $region65: #{tpu_custom_call.1} parent=11 // pred_check
          %p522 = pneg %p380
        $region66: #{tpu_custom_call.1} parent=11 // pred_check_branch
          %524 = sbr.rel (%p522) target = $region68
        $region67: #{tpu_custom_call.1} parent=11 // pred_region
          _
        $region68: #{tpu_custom_call.1} parent=11 // pred_fallthru
          _
      $region12: #{tpu_custom_call.1} parent=5 // pred_fallthru
        _
      %p525 = scmp.lt.s32.totalorder %s34, 2
      // Predicated region
      $region69: #{tpu_custom_call.1} parent=5 // pred_check
        %p526 = pneg %p525
      $region70: #{tpu_custom_call.1} parent=5 // pred_check_branch
        %528 = sbr.rel (%p526) target = $region72
      $region71: #{tpu_custom_call.1} parent=5 // pred_region
        // Predicated region
        $region73: #{tpu_custom_call.1} parent=71 // pred_check
          %p529 = pneg %p54
        $region74: #{tpu_custom_call.1} parent=71 // pred_check_branch
          %531 = sbr.rel (%p529) target = $region76
        $region75: #{tpu_custom_call.1} parent=71 // pred_region
          %s532 = sand.u32 %s44, 1
          %s533 = scalar_lea.sflag [#allocation3], %s532
          %s534 = sand.u32 %s44, 1
          %s535 = smul.addr %s534, 16
          %s536 = scalar_lea.vmem [#allocation2], %s535
          %s537 = smul.u32 2, %s34
          %539 = vsyncadd %s533, 0
          %s540 = smul.addr %s537, 8
          %s541 = scalar_lea.hbm %s0, %s540
          %s542 = sshll.u32 %s541, 4
          %s543 = int_to_ptr.hbm [resolvable:$true] %s542
          %s544 = sshll.u32 %s536, 4
          %s545 = int_to_ptr.vmem [resolvable:$true] %s544
          %550 = dma.hbm_to_vmem [thread:$0]  %s543, 256, %s545, %s533, 128, 128, 8
        $region76: #{tpu_custom_call.1} parent=71 // pred_fallthru
          _
        // Predicated region
        $region77: #{tpu_custom_call.1} parent=71 // pred_check
          %p551 = pneg %p80
        $region78: #{tpu_custom_call.1} parent=71 // pred_check_branch
          %553 = sbr.rel (%p551) target = $region80
        $region79: #{tpu_custom_call.1} parent=71 // pred_region
          %s554 = sand.u32 %s34, 1
          %s555 = scalar_lea.sflag [#allocation6], %s554
          %s556 = sand.u32 %s70, 1
          %s557 = smul.addr %s556, 16
          %s558 = scalar_lea.vmem [#allocation5], %s557
          %s559 = smul.u32 2, %s34
          %561 = vsyncadd %s555, 0
          %s562 = smul.addr %s559, 8
          %s563 = scalar_lea.hbm %s1, %s562
          %s564 = sshll.u32 %s563, 4
          %s565 = int_to_ptr.hbm [resolvable:$true] %s564
          %s566 = sshll.u32 %s558, 4
          %s567 = int_to_ptr.vmem [resolvable:$true] %s566
          %572 = dma.hbm_to_vmem [thread:$0]  %s565, 256, %s567, %s555, 128, 128, 8
        $region80: #{tpu_custom_call.1} parent=71 // pred_fallthru
          _
      $region72: #{tpu_custom_call.1} parent=5 // pred_fallthru
        _
      %p573 = scmp.le.s32.totalorder 1, %s34
      %p574 = scmp.lt.s32.totalorder %s34, 3
      %p575 = pnand %p573, %p574
      %p576 = pneg %p575
      // Predicated region
      $region81: #{tpu_custom_call.1} parent=5 // pred_check
        _
      $region82: #{tpu_custom_call.1} parent=5 // pred_check_branch
        %578 = sbr.rel (%p575) target = $region84
      $region83: #{tpu_custom_call.1} parent=5 // pred_region
        %s579 = ssub.s32 %s34, 1
        %s580 = sand.u32 %s47, 1
        %s581 = scalar_lea.sflag [#allocation3], %s580
        %s582 = sand.u32 %s47, 1
        %s583 = smul.addr %s582, 16
        %s584 = scalar_lea.vmem [#allocation2], %s583
        // Predicated region
        $region85: #{tpu_custom_call.1} parent=83 // pred_check
          %p585 = pneg %p60
        $region86: #{tpu_custom_call.1} parent=83 // pred_check_branch
          %587 = sbr.rel (%p585) target = $region88
        $region87: #{tpu_custom_call.1} parent=83 // pred_region
          %589 = dma.done %s581, 256
        $region88: #{tpu_custom_call.1} parent=83 // pred_fallthru
          _
        %s590 = sand.u32 %s39, 1
        %s591 = scalar_lea.sflag [#allocation6], %s590
        %s592 = sand.u32 %s73, 1
        %s593 = smul.addr %s592, 16
        %s594 = scalar_lea.vmem [#allocation5], %s593
        // Predicated region
        $region89: #{tpu_custom_call.1} parent=83 // pred_check
          %p595 = pneg %p86
        $region90: #{tpu_custom_call.1} parent=83 // pred_check_branch
          %597 = sbr.rel (%p595) target = $region92
        $region91: #{tpu_custom_call.1} parent=83 // pred_region
          %599 = dma.done %s591, 256
        $region92: #{tpu_custom_call.1} parent=83 // pred_fallthru
          _
        // Predicated region
        $region93: #{tpu_custom_call.1} parent=83 // pred_check
          %p600 = pneg %p149
        $region94: #{tpu_custom_call.1} parent=83 // pred_check_branch
          %602 = sbr.rel (%p600) target = $region96
        $region95: #{tpu_custom_call.1} parent=83 // pred_region
          %604 = dma.done [#allocation6], 256
        $region96: #{tpu_custom_call.1} parent=83 // pred_fallthru
          _
        // Predicated region
        $region97: #{tpu_custom_call.1} parent=83 // pred_check
          %p605 = pneg %p191
        $region98: #{tpu_custom_call.1} parent=83 // pred_check_branch
          %607 = sbr.rel (%p605) target = $region100
        $region99: #{tpu_custom_call.1} parent=83 // pred_region
          %609 = dma.done [#allocation9], 256
        $region100: #{tpu_custom_call.1} parent=83 // pred_fallthru
          _
        // Predicated region
        $region101: #{tpu_custom_call.1} parent=83 // pred_check
          %p610 = pneg %p233
        $region102: #{tpu_custom_call.1} parent=83 // pred_check_branch
          %612 = sbr.rel (%p610) target = $region104
        $region103: #{tpu_custom_call.1} parent=83 // pred_region
          %614 = dma.done [#allocation9], 256
        $region104: #{tpu_custom_call.1} parent=83 // pred_fallthru
          _
        // Predicated region
        $region105: #{tpu_custom_call.1} parent=83 // pred_check
          %p615 = pneg %p254
        $region106: #{tpu_custom_call.1} parent=83 // pred_check_branch
          %617 = sbr.rel (%p615) target = $region108
        $region107: #{tpu_custom_call.1} parent=83 // pred_region
          %619 = dma.done [#allocation12], 16
        $region108: #{tpu_custom_call.1} parent=83 // pred_fallthru
          _
        // Predicated region
        $region109: #{tpu_custom_call.1} parent=83 // pred_check
          %p620 = pneg %p275
        $region110: #{tpu_custom_call.1} parent=83 // pred_check_branch
          %622 = sbr.rel (%p620) target = $region112
        $region111: #{tpu_custom_call.1} parent=83 // pred_region
          %624 = dma.done [#allocation12], 256
        $region112: #{tpu_custom_call.1} parent=83 // pred_fallthru
          _
        // Predicated region
        $region113: #{tpu_custom_call.1} parent=83 // pred_check
          %p625 = pneg %p296
        $region114: #{tpu_custom_call.1} parent=83 // pred_check_branch
          %627 = sbr.rel (%p625) target = $region116
        $region115: #{tpu_custom_call.1} parent=83 // pred_region
          %629 = dma.done [#allocation15], 16
        $region116: #{tpu_custom_call.1} parent=83 // pred_fallthru
          _
        %s630 = sand.u32 %s47, 1
        %s631 = scalar_lea.sflag [#allocation3], %s630
        %s632 = sand.u32 %s47, 1
        %s633 = smul.addr %s632, 16
        %s634 = scalar_lea.vmem [#allocation2], %s633
        %p635 = pneg %p60
        %p636 = pneg %p57
        %s637 = sand.u32 %s39, 1
        %s638 = scalar_lea.sflag [#allocation6], %s637
        %s639 = sand.u32 %s73, 1
        %s640 = smul.addr %s639, 16
        %s641 = scalar_lea.vmem [#allocation5], %s640
        %p642 = pneg %p86
        %p643 = pneg %p83
        %p644 = pneg %p107
        %p645 = pneg %p104
        %p646 = pneg %p128
        %p647 = pneg %p125
        %p648 = pneg %p149
        %p649 = pneg %p146
        %p650 = pneg %p170
        %p651 = pneg %p167
        %p652 = pneg %p191
        %p653 = pneg %p188
        %p654 = pneg %p212
        %p655 = pneg %p209
        %p656 = pneg %p233
        %p657 = pneg %p230
        %p658 = pneg %p254
        %p659 = pneg %p251
        %p660 = pneg %p275
        %p661 = pneg %p272
        %p662 = pneg %p296
        %p663 = pneg %p293
        %p664 = pneg %p317
        %p665 = pneg %p314
        %p666 = pneg %p338
        %p667 = pneg %p335
        %p668 = pneg %p359
        %p669 = pneg %p356
        %p670 = pneg %p380
        %p671 = pneg %p377
        %p672 = pneg %p406
        %p673 = pneg %p403
        %s674 = sand.u32 %s393, 1
        %s675 = scalar_lea.sflag [#allocation4], %s674
        %s676 = sand.u32 %s393, 1
        %s677 = smul.addr %s676, 16
        %s678 = scalar_lea.vmem [#allocation16], %s677
        %s679 = smul.u32 2, %s39
        %s680 = smul.u32 2, %s39
        %s681 = smul.u32 2, %s39
        %v683 = vld [vmem:[%s584] sm:$0xff]
        %v684 = vld [vmem:[%s584 + $0x8] sm:$0xff]
        %v685 = vld [vmem:[%s594] sm:$0xff]
        %v686 = vld [vmem:[%s594 + $0x8] sm:$0xff]
        %v687 = vld [vmem:[%s2] sm:$0xf]
        %v688 = vld [vmem:[%s2 + $0x4] sm:$0xf]
        %v689 = vld [vmem:[%s2 + $0x8] sm:$0xf]
        %v690 = vld [vmem:[%s2 + $0xc] sm:$0xf]
        %v691 = vpack.c.bf16 %v684, %v683
        %v692 = vld [vmem:[%s3] sm:$0x1]
        %v694 = vperm.slane %v692, 0
        %v700 = vunpack.c.l.b16 %v687
        %v701 = vunpack.c.l.b16 %v688
        %v702 = vunpack.c.l.b16 %v689
        %v703 = vunpack.c.l.b16 %v690
        %v704 = vpack.c.b16 %v701, %v700
        %v705 = vpack.c.b16 %v703, %v702
        %vm708 = vcmask 261120
        %v710 = vsel %vm708, %v691, 0
        %712 = vmatpush.bf16.msra.mxu0 0
        %713 = vmatpush.bf16.msra.mxu0 0
        %714 = vmatpush.bf16.msra.mxu0 0
        %715 = vmatpush.bf16.msra.mxu0 0
        %716 = vmatpush.bf16.msra.mxu0 0
        %717 = vmatpush.bf16.msra.mxu0 0
        %718 = vmatpush.bf16.msra.mxu0 %v705
        %719 = vmatpush.bf16.msra.mxu0 %v704
        %720 = vmatmul.bf16.gmra.mxu0 %v710
        %v721 = vpop.f32.mrf.mxu0
        %v722 = vadd.f32 %v694, %v721
        %v723 = vpop.f32.mrf.mxu0
        %v724 = vadd.f32 %v694, %v723
        %725 = vdwg.mxu0
        %728 = vrot.lane.b32.xlu0 %v722, 120
        %v729 = vpop.permute.xlu0 %728
        %730 = vrot.lane.b32.xlu0 %v724, 120
        %v731 = vpop.permute.xlu0 %730
        %734 = vrot.lane.b32.xlu0 %v722, 112
        %v735 = vpop.permute.xlu0 %734
        %736 = vrot.lane.b32.xlu0 %v724, 112
        %v737 = vpop.permute.xlu0 %736
        %740 = vrot.lane.b32.xlu0 %v722, 104
        %v741 = vpop.permute.xlu0 %740
        %742 = vrot.lane.b32.xlu0 %v724, 104
        %v743 = vpop.permute.xlu0 %742
        %v746 = vpack.c.bf16 %v722, %v722
        %v747 = vpack.c.bf16 %v724, %v724
        %v748 = vpack.c.bf16 %v729, %v729
        %v749 = vpack.c.bf16 %v731, %v731
        %v750 = vpack.c.bf16 %v735, %v735
        %v751 = vpack.c.bf16 %v737, %v737
        %v752 = vpack.c.bf16 %v741, %v741
        %v753 = vpack.c.bf16 %v743, %v743
        %v755 = vunpack.c.l.b16 %v746
        %v756 = vpack.c.b16 %v755, %v755
        %757 = vrot.lane.b32.xlu0 %v756, 96
        %v758 = vpop.permute.xlu0 %757
        %vm759 = vcmask 64512
        %v761 = vsel %vm759, %v746, 0
        %v764 = vsel %vm759, %v758, 0
        %766 = vmatpush.bf16.xpose.msra.mxu0 0
        %767 = vmatpush.bf16.xpose.msra.mxu0 0
        %768 = vmatpush.bf16.xpose.msra.mxu0 0
        %769 = vmatpush.bf16.xpose.msra.mxu0 0
        %770 = vmatpush.bf16.xpose.msra.mxu0 0
        %771 = vmatpush.bf16.xpose.msra.mxu0 0
        %772 = vmatpush.bf16.xpose.msra.mxu0 0
        %773 = vmatpush.bf16.xpose.msra.mxu0 %v764
        %774 = vmatmul.bf16.gmra.mxu0 %v761
        %v775 = vpop.f32.mrf.mxu0
        %v776 = vadd.f32 0.0, %v775
        %v777 = vpop.f32.mrf.mxu0
        %778 = vdwg.mxu0
        %v780 = vunpack.c.l.b16 %v747
        %v781 = vpack.c.b16 %v780, %v780
        %782 = vrot.lane.b32.xlu0 %v781, 96
        %v783 = vpop.permute.xlu0 %782
        %v785 = vsel %vm759, %v747, 0
        %v788 = vsel %vm759, %v783, 0
        %790 = vmatpush.bf16.xpose.msra.mxu0 0
        %791 = vmatpush.bf16.xpose.msra.mxu0 0
        %792 = vmatpush.bf16.xpose.msra.mxu0 0
        %793 = vmatpush.bf16.xpose.msra.mxu0 0
        %794 = vmatpush.bf16.xpose.msra.mxu0 0
        %795 = vmatpush.bf16.xpose.msra.mxu0 0
        %796 = vmatpush.bf16.xpose.msra.mxu0 0
        %797 = vmatpush.bf16.xpose.msra.mxu0 %v788
        %798 = vmatmul.bf16.gmra.mxu0 %v785
        %v799 = vpop.f32.mrf.mxu0
        %v800 = vadd.f32 0.0, %v799
        %v801 = vpop.f32.mrf.mxu0
        %802 = vdwg.mxu0
        %v804 = vunpack.c.l.b16 %v748
        %v805 = vpack.c.b16 %v804, %v804
        %806 = vrot.lane.b32.xlu0 %v805, 96
        %v807 = vpop.permute.xlu0 %806
        %v809 = vsel %vm759, %v748, 0
        %v812 = vsel %vm759, %v807, 0
        %814 = vmatpush.bf16.xpose.msra.mxu0 0
        %815 = vmatpush.bf16.xpose.msra.mxu0 0
        %816 = vmatpush.bf16.xpose.msra.mxu0 0
        %817 = vmatpush.bf16.xpose.msra.mxu0 0
        %818 = vmatpush.bf16.xpose.msra.mxu0 0
        %819 = vmatpush.bf16.xpose.msra.mxu0 0
        %820 = vmatpush.bf16.xpose.msra.mxu0 0
        %821 = vmatpush.bf16.xpose.msra.mxu0 %v812
        %822 = vmatmul.bf16.gmra.mxu0 %v809
        %v823 = vpop.f32.mrf.mxu0
        %v824 = vadd.f32 0.0, %v823
        %v825 = vpop.f32.mrf.mxu0
        %826 = vdwg.mxu0
        %v828 = vunpack.c.l.b16 %v749
        %v829 = vpack.c.b16 %v828, %v828
        %830 = vrot.lane.b32.xlu0 %v829, 96
        %v831 = vpop.permute.xlu0 %830
        %v833 = vsel %vm759, %v749, 0
        %v836 = vsel %vm759, %v831, 0
        %838 = vmatpush.bf16.xpose.msra.mxu0 0
        %839 = vmatpush.bf16.xpose.msra.mxu0 0
        %840 = vmatpush.bf16.xpose.msra.mxu0 0
        %841 = vmatpush.bf16.xpose.msra.mxu0 0
        %842 = vmatpush.bf16.xpose.msra.mxu0 0
        %843 = vmatpush.bf16.xpose.msra.mxu0 0
        %844 = vmatpush.bf16.xpose.msra.mxu0 0
        %845 = vmatpush.bf16.xpose.msra.mxu0 %v836
        %846 = vmatmul.bf16.gmra.mxu0 %v833
        %v847 = vpop.f32.mrf.mxu0
        %v848 = vadd.f32 0.0, %v847
        %v849 = vpop.f32.mrf.mxu0
        %850 = vdwg.mxu0
        %v852 = vunpack.c.l.b16 %v750
        %v853 = vpack.c.b16 %v852, %v852
        %854 = vrot.lane.b32.xlu0 %v853, 96
        %v855 = vpop.permute.xlu0 %854
        %v857 = vsel %vm759, %v750, 0
        %v860 = vsel %vm759, %v855, 0
        %862 = vmatpush.bf16.xpose.msra.mxu0 0
        %863 = vmatpush.bf16.xpose.msra.mxu0 0
        %864 = vmatpush.bf16.xpose.msra.mxu0 0
        %865 = vmatpush.bf16.xpose.msra.mxu0 0
        %866 = vmatpush.bf16.xpose.msra.mxu0 0
        %867 = vmatpush.bf16.xpose.msra.mxu0 0
        %868 = vmatpush.bf16.xpose.msra.mxu0 0
        %869 = vmatpush.bf16.xpose.msra.mxu0 %v860
        %870 = vmatmul.bf16.gmra.mxu0 %v857
        %v871 = vpop.f32.mrf.mxu0
        %v872 = vadd.f32 0.0, %v871
        %v873 = vpop.f32.mrf.mxu0
        %874 = vdwg.mxu0
        %v876 = vunpack.c.l.b16 %v751
        %v877 = vpack.c.b16 %v876, %v876
        %878 = vrot.lane.b32.xlu0 %v877, 96
        %v879 = vpop.permute.xlu0 %878
        %v881 = vsel %vm759, %v751, 0
        %v884 = vsel %vm759, %v879, 0
        %886 = vmatpush.bf16.xpose.msra.mxu0 0
        %887 = vmatpush.bf16.xpose.msra.mxu0 0
        %888 = vmatpush.bf16.xpose.msra.mxu0 0
        %889 = vmatpush.bf16.xpose.msra.mxu0 0
        %890 = vmatpush.bf16.xpose.msra.mxu0 0
        %891 = vmatpush.bf16.xpose.msra.mxu0 0
        %892 = vmatpush.bf16.xpose.msra.mxu0 0
        %893 = vmatpush.bf16.xpose.msra.mxu0 %v884
        %894 = vmatmul.bf16.gmra.mxu0 %v881
        %v895 = vpop.f32.mrf.mxu0
        %v896 = vadd.f32 0.0, %v895
        %v897 = vpop.f32.mrf.mxu0
        %898 = vdwg.mxu0
        %v900 = vunpack.c.l.b16 %v752
        %v901 = vpack.c.b16 %v900, %v900
        %902 = vrot.lane.b32.xlu0 %v901, 96
        %v903 = vpop.permute.xlu0 %902
        %v905 = vsel %vm759, %v752, 0
        %v908 = vsel %vm759, %v903, 0
        %910 = vmatpush.bf16.xpose.msra.mxu0 0
        %911 = vmatpush.bf16.xpose.msra.mxu0 0
        %912 = vmatpush.bf16.xpose.msra.mxu0 0
        %913 = vmatpush.bf16.xpose.msra.mxu0 0
        %914 = vmatpush.bf16.xpose.msra.mxu0 0
        %915 = vmatpush.bf16.xpose.msra.mxu0 0
        %916 = vmatpush.bf16.xpose.msra.mxu0 0
        %917 = vmatpush.bf16.xpose.msra.mxu0 %v908
        %918 = vmatmul.bf16.gmra.mxu0 %v905
        %v919 = vpop.f32.mrf.mxu0
        %v920 = vadd.f32 0.0, %v919
        %v921 = vpop.f32.mrf.mxu0
        %922 = vdwg.mxu0
        %v924 = vunpack.c.l.b16 %v753
        %v925 = vpack.c.b16 %v924, %v924
        %926 = vrot.lane.b32.xlu0 %v925, 96
        %v927 = vpop.permute.xlu0 %926
        %v929 = vsel %vm759, %v753, 0
        %v932 = vsel %vm759, %v927, 0
        %934 = vmatpush.bf16.xpose.msra.mxu0 0
        %935 = vmatpush.bf16.xpose.msra.mxu0 0
        %936 = vmatpush.bf16.xpose.msra.mxu0 0
        %937 = vmatpush.bf16.xpose.msra.mxu0 0
        %938 = vmatpush.bf16.xpose.msra.mxu0 0
        %939 = vmatpush.bf16.xpose.msra.mxu0 0
        %940 = vmatpush.bf16.xpose.msra.mxu0 0
        %941 = vmatpush.bf16.xpose.msra.mxu0 %v932
        %942 = vmatmul.bf16.gmra.mxu0 %v929
        %v943 = vpop.f32.mrf.mxu0
        %v944 = vadd.f32 0.0, %v943
        %v945 = vpop.f32.mrf.mxu0
        %946 = vdwg.mxu0
        %v947 = vsel %vm759, %v776, -inf
        %948 = vmax.xlane.f32.xlu0 %v947
        %v949 = vpop.xlane.xlu0 %948
        %v950 = vsel %vm759, %v800, -inf
        %951 = vmax.xlane.f32.xlu0 %v950
        %v952 = vpop.xlane.xlu0 %951
        %v953 = vsel %vm759, %v824, -inf
        %954 = vmax.xlane.f32.xlu0 %v953
        %v955 = vpop.xlane.xlu0 %954
        %v956 = vsel %vm759, %v848, -inf
        %957 = vmax.xlane.f32.xlu0 %v956
        %v958 = vpop.xlane.xlu0 %957
        %v959 = vsel %vm759, %v872, -inf
        %960 = vmax.xlane.f32.xlu0 %v959
        %v961 = vpop.xlane.xlu0 %960
        %v962 = vsel %vm759, %v896, -inf
        %963 = vmax.xlane.f32.xlu0 %v962
        %v964 = vpop.xlane.xlu0 %963
        %v965 = vsel %vm759, %v920, -inf
        %966 = vmax.xlane.f32.xlu0 %v965
        %v967 = vpop.xlane.xlu0 %966
        %v968 = vsel %vm759, %v944, -inf
        %969 = vmax.xlane.f32.xlu0 %v968
        %v970 = vpop.xlane.xlu0 %969
        %v971 = vsub.f32 %v776, %v949
        %v972 = vsub.f32 %v800, %v952
        %v973 = vsub.f32 %v824, %v955
        %v974 = vsub.f32 %v848, %v958
        %v975 = vsub.f32 %v872, %v961
        %v976 = vsub.f32 %v896, %v964
        %v977 = vsub.f32 %v920, %v967
        %v978 = vsub.f32 %v944, %v970
        %v979 = vmul.f32 %v971, 1.442695
        %v980 = vpow.pop %v979
        %v981 = vmul.f32 %v972, 1.442695
        %v982 = vpow.pop %v981
        %v983 = vmul.f32 %v973, 1.442695
        %v984 = vpow.pop %v983
        %v985 = vmul.f32 %v974, 1.442695
        %v986 = vpow.pop %v985
        %v987 = vmul.f32 %v975, 1.442695
        %v988 = vpow.pop %v987
        %v989 = vmul.f32 %v976, 1.442695
        %v990 = vpow.pop %v989
        %v991 = vmul.f32 %v977, 1.442695
        %v992 = vpow.pop %v991
        %v993 = vmul.f32 %v978, 1.442695
        %v994 = vpow.pop %v993
        %v995 = vsel %vm759, %v980, 0.0
        %996 = vadd.xlane.f32.xlu0 %v995
        %v997 = vpop.xlane.xlu0 %996
        %v998 = vsel %vm759, %v982, 0.0
        %999 = vadd.xlane.f32.xlu0 %v998
        %v1000 = vpop.xlane.xlu0 %999
        %v1001 = vsel %vm759, %v984, 0.0
        %1002 = vadd.xlane.f32.xlu0 %v1001
        %v1003 = vpop.xlane.xlu0 %1002
        %v1004 = vsel %vm759, %v986, 0.0
        %1005 = vadd.xlane.f32.xlu0 %v1004
        %v1006 = vpop.xlane.xlu0 %1005
        %v1007 = vsel %vm759, %v988, 0.0
        %1008 = vadd.xlane.f32.xlu0 %v1007
        %v1009 = vpop.xlane.xlu0 %1008
        %v1010 = vsel %vm759, %v990, 0.0
        %1011 = vadd.xlane.f32.xlu0 %v1010
        %v1012 = vpop.xlane.xlu0 %1011
        %v1013 = vsel %vm759, %v992, 0.0
        %1014 = vadd.xlane.f32.xlu0 %v1013
        %v1015 = vpop.xlane.xlu0 %1014
        %v1016 = vsel %vm759, %v994, 0.0
        %1017 = vadd.xlane.f32.xlu0 %v1016
        %v1018 = vpop.xlane.xlu0 %1017
        %v1019 = vrcp.pop %v997
        %v1020 = vrcp.pop %v1000
        %v1021 = vrcp.pop %v1003
        %v1022 = vrcp.pop %v1006
        %v1023 = vrcp.pop %v1009
        %v1024 = vrcp.pop %v1012
        %v1025 = vrcp.pop %v1015
        %v1026 = vrcp.pop %v1018
        %v1027 = vmul.f32 %v980, %v1019
        %v1028 = vmul.f32 %v982, %v1020
        %v1029 = vmul.f32 %v984, %v1021
        %v1030 = vmul.f32 %v986, %v1022
        %v1031 = vmul.f32 %v988, %v1023
        %v1032 = vmul.f32 %v990, %v1024
        %v1033 = vmul.f32 %v992, %v1025
        %v1034 = vmul.f32 %v994, %v1026
        %v1035 = vpack.c.bf16 %v1027, %v1027
        %v1036 = vpack.c.bf16 %v1028, %v1028
        %v1037 = vpack.c.bf16 %v1029, %v1029
        %v1038 = vpack.c.bf16 %v1030, %v1030
        %v1039 = vpack.c.bf16 %v1031, %v1031
        %v1040 = vpack.c.bf16 %v1032, %v1032
        %v1041 = vpack.c.bf16 %v1033, %v1033
        %v1042 = vpack.c.bf16 %v1034, %v1034
        %1043 = vrot.lane.b32.xlu0 %v756, 64
        %v1044 = vpop.permute.xlu0 %1043
        %v1046 = vsel %vm759, %v1035, 0
        %vm1048 = vcmask 1043456
        %v1050 = vsel %vm1048, %v1044, 0
        %1052 = vmatpush.bf16.msra.mxu0 0
        %1053 = vmatpush.bf16.msra.mxu0 0
        %1054 = vmatpush.bf16.msra.mxu0 0
        %1055 = vmatpush.bf16.msra.mxu0 0
        %1056 = vmatpush.bf16.msra.mxu0 0
        %1057 = vmatpush.bf16.msra.mxu0 0
        %1058 = vmatpush.bf16.msra.mxu0 0
        %1059 = vmatpush.bf16.msra.mxu0 %v1050
        %1060 = vmatmul.bf16.gmra.mxu0 %v1046
        %v1061 = vpop.f32.mrf.mxu0
        %v1062 = vadd.f32 0.0, %v1061
        %v1063 = vpop.f32.mrf.mxu0
        %1064 = vdwg.mxu0
        %1065 = vrot.lane.b32.xlu0 %v781, 64
        %v1066 = vpop.permute.xlu0 %1065
        %v1068 = vsel %vm759, %v1036, 0
        %v1071 = vsel %vm1048, %v1066, 0
        %1073 = vmatpush.bf16.msra.mxu0 0
        %1074 = vmatpush.bf16.msra.mxu0 0
        %1075 = vmatpush.bf16.msra.mxu0 0
        %1076 = vmatpush.bf16.msra.mxu0 0
        %1077 = vmatpush.bf16.msra.mxu0 0
        %1078 = vmatpush.bf16.msra.mxu0 0
        %1079 = vmatpush.bf16.msra.mxu0 0
        %1080 = vmatpush.bf16.msra.mxu0 %v1071
        %1081 = vmatmul.bf16.gmra.mxu0 %v1068
        %v1082 = vpop.f32.mrf.mxu0
        %v1083 = vadd.f32 0.0, %v1082
        %v1084 = vpop.f32.mrf.mxu0
        %1085 = vdwg.mxu0
        %1086 = vrot.lane.b32.xlu0 %v805, 64
        %v1087 = vpop.permute.xlu0 %1086
        %v1089 = vsel %vm759, %v1037, 0
        %v1092 = vsel %vm1048, %v1087, 0
        %1094 = vmatpush.bf16.msra.mxu0 0
        %1095 = vmatpush.bf16.msra.mxu0 0
        %1096 = vmatpush.bf16.msra.mxu0 0
        %1097 = vmatpush.bf16.msra.mxu0 0
        %1098 = vmatpush.bf16.msra.mxu0 0
        %1099 = vmatpush.bf16.msra.mxu0 0
        %1100 = vmatpush.bf16.msra.mxu0 0
        %1101 = vmatpush.bf16.msra.mxu0 %v1092
        %1102 = vmatmul.bf16.gmra.mxu0 %v1089
        %v1103 = vpop.f32.mrf.mxu0
        %v1104 = vadd.f32 0.0, %v1103
        %v1105 = vpop.f32.mrf.mxu0
        %1106 = vdwg.mxu0
        %1107 = vrot.lane.b32.xlu0 %v829, 64
        %v1108 = vpop.permute.xlu0 %1107
        %v1110 = vsel %vm759, %v1038, 0
        %v1113 = vsel %vm1048, %v1108, 0
        %1115 = vmatpush.bf16.msra.mxu0 0
        %1116 = vmatpush.bf16.msra.mxu0 0
        %1117 = vmatpush.bf16.msra.mxu0 0
        %1118 = vmatpush.bf16.msra.mxu0 0
        %1119 = vmatpush.bf16.msra.mxu0 0
        %1120 = vmatpush.bf16.msra.mxu0 0
        %1121 = vmatpush.bf16.msra.mxu0 0
        %1122 = vmatpush.bf16.msra.mxu0 %v1113
        %1123 = vmatmul.bf16.gmra.mxu0 %v1110
        %v1124 = vpop.f32.mrf.mxu0
        %v1125 = vadd.f32 0.0, %v1124
        %v1126 = vpop.f32.mrf.mxu0
        %1127 = vdwg.mxu0
        %1128 = vrot.lane.b32.xlu0 %v853, 64
        %v1129 = vpop.permute.xlu0 %1128
        %v1131 = vsel %vm759, %v1039, 0
        %v1134 = vsel %vm1048, %v1129, 0
        %1136 = vmatpush.bf16.msra.mxu0 0
        %1137 = vmatpush.bf16.msra.mxu0 0
        %1138 = vmatpush.bf16.msra.mxu0 0
        %1139 = vmatpush.bf16.msra.mxu0 0
        %1140 = vmatpush.bf16.msra.mxu0 0
        %1141 = vmatpush.bf16.msra.mxu0 0
        %1142 = vmatpush.bf16.msra.mxu0 0
        %1143 = vmatpush.bf16.msra.mxu0 %v1134
        %1144 = vmatmul.bf16.gmra.mxu0 %v1131
        %v1145 = vpop.f32.mrf.mxu0
        %v1146 = vadd.f32 0.0, %v1145
        %v1147 = vpop.f32.mrf.mxu0
        %1148 = vdwg.mxu0
        %1149 = vrot.lane.b32.xlu0 %v877, 64
        %v1150 = vpop.permute.xlu0 %1149
        %v1152 = vsel %vm759, %v1040, 0
        %v1155 = vsel %vm1048, %v1150, 0
        %1157 = vmatpush.bf16.msra.mxu0 0
        %1158 = vmatpush.bf16.msra.mxu0 0
        %1159 = vmatpush.bf16.msra.mxu0 0
        %1160 = vmatpush.bf16.msra.mxu0 0
        %1161 = vmatpush.bf16.msra.mxu0 0
        %1162 = vmatpush.bf16.msra.mxu0 0
        %1163 = vmatpush.bf16.msra.mxu0 0
        %1164 = vmatpush.bf16.msra.mxu0 %v1155
        %1165 = vmatmul.bf16.gmra.mxu0 %v1152
        %v1166 = vpop.f32.mrf.mxu0
        %v1167 = vadd.f32 0.0, %v1166
        %v1168 = vpop.f32.mrf.mxu0
        %1169 = vdwg.mxu0
        %1170 = vrot.lane.b32.xlu0 %v901, 64
        %v1171 = vpop.permute.xlu0 %1170
        %v1173 = vsel %vm759, %v1041, 0
        %v1176 = vsel %vm1048, %v1171, 0
        %1178 = vmatpush.bf16.msra.mxu0 0
        %1179 = vmatpush.bf16.msra.mxu0 0
        %1180 = vmatpush.bf16.msra.mxu0 0
        %1181 = vmatpush.bf16.msra.mxu0 0
        %1182 = vmatpush.bf16.msra.mxu0 0
        %1183 = vmatpush.bf16.msra.mxu0 0
        %1184 = vmatpush.bf16.msra.mxu0 0
        %1185 = vmatpush.bf16.msra.mxu0 %v1176
        %1186 = vmatmul.bf16.gmra.mxu0 %v1173
        %v1187 = vpop.f32.mrf.mxu0
        %v1188 = vadd.f32 0.0, %v1187
        %v1189 = vpop.f32.mrf.mxu0
        %1190 = vdwg.mxu0
        %1191 = vrot.lane.b32.xlu0 %v925, 64
        %v1192 = vpop.permute.xlu0 %1191
        %v1194 = vsel %vm759, %v1042, 0
        %v1197 = vsel %vm1048, %v1192, 0
        %1199 = vmatpush.bf16.msra.mxu0 0
        %1200 = vmatpush.bf16.msra.mxu0 0
        %1201 = vmatpush.bf16.msra.mxu0 0
        %1202 = vmatpush.bf16.msra.mxu0 0
        %1203 = vmatpush.bf16.msra.mxu0 0
        %1204 = vmatpush.bf16.msra.mxu0 0
        %1205 = vmatpush.bf16.msra.mxu0 0
        %1206 = vmatpush.bf16.msra.mxu0 %v1197
        %1207 = vmatmul.bf16.gmra.mxu0 %v1194
        %v1208 = vpop.f32.mrf.mxu0
        %v1209 = vadd.f32 0.0, %v1208
        %v1210 = vpop.f32.mrf.mxu0
        %1211 = vdwg.mxu0
        %1214 = vrot.lane.b32.xlu0 %v1104, 8
        %v1215 = vpop.permute.xlu0 %1214
        %1216 = vrot.lane.b32.xlu0 %v1125, 8
        %v1217 = vpop.permute.xlu0 %1216
        %1222 = vrot.lane.b32.xlu0 %v1146, 16
        %v1223 = vpop.permute.xlu0 %1222
        %1224 = vrot.lane.b32.xlu0 %v1167, 16
        %v1225 = vpop.permute.xlu0 %1224
        %1230 = vrot.lane.b32.xlu0 %v1188, 24
        %v1231 = vpop.permute.xlu0 %1230
        %1232 = vrot.lane.b32.xlu0 %v1209, 24
        %v1233 = vpop.permute.xlu0 %1232
        %v1236 = vsel %vm759, %v1062, %v1215
        %v1237 = vsel %vm759, %v1083, %v1217
        %vm1238 = vcmask 130048
        %v1239 = vsel %vm1238, %v1236, %v1223
        %v1240 = vsel %vm1238, %v1237, %v1225
        %vm1241 = vcmask 195584
        %v1242 = vsel %vm1241, %v1239, %v1231
        %v1243 = vsel %vm1241, %v1240, %v1233
        %v1244 = vld [vmem:[#allocation7] sm:$0xf]
        %v1245 = vld [vmem:[#allocation7 + $0x4] sm:$0xf]
        %v1246 = vld [vmem:[#allocation7 + $0x8] sm:$0xf]
        %v1247 = vld [vmem:[#allocation7 + $0xc] sm:$0xf]
        %v1248 = vpack.c.bf16 %v1243, %v1242
        %v1249 = vld [vmem:[%s5] sm:$0x1]
        %v1251 = vperm.slane %v1249, 0
        %v1257 = vunpack.c.l.b16 %v1244
        %v1258 = vunpack.c.l.b16 %v1245
        %v1259 = vunpack.c.l.b16 %v1246
        %v1260 = vunpack.c.l.b16 %v1247
        %v1261 = vpack.c.b16 %v1258, %v1257
        %v1262 = vpack.c.b16 %v1260, %v1259
        %v1266 = vsel %vm708, %v1248, 0
        %1268 = vmatpush.bf16.msra.mxu0 0
        %1269 = vmatpush.bf16.msra.mxu0 0
        %1270 = vmatpush.bf16.msra.mxu0 0
        %1271 = vmatpush.bf16.msra.mxu0 0
        %1272 = vmatpush.bf16.msra.mxu0 0
        %1273 = vmatpush.bf16.msra.mxu0 0
        %1274 = vmatpush.bf16.msra.mxu0 %v1262
        %1275 = vmatpush.bf16.msra.mxu0 %v1261
        %1276 = vmatmul.bf16.gmra.mxu0 %v1266
        %v1277 = vpop.f32.mrf.mxu0
        %v1278 = vadd.f32 %v1251, %v1277
        %v1279 = vpop.f32.mrf.mxu0
        %v1280 = vadd.f32 %v1251, %v1279
        %1281 = vdwg.mxu0
        %v1282 = vadd.f32 %v683, %v1278
        %v1283 = vadd.f32 %v684, %v1280
        %v1284 = vld [vmem:[#allocation8] sm:$0xf]
        %v1285 = vld [vmem:[#allocation8 + $0x4] sm:$0xf]
        %v1286 = vld [vmem:[#allocation8 + $0x8] sm:$0xf]
        %v1287 = vld [vmem:[#allocation8 + $0xc] sm:$0xf]
        %v1288 = vpack.c.bf16 %v1283, %v1282
        %v1289 = vld [vmem:[%s7] sm:$0x1]
        %v1291 = vperm.slane %v1289, 0
        %v1297 = vunpack.c.l.b16 %v1284
        %v1298 = vunpack.c.l.b16 %v1285
        %v1299 = vunpack.c.l.b16 %v1286
        %v1300 = vunpack.c.l.b16 %v1287
        %v1301 = vpack.c.b16 %v1298, %v1297
        %v1302 = vpack.c.b16 %v1300, %v1299
        %v1306 = vsel %vm708, %v1288, 0
        %1308 = vmatpush.bf16.msra.mxu0 0
        %1309 = vmatpush.bf16.msra.mxu0 0
        %1310 = vmatpush.bf16.msra.mxu0 0
        %1311 = vmatpush.bf16.msra.mxu0 0
        %1312 = vmatpush.bf16.msra.mxu0 0
        %1313 = vmatpush.bf16.msra.mxu0 0
        %1314 = vmatpush.bf16.msra.mxu0 %v1302
        %1315 = vmatpush.bf16.msra.mxu0 %v1301
        %1316 = vmatmul.bf16.gmra.mxu0 %v1306
        %v1317 = vpop.f32.mrf.mxu0
        %v1318 = vadd.f32 %v1291, %v1317
        %v1319 = vpop.f32.mrf.mxu0
        %v1320 = vadd.f32 %v1291, %v1319
        %1321 = vdwg.mxu0
        %v1322 = vld [vmem:[#allocation10] sm:$0xf]
        %v1323 = vld [vmem:[#allocation10 + $0x4] sm:$0xf]
        %v1324 = vld [vmem:[#allocation10 + $0x8] sm:$0xf]
        %v1325 = vld [vmem:[#allocation10 + $0xc] sm:$0xf]
        %v1326 = vpack.c.bf16 %v686, %v685
        %v1327 = vld [vmem:[#allocation11] sm:$0x1]
        %v1329 = vperm.slane %v1327, 0
        %v1335 = vunpack.c.l.b16 %v1322
        %v1336 = vunpack.c.l.b16 %v1323
        %v1337 = vunpack.c.l.b16 %v1324
        %v1338 = vunpack.c.l.b16 %v1325
        %v1339 = vpack.c.b16 %v1336, %v1335
        %v1340 = vpack.c.b16 %v1338, %v1337
        %v1344 = vsel %vm708, %v1326, 0
        %1346 = vmatpush.bf16.msra.mxu0 0
        %1347 = vmatpush.bf16.msra.mxu0 0
        %1348 = vmatpush.bf16.msra.mxu0 0
        %1349 = vmatpush.bf16.msra.mxu0 0
        %1350 = vmatpush.bf16.msra.mxu0 0
        %1351 = vmatpush.bf16.msra.mxu0 0
        %1352 = vmatpush.bf16.msra.mxu0 %v1340
        %1353 = vmatpush.bf16.msra.mxu0 %v1339
        %1354 = vmatmul.bf16.gmra.mxu0 %v1344
        %v1355 = vpop.f32.mrf.mxu0
        %v1356 = vadd.f32 %v1329, %v1355
        %v1357 = vpop.f32.mrf.mxu0
        %v1358 = vadd.f32 %v1329, %v1357
        %1359 = vdwg.mxu0
        %1362 = vrot.lane.b32.xlu0 %v1318, 120
        %v1363 = vpop.permute.xlu0 %1362
        %1364 = vrot.lane.b32.xlu0 %v1320, 120
        %v1365 = vpop.permute.xlu0 %1364
        %1368 = vrot.lane.b32.xlu0 %v1318, 112
        %v1369 = vpop.permute.xlu0 %1368
        %1370 = vrot.lane.b32.xlu0 %v1320, 112
        %v1371 = vpop.permute.xlu0 %1370
        %1374 = vrot.lane.b32.xlu0 %v1318, 104
        %v1375 = vpop.permute.xlu0 %1374
        %1376 = vrot.lane.b32.xlu0 %v1320, 104
        %v1377 = vpop.permute.xlu0 %1376
        %1382 = vrot.lane.b32.xlu0 %v1356, 120
        %v1383 = vpop.permute.xlu0 %1382
        %1384 = vrot.lane.b32.xlu0 %v1358, 120
        %v1385 = vpop.permute.xlu0 %1384
        %1388 = vrot.lane.b32.xlu0 %v1356, 112
        %v1389 = vpop.permute.xlu0 %1388
        %1390 = vrot.lane.b32.xlu0 %v1358, 112
        %v1391 = vpop.permute.xlu0 %1390
        %1394 = vrot.lane.b32.xlu0 %v1356, 104
        %v1395 = vpop.permute.xlu0 %1394
        %1396 = vrot.lane.b32.xlu0 %v1358, 104
        %v1397 = vpop.permute.xlu0 %1396
        %v1400 = vpack.c.bf16 %v1318, %v1318
        %v1401 = vpack.c.bf16 %v1320, %v1320
        %v1402 = vpack.c.bf16 %v1363, %v1363
        %v1403 = vpack.c.bf16 %v1365, %v1365
        %v1404 = vpack.c.bf16 %v1369, %v1369
        %v1405 = vpack.c.bf16 %v1371, %v1371
        %v1406 = vpack.c.bf16 %v1375, %v1375
        %v1407 = vpack.c.bf16 %v1377, %v1377
        %v1408 = vpack.c.bf16 %v1356, %v1356
        %v1409 = vpack.c.bf16 %v1358, %v1358
        %v1410 = vpack.c.bf16 %v1383, %v1383
        %v1411 = vpack.c.bf16 %v1385, %v1385
        %v1412 = vpack.c.bf16 %v1389, %v1389
        %v1413 = vpack.c.bf16 %v1391, %v1391
        %v1414 = vpack.c.bf16 %v1395, %v1395
        %v1415 = vpack.c.bf16 %v1397, %v1397
        %v1417 = vsel %vm759, %v1400, 0
        %v1420 = vsel %vm759, %v1408, 0
        %1422 = vmatpush.bf16.xpose.msra.mxu0 0
        %1423 = vmatpush.bf16.xpose.msra.mxu0 0
        %1424 = vmatpush.bf16.xpose.msra.mxu0 0
        %1425 = vmatpush.bf16.xpose.msra.mxu0 0
        %1426 = vmatpush.bf16.xpose.msra.mxu0 0
        %1427 = vmatpush.bf16.xpose.msra.mxu0 0
        %1428 = vmatpush.bf16.xpose.msra.mxu0 0
        %1429 = vmatpush.bf16.xpose.msra.mxu0 %v1420
        %1430 = vmatmul.bf16.gmra.mxu0 %v1417
        %v1431 = vpop.f32.mrf.mxu0
        %v1432 = vadd.f32 0.0, %v1431
        %v1433 = vpop.f32.mrf.mxu0
        %1434 = vdwg.mxu0
        %v1436 = vsel %vm759, %v1401, 0
        %v1439 = vsel %vm759, %v1409, 0
        %1441 = vmatpush.bf16.xpose.msra.mxu0 0
        %1442 = vmatpush.bf16.xpose.msra.mxu0 0
        %1443 = vmatpush.bf16.xpose.msra.mxu0 0
        %1444 = vmatpush.bf16.xpose.msra.mxu0 0
        %1445 = vmatpush.bf16.xpose.msra.mxu0 0
        %1446 = vmatpush.bf16.xpose.msra.mxu0 0
        %1447 = vmatpush.bf16.xpose.msra.mxu0 0
        %1448 = vmatpush.bf16.xpose.msra.mxu0 %v1439
        %1449 = vmatmul.bf16.gmra.mxu0 %v1436
        %v1450 = vpop.f32.mrf.mxu0
        %v1451 = vadd.f32 0.0, %v1450
        %v1452 = vpop.f32.mrf.mxu0
        %1453 = vdwg.mxu0
        %v1455 = vsel %vm759, %v1402, 0
        %v1458 = vsel %vm759, %v1410, 0
        %1460 = vmatpush.bf16.xpose.msra.mxu0 0
        %1461 = vmatpush.bf16.xpose.msra.mxu0 0
        %1462 = vmatpush.bf16.xpose.msra.mxu0 0
        %1463 = vmatpush.bf16.xpose.msra.mxu0 0
        %1464 = vmatpush.bf16.xpose.msra.mxu0 0
        %1465 = vmatpush.bf16.xpose.msra.mxu0 0
        %1466 = vmatpush.bf16.xpose.msra.mxu0 0
        %1467 = vmatpush.bf16.xpose.msra.mxu0 %v1458
        %1468 = vmatmul.bf16.gmra.mxu0 %v1455
        %v1469 = vpop.f32.mrf.mxu0
        %v1470 = vadd.f32 0.0, %v1469
        %v1471 = vpop.f32.mrf.mxu0
        %1472 = vdwg.mxu0
        %v1474 = vsel %vm759, %v1403, 0
        %v1477 = vsel %vm759, %v1411, 0
        %1479 = vmatpush.bf16.xpose.msra.mxu0 0
        %1480 = vmatpush.bf16.xpose.msra.mxu0 0
        %1481 = vmatpush.bf16.xpose.msra.mxu0 0
        %1482 = vmatpush.bf16.xpose.msra.mxu0 0
        %1483 = vmatpush.bf16.xpose.msra.mxu0 0
        %1484 = vmatpush.bf16.xpose.msra.mxu0 0
        %1485 = vmatpush.bf16.xpose.msra.mxu0 0
        %1486 = vmatpush.bf16.xpose.msra.mxu0 %v1477
        %1487 = vmatmul.bf16.gmra.mxu0 %v1474
        %v1488 = vpop.f32.mrf.mxu0
        %v1489 = vadd.f32 0.0, %v1488
        %v1490 = vpop.f32.mrf.mxu0
        %1491 = vdwg.mxu0
        %v1493 = vsel %vm759, %v1404, 0
        %v1496 = vsel %vm759, %v1412, 0
        %1498 = vmatpush.bf16.xpose.msra.mxu0 0
        %1499 = vmatpush.bf16.xpose.msra.mxu0 0
        %1500 = vmatpush.bf16.xpose.msra.mxu0 0
        %1501 = vmatpush.bf16.xpose.msra.mxu0 0
        %1502 = vmatpush.bf16.xpose.msra.mxu0 0
        %1503 = vmatpush.bf16.xpose.msra.mxu0 0
        %1504 = vmatpush.bf16.xpose.msra.mxu0 0
        %1505 = vmatpush.bf16.xpose.msra.mxu0 %v1496
        %1506 = vmatmul.bf16.gmra.mxu0 %v1493
        %v1507 = vpop.f32.mrf.mxu0
        %v1508 = vadd.f32 0.0, %v1507
        %v1509 = vpop.f32.mrf.mxu0
        %1510 = vdwg.mxu0
        %v1512 = vsel %vm759, %v1405, 0
        %v1515 = vsel %vm759, %v1413, 0
        %1517 = vmatpush.bf16.xpose.msra.mxu0 0
        %1518 = vmatpush.bf16.xpose.msra.mxu0 0
        %1519 = vmatpush.bf16.xpose.msra.mxu0 0
        %1520 = vmatpush.bf16.xpose.msra.mxu0 0
        %1521 = vmatpush.bf16.xpose.msra.mxu0 0
        %1522 = vmatpush.bf16.xpose.msra.mxu0 0
        %1523 = vmatpush.bf16.xpose.msra.mxu0 0
        %1524 = vmatpush.bf16.xpose.msra.mxu0 %v1515
        %1525 = vmatmul.bf16.gmra.mxu0 %v1512
        %v1526 = vpop.f32.mrf.mxu0
        %v1527 = vadd.f32 0.0, %v1526
        %v1528 = vpop.f32.mrf.mxu0
        %1529 = vdwg.mxu0
        %v1531 = vsel %vm759, %v1406, 0
        %v1534 = vsel %vm759, %v1414, 0
        %1536 = vmatpush.bf16.xpose.msra.mxu0 0
        %1537 = vmatpush.bf16.xpose.msra.mxu0 0
        %1538 = vmatpush.bf16.xpose.msra.mxu0 0
        %1539 = vmatpush.bf16.xpose.msra.mxu0 0
        %1540 = vmatpush.bf16.xpose.msra.mxu0 0
        %1541 = vmatpush.bf16.xpose.msra.mxu0 0
        %1542 = vmatpush.bf16.xpose.msra.mxu0 0
        %1543 = vmatpush.bf16.xpose.msra.mxu0 %v1534
        %1544 = vmatmul.bf16.gmra.mxu0 %v1531
        %v1545 = vpop.f32.mrf.mxu0
        %v1546 = vadd.f32 0.0, %v1545
        %v1547 = vpop.f32.mrf.mxu0
        %1548 = vdwg.mxu0
        %v1550 = vsel %vm759, %v1407, 0
        %v1553 = vsel %vm759, %v1415, 0
        %1555 = vmatpush.bf16.xpose.msra.mxu0 0
        %1556 = vmatpush.bf16.xpose.msra.mxu0 0
        %1557 = vmatpush.bf16.xpose.msra.mxu0 0
        %1558 = vmatpush.bf16.xpose.msra.mxu0 0
        %1559 = vmatpush.bf16.xpose.msra.mxu0 0
        %1560 = vmatpush.bf16.xpose.msra.mxu0 0
        %1561 = vmatpush.bf16.xpose.msra.mxu0 0
        %1562 = vmatpush.bf16.xpose.msra.mxu0 %v1553
        %1563 = vmatmul.bf16.gmra.mxu0 %v1550
        %v1564 = vpop.f32.mrf.mxu0
        %v1565 = vadd.f32 0.0, %v1564
        %v1566 = vpop.f32.mrf.mxu0
        %1567 = vdwg.mxu0
        %v1568 = vsel %vm759, %v1432, -inf
        %1569 = vmax.xlane.f32.xlu0 %v1568
        %v1570 = vpop.xlane.xlu0 %1569
        %v1571 = vsel %vm759, %v1451, -inf
        %1572 = vmax.xlane.f32.xlu0 %v1571
        %v1573 = vpop.xlane.xlu0 %1572
        %v1574 = vsel %vm759, %v1470, -inf
        %1575 = vmax.xlane.f32.xlu0 %v1574
        %v1576 = vpop.xlane.xlu0 %1575
        %v1577 = vsel %vm759, %v1489, -inf
        %1578 = vmax.xlane.f32.xlu0 %v1577
        %v1579 = vpop.xlane.xlu0 %1578
        %v1580 = vsel %vm759, %v1508, -inf
        %1581 = vmax.xlane.f32.xlu0 %v1580
        %v1582 = vpop.xlane.xlu0 %1581
        %v1583 = vsel %vm759, %v1527, -inf
        %1584 = vmax.xlane.f32.xlu0 %v1583
        %v1585 = vpop.xlane.xlu0 %1584
        %v1586 = vsel %vm759, %v1546, -inf
        %1587 = vmax.xlane.f32.xlu0 %v1586
        %v1588 = vpop.xlane.xlu0 %1587
        %v1589 = vsel %vm759, %v1565, -inf
        %1590 = vmax.xlane.f32.xlu0 %v1589
        %v1591 = vpop.xlane.xlu0 %1590
        %v1592 = vsub.f32 %v1432, %v1570
        %v1593 = vsub.f32 %v1451, %v1573
        %v1594 = vsub.f32 %v1470, %v1576
        %v1595 = vsub.f32 %v1489, %v1579
        %v1596 = vsub.f32 %v1508, %v1582
        %v1597 = vsub.f32 %v1527, %v1585
        %v1598 = vsub.f32 %v1546, %v1588
        %v1599 = vsub.f32 %v1565, %v1591
        %v1600 = vmul.f32 %v1592, 1.442695
        %v1601 = vpow.pop %v1600
        %v1602 = vmul.f32 %v1593, 1.442695
        %v1603 = vpow.pop %v1602
        %v1604 = vmul.f32 %v1594, 1.442695
        %v1605 = vpow.pop %v1604
        %v1606 = vmul.f32 %v1595, 1.442695
        %v1607 = vpow.pop %v1606
        %v1608 = vmul.f32 %v1596, 1.442695
        %v1609 = vpow.pop %v1608
        %v1610 = vmul.f32 %v1597, 1.442695
        %v1611 = vpow.pop %v1610
        %v1612 = vmul.f32 %v1598, 1.442695
        %v1613 = vpow.pop %v1612
        %v1614 = vmul.f32 %v1599, 1.442695
        %v1615 = vpow.pop %v1614
        %v1616 = vsel %vm759, %v1601, 0.0
        %1617 = vadd.xlane.f32.xlu0 %v1616
        %v1618 = vpop.xlane.xlu0 %1617
        %v1619 = vsel %vm759, %v1603, 0.0
        %1620 = vadd.xlane.f32.xlu0 %v1619
        %v1621 = vpop.xlane.xlu0 %1620
        %v1622 = vsel %vm759, %v1605, 0.0
        %1623 = vadd.xlane.f32.xlu0 %v1622
        %v1624 = vpop.xlane.xlu0 %1623
        %v1625 = vsel %vm759, %v1607, 0.0
        %1626 = vadd.xlane.f32.xlu0 %v1625
        %v1627 = vpop.xlane.xlu0 %1626
        %v1628 = vsel %vm759, %v1609, 0.0
        %1629 = vadd.xlane.f32.xlu0 %v1628
        %v1630 = vpop.xlane.xlu0 %1629
        %v1631 = vsel %vm759, %v1611, 0.0
        %1632 = vadd.xlane.f32.xlu0 %v1631
        %v1633 = vpop.xlane.xlu0 %1632
        %v1634 = vsel %vm759, %v1613, 0.0
        %1635 = vadd.xlane.f32.xlu0 %v1634
        %v1636 = vpop.xlane.xlu0 %1635
        %v1637 = vsel %vm759, %v1615, 0.0
        %1638 = vadd.xlane.f32.xlu0 %v1637
        %v1639 = vpop.xlane.xlu0 %1638
        %v1640 = vrcp.pop %v1618
        %v1641 = vrcp.pop %v1621
        %v1642 = vrcp.pop %v1624
        %v1643 = vrcp.pop %v1627
        %v1644 = vrcp.pop %v1630
        %v1645 = vrcp.pop %v1633
        %v1646 = vrcp.pop %v1636
        %v1647 = vrcp.pop %v1639
        %v1648 = vmul.f32 %v1601, %v1640
        %v1649 = vmul.f32 %v1603, %v1641
        %v1650 = vmul.f32 %v1605, %v1642
        %v1651 = vmul.f32 %v1607, %v1643
        %v1652 = vmul.f32 %v1609, %v1644
        %v1653 = vmul.f32 %v1611, %v1645
        %v1654 = vmul.f32 %v1613, %v1646
        %v1655 = vmul.f32 %v1615, %v1647
        %v1656 = vpack.c.bf16 %v1648, %v1648
        %v1657 = vpack.c.bf16 %v1649, %v1649
        %v1658 = vpack.c.bf16 %v1650, %v1650
        %v1659 = vpack.c.bf16 %v1651, %v1651
        %v1660 = vpack.c.bf16 %v1652, %v1652
        %v1661 = vpack.c.bf16 %v1653, %v1653
        %v1662 = vpack.c.bf16 %v1654, %v1654
        %v1663 = vpack.c.bf16 %v1655, %v1655
        %v1665 = vunpack.c.l.b16 %v1408
        %v1666 = vpack.c.b16 %v1665, %v1665
        %1667 = vrot.lane.b32.xlu0 %v1666, 96
        %v1668 = vpop.permute.xlu0 %1667
        %v1670 = vsel %vm759, %v1656, 0
        %v1673 = vsel %vm1048, %v1668, 0
        %1675 = vmatpush.bf16.msra.mxu0 0
        %1676 = vmatpush.bf16.msra.mxu0 0
        %1677 = vmatpush.bf16.msra.mxu0 0
        %1678 = vmatpush.bf16.msra.mxu0 0
        %1679 = vmatpush.bf16.msra.mxu0 0
        %1680 = vmatpush.bf16.msra.mxu0 0
        %1681 = vmatpush.bf16.msra.mxu0 0
        %1682 = vmatpush.bf16.msra.mxu0 %v1673
        %1683 = vmatmul.bf16.gmra.mxu0 %v1670
        %v1684 = vpop.f32.mrf.mxu0
        %v1685 = vadd.f32 0.0, %v1684
        %v1686 = vpop.f32.mrf.mxu0
        %1687 = vdwg.mxu0
        %v1689 = vunpack.c.l.b16 %v1409
        %v1690 = vpack.c.b16 %v1689, %v1689
        %1691 = vrot.lane.b32.xlu0 %v1690, 96
        %v1692 = vpop.permute.xlu0 %1691
        %v1694 = vsel %vm759, %v1657, 0
        %v1697 = vsel %vm1048, %v1692, 0
        %1699 = vmatpush.bf16.msra.mxu0 0
        %1700 = vmatpush.bf16.msra.mxu0 0
        %1701 = vmatpush.bf16.msra.mxu0 0
        %1702 = vmatpush.bf16.msra.mxu0 0
        %1703 = vmatpush.bf16.msra.mxu0 0
        %1704 = vmatpush.bf16.msra.mxu0 0
        %1705 = vmatpush.bf16.msra.mxu0 0
        %1706 = vmatpush.bf16.msra.mxu0 %v1697
        %1707 = vmatmul.bf16.gmra.mxu0 %v1694
        %v1708 = vpop.f32.mrf.mxu0
        %v1709 = vadd.f32 0.0, %v1708
        %v1710 = vpop.f32.mrf.mxu0
        %1711 = vdwg.mxu0
        %v1713 = vunpack.c.l.b16 %v1410
        %v1714 = vpack.c.b16 %v1713, %v1713
        %1715 = vrot.lane.b32.xlu0 %v1714, 96
        %v1716 = vpop.permute.xlu0 %1715
        %v1718 = vsel %vm759, %v1658, 0
        %v1721 = vsel %vm1048, %v1716, 0
        %1723 = vmatpush.bf16.msra.mxu0 0
        %1724 = vmatpush.bf16.msra.mxu0 0
        %1725 = vmatpush.bf16.msra.mxu0 0
        %1726 = vmatpush.bf16.msra.mxu0 0
        %1727 = vmatpush.bf16.msra.mxu0 0
        %1728 = vmatpush.bf16.msra.mxu0 0
        %1729 = vmatpush.bf16.msra.mxu0 0
        %1730 = vmatpush.bf16.msra.mxu0 %v1721
        %1731 = vmatmul.bf16.gmra.mxu0 %v1718
        %v1732 = vpop.f32.mrf.mxu0
        %v1733 = vadd.f32 0.0, %v1732
        %v1734 = vpop.f32.mrf.mxu0
        %1735 = vdwg.mxu0
        %v1737 = vunpack.c.l.b16 %v1411
        %v1738 = vpack.c.b16 %v1737, %v1737
        %1739 = vrot.lane.b32.xlu0 %v1738, 96
        %v1740 = vpop.permute.xlu0 %1739
        %v1742 = vsel %vm759, %v1659, 0
        %v1745 = vsel %vm1048, %v1740, 0
        %1747 = vmatpush.bf16.msra.mxu0 0
        %1748 = vmatpush.bf16.msra.mxu0 0
        %1749 = vmatpush.bf16.msra.mxu0 0
        %1750 = vmatpush.bf16.msra.mxu0 0
        %1751 = vmatpush.bf16.msra.mxu0 0
        %1752 = vmatpush.bf16.msra.mxu0 0
        %1753 = vmatpush.bf16.msra.mxu0 0
        %1754 = vmatpush.bf16.msra.mxu0 %v1745
        %1755 = vmatmul.bf16.gmra.mxu0 %v1742
        %v1756 = vpop.f32.mrf.mxu0
        %v1757 = vadd.f32 0.0, %v1756
        %v1758 = vpop.f32.mrf.mxu0
        %1759 = vdwg.mxu0
        %v1761 = vunpack.c.l.b16 %v1412
        %v1762 = vpack.c.b16 %v1761, %v1761
        %1763 = vrot.lane.b32.xlu0 %v1762, 96
        %v1764 = vpop.permute.xlu0 %1763
        %v1766 = vsel %vm759, %v1660, 0
        %v1769 = vsel %vm1048, %v1764, 0
        %1771 = vmatpush.bf16.msra.mxu0 0
        %1772 = vmatpush.bf16.msra.mxu0 0
        %1773 = vmatpush.bf16.msra.mxu0 0
        %1774 = vmatpush.bf16.msra.mxu0 0
        %1775 = vmatpush.bf16.msra.mxu0 0
        %1776 = vmatpush.bf16.msra.mxu0 0
        %1777 = vmatpush.bf16.msra.mxu0 0
        %1778 = vmatpush.bf16.msra.mxu0 %v1769
        %1779 = vmatmul.bf16.gmra.mxu0 %v1766
        %v1780 = vpop.f32.mrf.mxu0
        %v1781 = vadd.f32 0.0, %v1780
        %v1782 = vpop.f32.mrf.mxu0
        %1783 = vdwg.mxu0
        %v1785 = vunpack.c.l.b16 %v1413
        %v1786 = vpack.c.b16 %v1785, %v1785
        %1787 = vrot.lane.b32.xlu0 %v1786, 96
        %v1788 = vpop.permute.xlu0 %1787
        %v1790 = vsel %vm759, %v1661, 0
        %v1793 = vsel %vm1048, %v1788, 0
        %1795 = vmatpush.bf16.msra.mxu0 0
        %1796 = vmatpush.bf16.msra.mxu0 0
        %1797 = vmatpush.bf16.msra.mxu0 0
        %1798 = vmatpush.bf16.msra.mxu0 0
        %1799 = vmatpush.bf16.msra.mxu0 0
        %1800 = vmatpush.bf16.msra.mxu0 0
        %1801 = vmatpush.bf16.msra.mxu0 0
        %1802 = vmatpush.bf16.msra.mxu0 %v1793
        %1803 = vmatmul.bf16.gmra.mxu0 %v1790
        %v1804 = vpop.f32.mrf.mxu0
        %v1805 = vadd.f32 0.0, %v1804
        %v1806 = vpop.f32.mrf.mxu0
        %1807 = vdwg.mxu0
        %v1809 = vunpack.c.l.b16 %v1414
        %v1810 = vpack.c.b16 %v1809, %v1809
        %1811 = vrot.lane.b32.xlu0 %v1810, 96
        %v1812 = vpop.permute.xlu0 %1811
        %v1814 = vsel %vm759, %v1662, 0
        %v1817 = vsel %vm1048, %v1812, 0
        %1819 = vmatpush.bf16.msra.mxu0 0
        %1820 = vmatpush.bf16.msra.mxu0 0
        %1821 = vmatpush.bf16.msra.mxu0 0
        %1822 = vmatpush.bf16.msra.mxu0 0
        %1823 = vmatpush.bf16.msra.mxu0 0
        %1824 = vmatpush.bf16.msra.mxu0 0
        %1825 = vmatpush.bf16.msra.mxu0 0
        %1826 = vmatpush.bf16.msra.mxu0 %v1817
        %1827 = vmatmul.bf16.gmra.mxu0 %v1814
        %v1828 = vpop.f32.mrf.mxu0
        %v1829 = vadd.f32 0.0, %v1828
        %v1830 = vpop.f32.mrf.mxu0
        %1831 = vdwg.mxu0
        %v1833 = vunpack.c.l.b16 %v1415
        %v1834 = vpack.c.b16 %v1833, %v1833
        %1835 = vrot.lane.b32.xlu0 %v1834, 96
        %v1836 = vpop.permute.xlu0 %1835
        %v1838 = vsel %vm759, %v1663, 0
        %v1841 = vsel %vm1048, %v1836, 0
        %1843 = vmatpush.bf16.msra.mxu0 0
        %1844 = vmatpush.bf16.msra.mxu0 0
        %1845 = vmatpush.bf16.msra.mxu0 0
        %1846 = vmatpush.bf16.msra.mxu0 0
        %1847 = vmatpush.bf16.msra.mxu0 0
        %1848 = vmatpush.bf16.msra.mxu0 0
        %1849 = vmatpush.bf16.msra.mxu0 0
        %1850 = vmatpush.bf16.msra.mxu0 %v1841
        %1851 = vmatmul.bf16.gmra.mxu0 %v1838
        %v1852 = vpop.f32.mrf.mxu0
        %v1853 = vadd.f32 0.0, %v1852
        %v1854 = vpop.f32.mrf.mxu0
        %1855 = vdwg.mxu0
        %1858 = vrot.lane.b32.xlu0 %v1733, 8
        %v1859 = vpop.permute.xlu0 %1858
        %1860 = vrot.lane.b32.xlu0 %v1757, 8
        %v1861 = vpop.permute.xlu0 %1860
        %1866 = vrot.lane.b32.xlu0 %v1781, 16
        %v1867 = vpop.permute.xlu0 %1866
        %1868 = vrot.lane.b32.xlu0 %v1805, 16
        %v1869 = vpop.permute.xlu0 %1868
        %1874 = vrot.lane.b32.xlu0 %v1829, 24
        %v1875 = vpop.permute.xlu0 %1874
        %1876 = vrot.lane.b32.xlu0 %v1853, 24
        %v1877 = vpop.permute.xlu0 %1876
        %v1880 = vsel %vm759, %v1685, %v1859
        %v1881 = vsel %vm759, %v1709, %v1861
        %v1882 = vsel %vm1238, %v1880, %v1867
        %v1883 = vsel %vm1238, %v1881, %v1869
        %v1884 = vsel %vm1241, %v1882, %v1875
        %v1885 = vsel %vm1241, %v1883, %v1877
        %v1886 = vld [vmem:[#allocation13] sm:$0xf]
        %v1887 = vld [vmem:[#allocation13 + $0x4] sm:$0xf]
        %v1888 = vld [vmem:[#allocation13 + $0x8] sm:$0xf]
        %v1889 = vld [vmem:[#allocation13 + $0xc] sm:$0xf]
        %v1890 = vpack.c.bf16 %v1885, %v1884
        %v1891 = vld [vmem:[#allocation14] sm:$0x1]
        %v1893 = vperm.slane %v1891, 0
        %v1899 = vunpack.c.l.b16 %v1886
        %v1900 = vunpack.c.l.b16 %v1887
        %v1901 = vunpack.c.l.b16 %v1888
        %v1902 = vunpack.c.l.b16 %v1889
        %v1903 = vpack.c.b16 %v1900, %v1899
        %v1904 = vpack.c.b16 %v1902, %v1901
        %v1908 = vsel %vm708, %v1890, 0
        %1910 = vmatpush.bf16.msra.mxu0 0
        %1911 = vmatpush.bf16.msra.mxu0 0
        %1912 = vmatpush.bf16.msra.mxu0 0
        %1913 = vmatpush.bf16.msra.mxu0 0
        %1914 = vmatpush.bf16.msra.mxu0 0
        %1915 = vmatpush.bf16.msra.mxu0 0
        %1916 = vmatpush.bf16.msra.mxu0 %v1904
        %1917 = vmatpush.bf16.msra.mxu0 %v1903
        %1918 = vmatmul.bf16.gmra.mxu0 %v1908
        %v1919 = vpop.f32.mrf.mxu0
        %v1920 = vadd.f32 %v1893, %v1919
        %v1921 = vpop.f32.mrf.mxu0
        %v1922 = vadd.f32 %v1893, %v1921
        %1923 = vdwg.mxu0
        %v1924 = vadd.f32 %v1282, %v1920
        %v1925 = vadd.f32 %v1283, %v1922
        %v1926 = vld [vmem:[%s12] sm:$0xf]
        %v1927 = vld [vmem:[%s12 + $0x4] sm:$0xf]
        %v1928 = vld [vmem:[%s12 + $0x8] sm:$0xf]
        %v1929 = vld [vmem:[%s12 + $0xc] sm:$0xf]
        %v1930 = vpack.c.bf16 %v1925, %v1924
        %v1931 = vld [vmem:[%s13] sm:$0x1]
        %v1933 = vperm.slane %v1931, 0
        %v1939 = vunpack.c.l.b16 %v1926
        %v1940 = vunpack.c.l.b16 %v1927
        %v1941 = vunpack.c.l.b16 %v1928
        %v1942 = vunpack.c.l.b16 %v1929
        %v1943 = vpack.c.b16 %v1940, %v1939
        %v1944 = vpack.c.b16 %v1942, %v1941
        %v1948 = vsel %vm708, %v1930, 0
        %1950 = vmatpush.bf16.msra.mxu0 0
        %1951 = vmatpush.bf16.msra.mxu0 0
        %1952 = vmatpush.bf16.msra.mxu0 0
        %1953 = vmatpush.bf16.msra.mxu0 0
        %1954 = vmatpush.bf16.msra.mxu0 0
        %1955 = vmatpush.bf16.msra.mxu0 0
        %1956 = vmatpush.bf16.msra.mxu0 %v1944
        %1957 = vmatpush.bf16.msra.mxu0 %v1943
        %1958 = vmatmul.bf16.gmra.mxu0 %v1948
        %v1959 = vpop.f32.mrf.mxu0
        %v1960 = vadd.f32 %v1933, %v1959
        %v1961 = vpop.f32.mrf.mxu0
        %v1962 = vadd.f32 %v1933, %v1961
        %1963 = vdwg.mxu0
        %v1964 = vld [vmem:[%s14] sm:$0xf]
        %v1965 = vld [vmem:[%s14 + $0x4] sm:$0xf]
        %v1966 = vpack.c.bf16 %v1962, %v1960
        %v1967 = vld [vmem:[%s15] sm:$0x1]
        %v1969 = vperm.slane %v1967, 0
        %v1973 = vunpack.c.l.b16 %v1964
        %v1974 = vunpack.c.l.b16 %v1965
        %v1975 = vpack.c.b16 %v1974, %v1973
        %v1978 = vsel %vm1238, %v1966, 0
        %1980 = vmatpush.bf16.msra.mxu0 0
        %1981 = vmatpush.bf16.msra.mxu0 0
        %1982 = vmatpush.bf16.msra.mxu0 0
        %1983 = vmatpush.bf16.msra.mxu0 0
        %1984 = vmatpush.bf16.msra.mxu0 0
        %1985 = vmatpush.bf16.msra.mxu0 0
        %1986 = vmatpush.bf16.msra.mxu0 0
        %1987 = vmatpush.bf16.msra.mxu0 %v1975
        %1988 = vmatmul.bf16.gmra.mxu0 %v1978
        %v1989 = vpop.f32.mrf.mxu0
        %v1990 = vadd.f32 %v1969, %v1989
        %v1991 = vpop.f32.mrf.mxu0
        %v1992 = vadd.f32 %v1969, %v1991
        %1993 = vdwg.mxu0
        %v1994 = vadd.f32 %v1924, %v1990
        %v1995 = vadd.f32 %v1925, %v1992
        %1996 = vst.msk [vmem:[%s678] sm:$0xff] %vm708, %v1994
        %1997 = vst.msk [vmem:[%s678 + $0x8] sm:$0xff] %vm708, %v1995
        %s1998 = sand.u32 %s393, 1
        %s1999 = scalar_lea.sflag [#allocation4], %s1998
        %s2000 = sand.u32 %s393, 1
        %s2001 = smul.addr %s2000, 16
        %s2002 = scalar_lea.vmem [#allocation16], %s2001
        // Predicated region
        $region117: #{tpu_custom_call.1} parent=83 // pred_check
          %p2003 = pneg %p403
        $region118: #{tpu_custom_call.1} parent=83 // pred_check_branch
          %2005 = sbr.rel (%p2003) target = $region120
        $region119: #{tpu_custom_call.1} parent=83 // pred_region
          %s2006 = smul.u32 2, %s39
          %2008 = vsyncadd %s1999, 0
          %s2009 = smul.addr %s2006, 8
          %s2010 = scalar_lea.hbm %s16, %s2009
          %s2011 = sshll.u32 %s2002, 4
          %s2012 = int_to_ptr.vmem [resolvable:$true] %s2011
          %s2013 = sshll.u32 %s2010, 4
          %s2014 = int_to_ptr.hbm [resolvable:$true] %s2013
          %2019 = dma.vmem_to_hbm [thread:$0]  %s2012, 256, %s2014, %s1999, 128, 128, 8
        $region120: #{tpu_custom_call.1} parent=83 // pred_fallthru
          _
      $region84: #{tpu_custom_call.1} parent=5 // pred_fallthru
        _
      %p2020 = scmp.le.s32.totalorder 2, %s34
      // Predicated region
      $region121: #{tpu_custom_call.1} parent=5 // pred_check
        %p2021 = pneg %p2020
      $region122: #{tpu_custom_call.1} parent=5 // pred_check_branch
        %2023 = sbr.rel (%p2021) target = $region124
      $region123: #{tpu_custom_call.1} parent=5 // pred_region
        %s2024 = ssub.s32 %s34, 2
        // Predicated region
        $region125: #{tpu_custom_call.1} parent=123 // pred_check
          %p2025 = pneg %p409
        $region126: #{tpu_custom_call.1} parent=123 // pred_check_branch
          %2027 = sbr.rel (%p2025) target = $region128
        $region127: #{tpu_custom_call.1} parent=123 // pred_region
          %s2028 = sand.u32 %s394, 1
          %s2029 = scalar_lea.sflag [#allocation4], %s2028
          %s2030 = sand.u32 %s394, 1
          %s2031 = smul.addr %s2030, 16
          %s2032 = scalar_lea.vmem [#allocation16], %s2031
          %2034 = dma.done %s2029, 256
        $region128: #{tpu_custom_call.1} parent=123 // pred_fallthru
          _
      $region124: #{tpu_custom_call.1} parent=5 // pred_fallthru
        _
    $region6: #{tpu_custom_call.1} parent=1 // loop_footer
      %s38 = sadd.s32 1, %s34
    $region7: #{tpu_custom_call.1} parent=1 // loop_footer_branch
      %33 = sbr.rel target = $region3
    $region8: #{tpu_custom_call.1} parent=1 // loop_exit
      _
    %2035 = vsyncpa [#allocation3], 1
    %s2036 = scalar_lea.sflag [#allocation3], 1
    %2037 = vsyncpa %s2036, 1
    %2038 = vsyncpa [#allocation6], 1
    %s2039 = scalar_lea.sflag [#allocation6], 1
    %2040 = vsyncpa %s2039, 1
    %2041 = vsyncpa [#allocation9], 1
    %2042 = vsyncpa [#allocation12], 1
    %2043 = vsyncpa [#allocation15], 1
    %2044 = vsyncpa [#allocation4], 1
    %s2045 = scalar_lea.sflag [#allocation4], 1
    %2046 = vsyncpa %s2045, 1

// kernel: tpu_custom_call.1
$region0: #{tpu_custom_call.1}
  #allocation0 [shape = 'u32[]', space=smem, size = 0x4, offset = 0x4, fixed_abs, tag = 'smem constant byte address 0x4 - core index']
  #allocation1 [shape = 'u32[72,128]{1,0:T(1,128)}', space=vmem, size = 0x9000, scoped, tag = 'internal scratch']
  %s0 = inlined_call_operand.hbm [shape: f32[32,32], index: 0, kind: input, shape index: {}]
  %s1 = inlined_call_operand.hbm [shape: f32[32,32], index: 1, kind: input, shape index: {}]
  %s2 = inlined_call_operand.vmem [shape: bf16[32,96], index: 2, kind: input, shape index: {}]
  %s3 = inlined_call_operand.vmem [shape: f32[1,96], index: 3, kind: input, shape index: {}]
  %s4 = inlined_call_operand.hbm [shape: bf16[32,32], index: 4, kind: input, shape index: {}]
  %s5 = inlined_call_operand.vmem [shape: f32[1,32], index: 5, kind: input, shape index: {}]
  %s6 = inlined_call_operand.hbm [shape: bf16[32,32], index: 6, kind: input, shape index: {}]
  %s7 = inlined_call_operand.vmem [shape: f32[1,32], index: 7, kind: input, shape index: {}]
  %s8 = inlined_call_operand.hbm [shape: bf16[32,64], index: 8, kind: input, shape index: {}]
  %s9 = inlined_call_operand.hbm [shape: f32[1,64], index: 9, kind: input, shape index: {}]
  %s10 = inlined_call_operand.hbm [shape: bf16[32,32], index: 10, kind: input, shape index: {}]
  %s11 = inlined_call_operand.hbm [shape: f32[1,32], index: 11, kind: input, shape index: {}]
  %s12 = inlined_call_operand.vmem [shape: bf16[32,16], index: 12, kind: input, shape index: {}]
  %s13 = inlined_call_operand.vmem [shape: f32[1,16], index: 13, kind: input, shape index: {}]
  %s14 = inlined_call_operand.vmem [shape: bf16[16,32], index: 14, kind: input, shape index: {}]
  %s15 = inlined_call_operand.vmem [shape: f32[1,32], index: 15, kind: input, shape index: {}]
  %s16 = inlined_call_operand.hbm [shape: f32[32,32], index: 16, kind: output, shape index: {}]
  %s17 = sld [smem:[#allocation0]]
  $region129: #{tpu_custom_call.1} parent=0
    _
  %s19 = ssub.s32 1, %s17
  %s20 = scalar_select 0, %s19, %s17
  $region1: #{tpu_custom_call.1} parent=0
    #allocation2 [shape = 'u8[16384]{0}', space=vmem, size = 0x4000, scoped, tag = 'input window, operand 0']
    #allocation3 [shape = 's32[2]{0}', space=sflag, size = 0x8, scoped, tag = 'scoped memory for tpu_custom_call.1']
    #allocation4 [shape = 's32[2]{0}', space=sflag, size = 0x8, scoped, tag = 'scoped memory for tpu_custom_call.1']
    #allocation5 [shape = 'u8[16384]{0}', space=vmem, size = 0x4000, scoped, tag = 'input window, operand 1']
    #allocation6 [shape = 's32[2]{0}', space=sflag, size = 0x8, scoped, tag = 'scoped memory for tpu_custom_call.1']
    #allocation7 [shape = 'u8[8192]{0}', space=vmem, size = 0x2000, scoped, tag = 'input window, operand 4, single buffered']
    #allocation8 [shape = 'u8[8192]{0}', space=vmem, size = 0x2000, scoped, tag = 'input window, operand 6, single buffered']
    #allocation9 [shape = 's32[1]{0}', space=sflag, size = 0x4, scoped, tag = 'scoped memory for tpu_custom_call.1']
    #allocation10 [shape = 'u8[8192]{0}', space=vmem, size = 0x2000, scoped, tag = 'input window, operand 8, single buffered']
    #allocation11 [shape = 'u8[512]{0}', space=vmem, size = 0x400, scoped, tag = 'input window, operand 9, single buffered']
    #allocation12 [shape = 's32[1]{0}', space=sflag, size = 0x4, scoped, tag = 'scoped memory for tpu_custom_call.1']
    #allocation13 [shape = 'u8[8192]{0}', space=vmem, size = 0x2000, scoped, tag = 'input window, operand 10, single buffered']
    #allocation14 [shape = 'u8[512]{0}', space=vmem, size = 0x400, scoped, tag = 'input window, operand 11, single buffered']
    #allocation15 [shape = 's32[1]{0}', space=sflag, size = 0x4, scoped, tag = 'scoped memory for tpu_custom_call.1']
    #allocation16 [shape = 'u8[16384]{0}', space=vmem, size = 0x4000, scoped, tag = 'output window, operand 0']
    %21 = vsyncpa [#allocation3], 0
    %s22 = scalar_lea.sflag [#allocation3], 1
    %23 = vsyncpa %s22, 0
    %24 = vsyncpa [#allocation6], 0
    %s25 = scalar_lea.sflag [#allocation6], 1
    %26 = vsyncpa %s25, 0
    %27 = vsyncpa [#allocation9], 0
    %28 = vsyncpa [#allocation12], 0
    %29 = vsyncpa [#allocation15], 0
    %30 = vsyncpa [#allocation4], 0
    %s31 = scalar_lea.sflag [#allocation4], 1
    %32 = vsyncpa %s31, 0
    loop: start=0, step=1, limit=4
    $region2: #{tpu_custom_call.1} parent=1 // loop_pre_header
      _
    $region3: #{tpu_custom_call.1} parent=1 // loop_header
      %s34 = sphi 0, %s38
      %p35 = scmp.ge.s32.totalorder %s34, 4
      %s44 = sphi 0, %s46
      %s47 = sphi 0, %s44
      %s48 = sphi 0, %s47
      %s64 = sphi 0, %s48
      %s70 = sphi 0, %s72
      %s73 = sphi 0, %s70
      %s74 = sphi 0, %s73
      %s90 = sphi 0, %s74
      %s94 = sphi 0, %s94
      %s96 = sphi 0, %s94
      %s97 = sphi 0, %s96
      %s111 = sphi 0, %s97
      %s115 = sphi 0, %s115
      %s117 = sphi 0, %s115
      %s118 = sphi 0, %s117
      %s132 = sphi 0, %s118
      %s136 = sphi 0, %s136
      %s138 = sphi 0, %s136
      %s139 = sphi 0, %s138
      %s153 = sphi 0, %s139
      %s157 = sphi 0, %s157
      %s159 = sphi 0, %s157
      %s160 = sphi 0, %s159
      %s174 = sphi 0, %s160
      %s178 = sphi 0, %s178
      %s180 = sphi 0, %s178
      %s181 = sphi 0, %s180
      %s195 = sphi 0, %s181
      %s199 = sphi 0, %s199
      %s201 = sphi 0, %s199
      %s202 = sphi 0, %s201
      %s216 = sphi 0, %s202
      %s220 = sphi 0, %s220
      %s222 = sphi 0, %s220
      %s223 = sphi 0, %s222
      %s237 = sphi 0, %s223
      %s241 = sphi 0, %s241
      %s243 = sphi 0, %s241
      %s244 = sphi 0, %s243
      %s258 = sphi 0, %s244
      %s262 = sphi 0, %s262
      %s264 = sphi 0, %s262
      %s265 = sphi 0, %s264
      %s279 = sphi 0, %s265
      %s283 = sphi 0, %s283
      %s285 = sphi 0, %s283
      %s286 = sphi 0, %s285
      %s300 = sphi 0, %s286
      %s304 = sphi 0, %s304
      %s306 = sphi 0, %s304
      %s307 = sphi 0, %s306
      %s321 = sphi 0, %s307
      %s325 = sphi 0, %s325
      %s327 = sphi 0, %s325
      %s328 = sphi 0, %s327
      %s342 = sphi 0, %s328
      %s346 = sphi 0, %s346
      %s348 = sphi 0, %s346
      %s349 = sphi 0, %s348
      %s363 = sphi 0, %s349
      %s367 = sphi 0, %s367
      %s369 = sphi 0, %s367
      %s370 = sphi 0, %s369
      %s384 = sphi 0, %s370
      %s390 = sphi 0, %s392
      %s393 = sphi 0, %s390
      %s394 = sphi 0, %s393
      %s410 = sphi 0, %s394
    $region4: #{tpu_custom_call.1} parent=1 // loop_header_branch
      %37 = sbr.rel (%p35) target = $region8
    $region5: #{tpu_custom_call.1} parent=1 // loop_body
      %s39 = ssub.s32 %s34, 1
      %s40 = ssub.s32 %s34, 2
      %s41 = sadd.s32 %s34, 1
      %s42 = ssub.s32 %s34, %s41
      %p43 = scmp.eq.s32.totalorder %s42, 0
      %s45 = sadd.s32 %s44, 1
      %s46 = scalar_select %p43, %s44, %s45
      %p49 = pneg %p43
      %p50 = scmp.eq.s32.totalorder %s34, 1
      %p51 = por %p49, %p50
      %p52 = scmp.ne.s32.totalorder %s44, %s47
      %p53 = scmp.eq.s32.totalorder %s34, 0
      %p54 = por %p52, %p53
      %p55 = scmp.ne.s32.totalorder %s44, %s47
      %p56 = scmp.eq.s32.totalorder %s39, 1
      %p57 = por %p55, %p56
      %p58 = scmp.ne.s32.totalorder %s47, %s48
      %p59 = scmp.eq.s32.totalorder %s39, 0
      %p60 = por %p58, %p59
      %p61 = scmp.ne.s32.totalorder %s47, %s48
      %p62 = scmp.eq.s32.totalorder %s40, 1
      %p63 = por %p61, %p62
      %p65 = scmp.ne.s32.totalorder %s48, %s64
      %p66 = scmp.eq.s32.totalorder %s40, 0
      %p67 = por %p65, %p66
      %s68 = ssub.s32 %s34, %s41
      %p69 = scmp.eq.s32.totalorder %s68, 0
      %s71 = sadd.s32 %s70, 1
      %s72 = scalar_select %p69, %s70, %s71
      %p75 = pneg %p69
      %p76 = scmp.eq.s32.totalorder %s34, 1
      %p77 = por %p75, %p76
      %p78 = scmp.ne.s32.totalorder %s70, %s73
      %p79 = scmp.eq.s32.totalorder %s34, 0
      %p80 = por %p78, %p79
      %p81 = scmp.ne.s32.totalorder %s70, %s73
      %p82 = scmp.eq.s32.totalorder %s39, 1
      %p83 = por %p81, %p82
      %p84 = scmp.ne.s32.totalorder %s73, %s74
      %p85 = scmp.eq.s32.totalorder %s39, 0
      %p86 = por %p84, %p85
      %p87 = scmp.ne.s32.totalorder %s73, %s74
      %p88 = scmp.eq.s32.totalorder %s40, 1
      %p89 = por %p87, %p88
      %p91 = scmp.ne.s32.totalorder %s74, %s90
      %p92 = scmp.eq.s32.totalorder %s40, 0
      %p93 = por %p91, %p92
      %s95 = sadd.s32 %s94, 1
      %p98 = scmp.eq.s32.totalorder %s34, 1
      %p99 = scmp.ne.s32.totalorder %s94, %s96
      %p100 = scmp.eq.s32.totalorder %s34, 0
      %p101 = por %p99, %p100
      %p102 = scmp.ne.s32.totalorder %s94, %s96
      %p103 = scmp.eq.s32.totalorder %s39, 1
      %p104 = por %p102, %p103
      %p105 = scmp.ne.s32.totalorder %s96, %s97
      %p106 = scmp.eq.s32.totalorder %s39, 0
      %p107 = por %p105, %p106
      %p108 = scmp.ne.s32.totalorder %s96, %s97
      %p109 = scmp.eq.s32.totalorder %s40, 1
      %p110 = por %p108, %p109
      %p112 = scmp.ne.s32.totalorder %s97, %s111
      %p113 = scmp.eq.s32.totalorder %s40, 0
      %p114 = por %p112, %p113
      %s116 = sadd.s32 %s115, 1
      %p119 = scmp.eq.s32.totalorder %s34, 1
      %p120 = scmp.ne.s32.totalorder %s115, %s117
      %p121 = scmp.eq.s32.totalorder %s34, 0
      %p122 = por %p120, %p121
      %p123 = scmp.ne.s32.totalorder %s115, %s117
      %p124 = scmp.eq.s32.totalorder %s39, 1
      %p125 = por %p123, %p124
      %p126 = scmp.ne.s32.totalorder %s117, %s118
      %p127 = scmp.eq.s32.totalorder %s39, 0
      %p128 = por %p126, %p127
      %p129 = scmp.ne.s32.totalorder %s117, %s118
      %p130 = scmp.eq.s32.totalorder %s40, 1
      %p131 = por %p129, %p130
      %p133 = scmp.ne.s32.totalorder %s118, %s132
      %p134 = scmp.eq.s32.totalorder %s40, 0
      %p135 = por %p133, %p134
      %s137 = sadd.s32 %s136, 1
      %p140 = scmp.eq.s32.totalorder %s34, 1
      %p141 = scmp.ne.s32.totalorder %s136, %s138
      %p142 = scmp.eq.s32.totalorder %s34, 0
      %p143 = por %p141, %p142
      %p144 = scmp.ne.s32.totalorder %s136, %s138
      %p145 = scmp.eq.s32.totalorder %s39, 1
      %p146 = por %p144, %p145
      %p147 = scmp.ne.s32.totalorder %s138, %s139
      %p148 = scmp.eq.s32.totalorder %s39, 0
      %p149 = por %p147, %p148
      %p150 = scmp.ne.s32.totalorder %s138, %s139
      %p151 = scmp.eq.s32.totalorder %s40, 1
      %p152 = por %p150, %p151
      %p154 = scmp.ne.s32.totalorder %s139, %s153
      %p155 = scmp.eq.s32.totalorder %s40, 0
      %p156 = por %p154, %p155
      %s158 = sadd.s32 %s157, 1
      %p161 = scmp.eq.s32.totalorder %s34, 1
      %p162 = scmp.ne.s32.totalorder %s157, %s159
      %p163 = scmp.eq.s32.totalorder %s34, 0
      %p164 = por %p162, %p163
      %p165 = scmp.ne.s32.totalorder %s157, %s159
      %p166 = scmp.eq.s32.totalorder %s39, 1
      %p167 = por %p165, %p166
      %p168 = scmp.ne.s32.totalorder %s159, %s160
      %p169 = scmp.eq.s32.totalorder %s39, 0
      %p170 = por %p168, %p169
      %p171 = scmp.ne.s32.totalorder %s159, %s160
      %p172 = scmp.eq.s32.totalorder %s40, 1
      %p173 = por %p171, %p172
      %p175 = scmp.ne.s32.totalorder %s160, %s174
      %p176 = scmp.eq.s32.totalorder %s40, 0
      %p177 = por %p175, %p176
      %s179 = sadd.s32 %s178, 1
      %p182 = scmp.eq.s32.totalorder %s34, 1
      %p183 = scmp.ne.s32.totalorder %s178, %s180
      %p184 = scmp.eq.s32.totalorder %s34, 0
      %p185 = por %p183, %p184
      %p186 = scmp.ne.s32.totalorder %s178, %s180
      %p187 = scmp.eq.s32.totalorder %s39, 1
      %p188 = por %p186, %p187
      %p189 = scmp.ne.s32.totalorder %s180, %s181
      %p190 = scmp.eq.s32.totalorder %s39, 0
      %p191 = por %p189, %p190
      %p192 = scmp.ne.s32.totalorder %s180, %s181
      %p193 = scmp.eq.s32.totalorder %s40, 1
      %p194 = por %p192, %p193
      %p196 = scmp.ne.s32.totalorder %s181, %s195
      %p197 = scmp.eq.s32.totalorder %s40, 0
      %p198 = por %p196, %p197
      %s200 = sadd.s32 %s199, 1
      %p203 = scmp.eq.s32.totalorder %s34, 1
      %p204 = scmp.ne.s32.totalorder %s199, %s201
      %p205 = scmp.eq.s32.totalorder %s34, 0
      %p206 = por %p204, %p205
      %p207 = scmp.ne.s32.totalorder %s199, %s201
      %p208 = scmp.eq.s32.totalorder %s39, 1
      %p209 = por %p207, %p208
      %p210 = scmp.ne.s32.totalorder %s201, %s202
      %p211 = scmp.eq.s32.totalorder %s39, 0
      %p212 = por %p210, %p211
      %p213 = scmp.ne.s32.totalorder %s201, %s202
      %p214 = scmp.eq.s32.totalorder %s40, 1
      %p215 = por %p213, %p214
      %p217 = scmp.ne.s32.totalorder %s202, %s216
      %p218 = scmp.eq.s32.totalorder %s40, 0
      %p219 = por %p217, %p218
      %s221 = sadd.s32 %s220, 1
      %p224 = scmp.eq.s32.totalorder %s34, 1
      %p225 = scmp.ne.s32.totalorder %s220, %s222
      %p226 = scmp.eq.s32.totalorder %s34, 0
      %p227 = por %p225, %p226
      %p228 = scmp.ne.s32.totalorder %s220, %s222
      %p229 = scmp.eq.s32.totalorder %s39, 1
      %p230 = por %p228, %p229
      %p231 = scmp.ne.s32.totalorder %s222, %s223
      %p232 = scmp.eq.s32.totalorder %s39, 0
      %p233 = por %p231, %p232
      %p234 = scmp.ne.s32.totalorder %s222, %s223
      %p235 = scmp.eq.s32.totalorder %s40, 1
      %p236 = por %p234, %p235
      %p238 = scmp.ne.s32.totalorder %s223, %s237
      %p239 = scmp.eq.s32.totalorder %s40, 0
      %p240 = por %p238, %p239
      %s242 = sadd.s32 %s241, 1
      %p245 = scmp.eq.s32.totalorder %s34, 1
      %p246 = scmp.ne.s32.totalorder %s241, %s243
      %p247 = scmp.eq.s32.totalorder %s34, 0
      %p248 = por %p246, %p247
      %p249 = scmp.ne.s32.totalorder %s241, %s243
      %p250 = scmp.eq.s32.totalorder %s39, 1
      %p251 = por %p249, %p250
      %p252 = scmp.ne.s32.totalorder %s243, %s244
      %p253 = scmp.eq.s32.totalorder %s39, 0
      %p254 = por %p252, %p253
      %p255 = scmp.ne.s32.totalorder %s243, %s244
      %p256 = scmp.eq.s32.totalorder %s40, 1
      %p257 = por %p255, %p256
      %p259 = scmp.ne.s32.totalorder %s244, %s258
      %p260 = scmp.eq.s32.totalorder %s40, 0
      %p261 = por %p259, %p260
      %s263 = sadd.s32 %s262, 1
      %p266 = scmp.eq.s32.totalorder %s34, 1
      %p267 = scmp.ne.s32.totalorder %s262, %s264
      %p268 = scmp.eq.s32.totalorder %s34, 0
      %p269 = por %p267, %p268
      %p270 = scmp.ne.s32.totalorder %s262, %s264
      %p271 = scmp.eq.s32.totalorder %s39, 1
      %p272 = por %p270, %p271
      %p273 = scmp.ne.s32.totalorder %s264, %s265
      %p274 = scmp.eq.s32.totalorder %s39, 0
      %p275 = por %p273, %p274
      %p276 = scmp.ne.s32.totalorder %s264, %s265
      %p277 = scmp.eq.s32.totalorder %s40, 1
      %p278 = por %p276, %p277
      %p280 = scmp.ne.s32.totalorder %s265, %s279
      %p281 = scmp.eq.s32.totalorder %s40, 0
      %p282 = por %p280, %p281
      %s284 = sadd.s32 %s283, 1
      %p287 = scmp.eq.s32.totalorder %s34, 1
      %p288 = scmp.ne.s32.totalorder %s283, %s285
      %p289 = scmp.eq.s32.totalorder %s34, 0
      %p290 = por %p288, %p289
      %p291 = scmp.ne.s32.totalorder %s283, %s285
      %p292 = scmp.eq.s32.totalorder %s39, 1
      %p293 = por %p291, %p292
      %p294 = scmp.ne.s32.totalorder %s285, %s286
      %p295 = scmp.eq.s32.totalorder %s39, 0
      %p296 = por %p294, %p295
      %p297 = scmp.ne.s32.totalorder %s285, %s286
      %p298 = scmp.eq.s32.totalorder %s40, 1
      %p299 = por %p297, %p298
      %p301 = scmp.ne.s32.totalorder %s286, %s300
      %p302 = scmp.eq.s32.totalorder %s40, 0
      %p303 = por %p301, %p302
      %s305 = sadd.s32 %s304, 1
      %p308 = scmp.eq.s32.totalorder %s34, 1
      %p309 = scmp.ne.s32.totalorder %s304, %s306
      %p310 = scmp.eq.s32.totalorder %s34, 0
      %p311 = por %p309, %p310
      %p312 = scmp.ne.s32.totalorder %s304, %s306
      %p313 = scmp.eq.s32.totalorder %s39, 1
      %p314 = por %p312, %p313
      %p315 = scmp.ne.s32.totalorder %s306, %s307
      %p316 = scmp.eq.s32.totalorder %s39, 0
      %p317 = por %p315, %p316
      %p318 = scmp.ne.s32.totalorder %s306, %s307
      %p319 = scmp.eq.s32.totalorder %s40, 1
      %p320 = por %p318, %p319
      %p322 = scmp.ne.s32.totalorder %s307, %s321
      %p323 = scmp.eq.s32.totalorder %s40, 0
      %p324 = por %p322, %p323
      %s326 = sadd.s32 %s325, 1
      %p329 = scmp.eq.s32.totalorder %s34, 1
      %p330 = scmp.ne.s32.totalorder %s325, %s327
      %p331 = scmp.eq.s32.totalorder %s34, 0
      %p332 = por %p330, %p331
      %p333 = scmp.ne.s32.totalorder %s325, %s327
      %p334 = scmp.eq.s32.totalorder %s39, 1
      %p335 = por %p333, %p334
      %p336 = scmp.ne.s32.totalorder %s327, %s328
      %p337 = scmp.eq.s32.totalorder %s39, 0
      %p338 = por %p336, %p337
      %p339 = scmp.ne.s32.totalorder %s327, %s328
      %p340 = scmp.eq.s32.totalorder %s40, 1
      %p341 = por %p339, %p340
      %p343 = scmp.ne.s32.totalorder %s328, %s342
      %p344 = scmp.eq.s32.totalorder %s40, 0
      %p345 = por %p343, %p344
      %s347 = sadd.s32 %s346, 1
      %p350 = scmp.eq.s32.totalorder %s34, 1
      %p351 = scmp.ne.s32.totalorder %s346, %s348
      %p352 = scmp.eq.s32.totalorder %s34, 0
      %p353 = por %p351, %p352
      %p354 = scmp.ne.s32.totalorder %s346, %s348
      %p355 = scmp.eq.s32.totalorder %s39, 1
      %p356 = por %p354, %p355
      %p357 = scmp.ne.s32.totalorder %s348, %s349
      %p358 = scmp.eq.s32.totalorder %s39, 0
      %p359 = por %p357, %p358
      %p360 = scmp.ne.s32.totalorder %s348, %s349
      %p361 = scmp.eq.s32.totalorder %s40, 1
      %p362 = por %p360, %p361
      %p364 = scmp.ne.s32.totalorder %s349, %s363
      %p365 = scmp.eq.s32.totalorder %s40, 0
      %p366 = por %p364, %p365
      %s368 = sadd.s32 %s367, 1
      %p371 = scmp.eq.s32.totalorder %s34, 1
      %p372 = scmp.ne.s32.totalorder %s367, %s369
      %p373 = scmp.eq.s32.totalorder %s34, 0
      %p374 = por %p372, %p373
      %p375 = scmp.ne.s32.totalorder %s367, %s369
      %p376 = scmp.eq.s32.totalorder %s39, 1
      %p377 = por %p375, %p376
      %p378 = scmp.ne.s32.totalorder %s369, %s370
      %p379 = scmp.eq.s32.totalorder %s39, 0
      %p380 = por %p378, %p379
      %p381 = scmp.ne.s32.totalorder %s369, %s370
      %p382 = scmp.eq.s32.totalorder %s40, 1
      %p383 = por %p381, %p382
      %p385 = scmp.ne.s32.totalorder %s370, %s384
      %p386 = scmp.eq.s32.totalorder %s40, 0
      %p387 = por %p385, %p386
      %s388 = ssub.s32 %s34, %s41
      %p389 = scmp.eq.s32.totalorder %s388, 0
      %s391 = sadd.s32 %s390, 1
      %s392 = scalar_select %p389, %s390, %s391
      %p395 = pneg %p389
      %p396 = scmp.eq.s32.totalorder %s34, 1
      %p397 = por %p395, %p396
      %p398 = scmp.ne.s32.totalorder %s390, %s393
      %p399 = scmp.eq.s32.totalorder %s34, 0
      %p400 = por %p398, %p399
      %p401 = scmp.ne.s32.totalorder %s390, %s393
      %p402 = scmp.eq.s32.totalorder %s39, 1
      %p403 = por %p401, %p402
      %p404 = scmp.ne.s32.totalorder %s393, %s394
      %p405 = scmp.eq.s32.totalorder %s39, 0
      %p406 = por %p404, %p405
      %p407 = scmp.ne.s32.totalorder %s393, %s394
      %p408 = scmp.eq.s32.totalorder %s40, 1
      %p409 = por %p407, %p408
      %p411 = scmp.ne.s32.totalorder %s394, %s410
      %p412 = scmp.eq.s32.totalorder %s40, 0
      %p413 = por %p411, %p412
      %p414 = scmp.le.s32.totalorder 1, %s34
      %p415 = scmp.lt.s32.totalorder %s34, 3
      %p416 = pnand %p414, %p415
      %p417 = pneg %p416
      // Predicated region
      $region9: #{tpu_custom_call.1} parent=5 // pred_check
        _
      $region10: #{tpu_custom_call.1} parent=5 // pred_check_branch
        %419 = sbr.rel (%p416) target = $region12
      $region11: #{tpu_custom_call.1} parent=5 // pred_region
        %s420 = ssub.s32 %s34, 1
        // Predicated region
        $region13: #{tpu_custom_call.1} parent=11 // pred_check
          %p421 = pneg %p107
        $region14: #{tpu_custom_call.1} parent=11 // pred_check_branch
          %423 = sbr.rel (%p421) target = $region16
        $region15: #{tpu_custom_call.1} parent=11 // pred_region
          _
        $region16: #{tpu_custom_call.1} parent=11 // pred_fallthru
          _
        // Predicated region
        $region17: #{tpu_custom_call.1} parent=11 // pred_check
          %p424 = pneg %p128
        $region18: #{tpu_custom_call.1} parent=11 // pred_check_branch
          %426 = sbr.rel (%p424) target = $region20
        $region19: #{tpu_custom_call.1} parent=11 // pred_region
          _
        $region20: #{tpu_custom_call.1} parent=11 // pred_fallthru
          _
        // Predicated region
        $region21: #{tpu_custom_call.1} parent=11 // pred_check
          %p427 = pneg %p149
        $region22: #{tpu_custom_call.1} parent=11 // pred_check_branch
          %429 = sbr.rel (%p427) target = $region24
        $region23: #{tpu_custom_call.1} parent=11 // pred_region
          %431 = vsyncadd [#allocation6], 0
          %s432 = sshll.u32 %s4, 4
          %s433 = int_to_ptr.hbm [resolvable:$true] %s432
          %s434 = sshll.u32 [#allocation7], 4
          %s435 = int_to_ptr.vmem [resolvable:$true] %s434
          %440 = dma.hbm_to_vmem [thread:$0]  %s433, 256, %s435, [#allocation6], 64, 64, 4
        $region24: #{tpu_custom_call.1} parent=11 // pred_fallthru
          _
        // Predicated region
        $region25: #{tpu_custom_call.1} parent=11 // pred_check
          %p441 = pneg %p170
        $region26: #{tpu_custom_call.1} parent=11 // pred_check_branch
          %443 = sbr.rel (%p441) target = $region28
        $region27: #{tpu_custom_call.1} parent=11 // pred_region
          _
        $region28: #{tpu_custom_call.1} parent=11 // pred_fallthru
          _
        // Predicated region
        $region29: #{tpu_custom_call.1} parent=11 // pred_check
          %p444 = pneg %p191
        $region30: #{tpu_custom_call.1} parent=11 // pred_check_branch
          %446 = sbr.rel (%p444) target = $region32
        $region31: #{tpu_custom_call.1} parent=11 // pred_region
          %448 = vsyncadd [#allocation9], 0
          %s449 = sshll.u32 %s6, 4
          %s450 = int_to_ptr.hbm [resolvable:$true] %s449
          %s451 = sshll.u32 [#allocation8], 4
          %s452 = int_to_ptr.vmem [resolvable:$true] %s451
          %457 = dma.hbm_to_vmem [thread:$0]  %s450, 256, %s452, [#allocation9], 64, 64, 4
        $region32: #{tpu_custom_call.1} parent=11 // pred_fallthru
          _
        // Predicated region
        $region33: #{tpu_custom_call.1} parent=11 // pred_check
          %p458 = pneg %p212
        $region34: #{tpu_custom_call.1} parent=11 // pred_check_branch
          %460 = sbr.rel (%p458) target = $region36
        $region35: #{tpu_custom_call.1} parent=11 // pred_region
          _
        $region36: #{tpu_custom_call.1} parent=11 // pred_fallthru
          _
        // Predicated region
        $region37: #{tpu_custom_call.1} parent=11 // pred_check
          %p461 = pneg %p233
        $region38: #{tpu_custom_call.1} parent=11 // pred_check_branch
          %463 = sbr.rel (%p461) target = $region40
        $region39: #{tpu_custom_call.1} parent=11 // pred_region
          %465 = vsyncadd [#allocation9], 0
          %s466 = sshll.u32 %s8, 4
          %s467 = int_to_ptr.hbm [resolvable:$true] %s466
          %s468 = sshll.u32 [#allocation10], 4
          %s469 = int_to_ptr.vmem [resolvable:$true] %s468
          %474 = dma.hbm_to_vmem [thread:$0]  %s467, 256, %s469, [#allocation9], 64, 64, 4
        $region40: #{tpu_custom_call.1} parent=11 // pred_fallthru
          _
        // Predicated region
        $region41: #{tpu_custom_call.1} parent=11 // pred_check
          %p475 = pneg %p254
        $region42: #{tpu_custom_call.1} parent=11 // pred_check_branch
          %477 = sbr.rel (%p475) target = $region44
        $region43: #{tpu_custom_call.1} parent=11 // pred_region
          %479 = vsyncadd [#allocation12], 0
          %s481 = sshll.u32 %s9, 4
          %s482 = int_to_ptr.hbm [resolvable:$true] %s481
          %s483 = sshll.u32 [#allocation11], 4
          %s484 = int_to_ptr.vmem [resolvable:$true] %s483
          %486 = dma.hbm_to_vmem [thread:$0]  %s482, 16, %s484, [#allocation12]
        $region44: #{tpu_custom_call.1} parent=11 // pred_fallthru
          _
        // Predicated region
        $region45: #{tpu_custom_call.1} parent=11 // pred_check
          %p487 = pneg %p275
        $region46: #{tpu_custom_call.1} parent=11 // pred_check_branch
          %489 = sbr.rel (%p487) target = $region48
        $region47: #{tpu_custom_call.1} parent=11 // pred_region
          %491 = vsyncadd [#allocation12], 0
          %s492 = sshll.u32 %s10, 4
          %s493 = int_to_ptr.hbm [resolvable:$true] %s492
          %s494 = sshll.u32 [#allocation13], 4
          %s495 = int_to_ptr.vmem [resolvable:$true] %s494
          %500 = dma.hbm_to_vmem [thread:$0]  %s493, 256, %s495, [#allocation12], 64, 64, 4
        $region48: #{tpu_custom_call.1} parent=11 // pred_fallthru
          _
        // Predicated region
        $region49: #{tpu_custom_call.1} parent=11 // pred_check
          %p501 = pneg %p296
        $region50: #{tpu_custom_call.1} parent=11 // pred_check_branch
          %503 = sbr.rel (%p501) target = $region52
        $region51: #{tpu_custom_call.1} parent=11 // pred_region
          %505 = vsyncadd [#allocation15], 0
          %s507 = sshll.u32 %s11, 4
          %s508 = int_to_ptr.hbm [resolvable:$true] %s507
          %s509 = sshll.u32 [#allocation14], 4
          %s510 = int_to_ptr.vmem [resolvable:$true] %s509
          %512 = dma.hbm_to_vmem [thread:$0]  %s508, 16, %s510, [#allocation15]
        $region52: #{tpu_custom_call.1} parent=11 // pred_fallthru
          _
        // Predicated region
        $region53: #{tpu_custom_call.1} parent=11 // pred_check
          %p513 = pneg %p317
        $region54: #{tpu_custom_call.1} parent=11 // pred_check_branch
          %515 = sbr.rel (%p513) target = $region56
        $region55: #{tpu_custom_call.1} parent=11 // pred_region
          _
        $region56: #{tpu_custom_call.1} parent=11 // pred_fallthru
          _
        // Predicated region
        $region57: #{tpu_custom_call.1} parent=11 // pred_check
          %p516 = pneg %p338
        $region58: #{tpu_custom_call.1} parent=11 // pred_check_branch
          %518 = sbr.rel (%p516) target = $region60
        $region59: #{tpu_custom_call.1} parent=11 // pred_region
          _
        $region60: #{tpu_custom_call.1} parent=11 // pred_fallthru
          _
        // Predicated region
        $region61: #{tpu_custom_call.1} parent=11 // pred_check
          %p519 = pneg %p359
        $region62: #{tpu_custom_call.1} parent=11 // pred_check_branch
          %521 = sbr.rel (%p519) target = $region64
        $region63: #{tpu_custom_call.1} parent=11 // pred_region
          _
        $region64: #{tpu_custom_call.1} parent=11 // pred_fallthru
          _
        // Predicated region
        $region65: #{tpu_custom_call.1} parent=11 // pred_check
          %p522 = pneg %p380
        $region66: #{tpu_custom_call.1} parent=11 // pred_check_branch
          %524 = sbr.rel (%p522) target = $region68
        $region67: #{tpu_custom_call.1} parent=11 // pred_region
          _
        $region68: #{tpu_custom_call.1} parent=11 // pred_fallthru
          _
      $region12: #{tpu_custom_call.1} parent=5 // pred_fallthru
        _
      %p525 = scmp.lt.s32.totalorder %s34, 2
      // Predicated region
      $region69: #{tpu_custom_call.1} parent=5 // pred_check
        %p526 = pneg %p525
      $region70: #{tpu_custom_call.1} parent=5 // pred_check_branch
        %528 = sbr.rel (%p526) target = $region72
      $region71: #{tpu_custom_call.1} parent=5 // pred_region
        // Predicated region
        $region73: #{tpu_custom_call.1} parent=71 // pred_check
          %p529 = pneg %p54
        $region74: #{tpu_custom_call.1} parent=71 // pred_check_branch
          %531 = sbr.rel (%p529) target = $region76
        $region75: #{tpu_custom_call.1} parent=71 // pred_region
          %s532 = sand.u32 %s44, 1
          %s533 = scalar_lea.sflag [#allocation3], %s532
          %s534 = sand.u32 %s44, 1
          %s535 = smul.addr %s534, 16
          %s536 = scalar_lea.vmem [#allocation2], %s535
          %s537 = smul.u32 2, %s34
          %539 = vsyncadd %s533, 0
          %s540 = smul.addr %s537, 8
          %s541 = scalar_lea.hbm %s0, %s540
          %s542 = sshll.u32 %s541, 4
          %s543 = int_to_ptr.hbm [resolvable:$true] %s542
          %s544 = sshll.u32 %s536, 4
          %s545 = int_to_ptr.vmem [resolvable:$true] %s544
          %550 = dma.hbm_to_vmem [thread:$0]  %s543, 256, %s545, %s533, 128, 128, 8
        $region76: #{tpu_custom_call.1} parent=71 // pred_fallthru
          _
        // Predicated region
        $region77: #{tpu_custom_call.1} parent=71 // pred_check
          %p551 = pneg %p80
        $region78: #{tpu_custom_call.1} parent=71 // pred_check_branch
          %553 = sbr.rel (%p551) target = $region80
        $region79: #{tpu_custom_call.1} parent=71 // pred_region
          %s554 = sand.u32 %s34, 1
          %s555 = scalar_lea.sflag [#allocation6], %s554
          %s556 = sand.u32 %s70, 1
          %s557 = smul.addr %s556, 16
          %s558 = scalar_lea.vmem [#allocation5], %s557
          %s559 = smul.u32 2, %s34
          %561 = vsyncadd %s555, 0
          %s562 = smul.addr %s559, 8
          %s563 = scalar_lea.hbm %s1, %s562
          %s564 = sshll.u32 %s563, 4
          %s565 = int_to_ptr.hbm [resolvable:$true] %s564
          %s566 = sshll.u32 %s558, 4
          %s567 = int_to_ptr.vmem [resolvable:$true] %s566
          %572 = dma.hbm_to_vmem [thread:$0]  %s565, 256, %s567, %s555, 128, 128, 8
        $region80: #{tpu_custom_call.1} parent=71 // pred_fallthru
          _
      $region72: #{tpu_custom_call.1} parent=5 // pred_fallthru
        _
      %p573 = scmp.le.s32.totalorder 1, %s34
      %p574 = scmp.lt.s32.totalorder %s34, 3
      %p575 = pnand %p573, %p574
      %p576 = pneg %p575
      // Predicated region
      $region81: #{tpu_custom_call.1} parent=5 // pred_check
        _
      $region82: #{tpu_custom_call.1} parent=5 // pred_check_branch
        %578 = sbr.rel (%p575) target = $region84
      $region83: #{tpu_custom_call.1} parent=5 // pred_region
        %s579 = ssub.s32 %s34, 1
        %s580 = sand.u32 %s47, 1
        %s581 = scalar_lea.sflag [#allocation3], %s580
        %s582 = sand.u32 %s47, 1
        %s583 = smul.addr %s582, 16
        %s584 = scalar_lea.vmem [#allocation2], %s583
        // Predicated region
        $region85: #{tpu_custom_call.1} parent=83 // pred_check
          %p585 = pneg %p60
        $region86: #{tpu_custom_call.1} parent=83 // pred_check_branch
          %587 = sbr.rel (%p585) target = $region88
        $region87: #{tpu_custom_call.1} parent=83 // pred_region
          %589 = dma.done %s581, 256
        $region88: #{tpu_custom_call.1} parent=83 // pred_fallthru
          _
        %s590 = sand.u32 %s39, 1
        %s591 = scalar_lea.sflag [#allocation6], %s590
        %s592 = sand.u32 %s73, 1
        %s593 = smul.addr %s592, 16
        %s594 = scalar_lea.vmem [#allocation5], %s593
        // Predicated region
        $region89: #{tpu_custom_call.1} parent=83 // pred_check
          %p595 = pneg %p86
        $region90: #{tpu_custom_call.1} parent=83 // pred_check_branch
          %597 = sbr.rel (%p595) target = $region92
        $region91: #{tpu_custom_call.1} parent=83 // pred_region
          %599 = dma.done %s591, 256
        $region92: #{tpu_custom_call.1} parent=83 // pred_fallthru
          _
        // Predicated region
        $region93: #{tpu_custom_call.1} parent=83 // pred_check
          %p600 = pneg %p149
        $region94: #{tpu_custom_call.1} parent=83 // pred_check_branch
          %602 = sbr.rel (%p600) target = $region96
        $region95: #{tpu_custom_call.1} parent=83 // pred_region
          %604 = dma.done [#allocation6], 256
        $region96: #{tpu_custom_call.1} parent=83 // pred_fallthru
          _
        // Predicated region
        $region97: #{tpu_custom_call.1} parent=83 // pred_check
          %p605 = pneg %p191
        $region98: #{tpu_custom_call.1} parent=83 // pred_check_branch
          %607 = sbr.rel (%p605) target = $region100
        $region99: #{tpu_custom_call.1} parent=83 // pred_region
          %609 = dma.done [#allocation9], 256
        $region100: #{tpu_custom_call.1} parent=83 // pred_fallthru
          _
        // Predicated region
        $region101: #{tpu_custom_call.1} parent=83 // pred_check
          %p610 = pneg %p233
        $region102: #{tpu_custom_call.1} parent=83 // pred_check_branch
          %612 = sbr.rel (%p610) target = $region104
        $region103: #{tpu_custom_call.1} parent=83 // pred_region
          %614 = dma.done [#allocation9], 256
        $region104: #{tpu_custom_call.1} parent=83 // pred_fallthru
          _
        // Predicated region
        $region105: #{tpu_custom_call.1} parent=83 // pred_check
          %p615 = pneg %p254
        $region106: #{tpu_custom_call.1} parent=83 // pred_check_branch
          %617 = sbr.rel (%p615) target = $region108
        $region107: #{tpu_custom_call.1} parent=83 // pred_region
          %619 = dma.done [#allocation12], 16
        $region108: #{tpu_custom_call.1} parent=83 // pred_fallthru
          _
        // Predicated region
        $region109: #{tpu_custom_call.1} parent=83 // pred_check
          %p620 = pneg %p275
        $region110: #{tpu_custom_call.1} parent=83 // pred_check_branch
          %622 = sbr.rel (%p620) target = $region112
        $region111: #{tpu_custom_call.1} parent=83 // pred_region
          %624 = dma.done [#allocation12], 256
        $region112: #{tpu_custom_call.1} parent=83 // pred_fallthru
          _
        // Predicated region
        $region113: #{tpu_custom_call.1} parent=83 // pred_check
          %p625 = pneg %p296
        $region114: #{tpu_custom_call.1} parent=83 // pred_check_branch
          %627 = sbr.rel (%p625) target = $region116
        $region115: #{tpu_custom_call.1} parent=83 // pred_region
          %629 = dma.done [#allocation15], 16
        $region116: #{tpu_custom_call.1} parent=83 // pred_fallthru
          _
        %s630 = sand.u32 %s47, 1
        %s631 = scalar_lea.sflag [#allocation3], %s630
        %s632 = sand.u32 %s47, 1
        %s633 = smul.addr %s632, 16
        %s634 = scalar_lea.vmem [#allocation2], %s633
        %p635 = pneg %p60
        %p636 = pneg %p57
        %s637 = sand.u32 %s39, 1
        %s638 = scalar_lea.sflag [#allocation6], %s637
        %s639 = sand.u32 %s73, 1
        %s640 = smul.addr %s639, 16
        %s641 = scalar_lea.vmem [#allocation5], %s640
        %p642 = pneg %p86
        %p643 = pneg %p83
        %p644 = pneg %p107
        %p645 = pneg %p104
        %p646 = pneg %p128
        %p647 = pneg %p125
        %p648 = pneg %p149
        %p649 = pneg %p146
        %p650 = pneg %p170
        %p651 = pneg %p167
        %p652 = pneg %p191
        %p653 = pneg %p188
        %p654 = pneg %p212
        %p655 = pneg %p209
        %p656 = pneg %p233
        %p657 = pneg %p230
        %p658 = pneg %p254
        %p659 = pneg %p251
        %p660 = pneg %p275
        %p661 = pneg %p272
        %p662 = pneg %p296
        %p663 = pneg %p293
        %p664 = pneg %p317
        %p665 = pneg %p314
        %p666 = pneg %p338
        %p667 = pneg %p335
        %p668 = pneg %p359
        %p669 = pneg %p356
        %p670 = pneg %p380
        %p671 = pneg %p377
        %p672 = pneg %p406
        %p673 = pneg %p403
        %s674 = sand.u32 %s393, 1
        %s675 = scalar_lea.sflag [#allocation4], %s674
        %s676 = sand.u32 %s393, 1
        %s677 = smul.addr %s676, 16
        %s678 = scalar_lea.vmem [#allocation16], %s677
        %s679 = smul.u32 2, %s39
        %s680 = smul.u32 2, %s39
        %s681 = smul.u32 2, %s39
        %v683 = vld [vmem:[%s584] sm:$0xff]
        %v684 = vld [vmem:[%s584 + $0x8] sm:$0xff]
        %v685 = vld [vmem:[%s594] sm:$0xff]
        %v686 = vld [vmem:[%s594 + $0x8] sm:$0xff]
        %v687 = vld [vmem:[%s2] sm:$0xf]
        %v688 = vld [vmem:[%s2 + $0x4] sm:$0xf]
        %v689 = vld [vmem:[%s2 + $0x8] sm:$0xf]
        %v690 = vld [vmem:[%s2 + $0xc] sm:$0xf]
        %v691 = vpack.c.bf16 %v684, %v683
        %v692 = vld [vmem:[%s3] sm:$0x1]
        %v694 = vperm.slane %v692, 0
        %v700 = vunpack.c.l.b16 %v687
        %v701 = vunpack.c.l.b16 %v688
        %v702 = vunpack.c.l.b16 %v689
        %v703 = vunpack.c.l.b16 %v690
        %v704 = vpack.c.b16 %v701, %v700
        %v705 = vpack.c.b16 %v703, %v702
        %vm708 = vcmask 261120
        %v710 = vsel %vm708, %v691, 0
        %712 = vmatpush.bf16.msra.mxu0 0
        %713 = vmatpush.bf16.msra.mxu0 0
        %714 = vmatpush.bf16.msra.mxu0 0
        %715 = vmatpush.bf16.msra.mxu0 0
        %716 = vmatpush.bf16.msra.mxu0 0
        %717 = vmatpush.bf16.msra.mxu0 0
        %718 = vmatpush.bf16.msra.mxu0 %v705
        %719 = vmatpush.bf16.msra.mxu0 %v704
        %720 = vmatmul.bf16.gmra.mxu0 %v710
        %v721 = vpop.f32.mrf.mxu0
        %v722 = vadd.f32 %v694, %v721
        %v723 = vpop.f32.mrf.mxu0
        %v724 = vadd.f32 %v694, %v723
        %725 = vdwg.mxu0
        %728 = vrot.lane.b32.xlu0 %v722, 120
        %v729 = vpop.permute.xlu0 %728
        %730 = vrot.lane.b32.xlu0 %v724, 120
        %v731 = vpop.permute.xlu0 %730
        %734 = vrot.lane.b32.xlu0 %v722, 112
        %v735 = vpop.permute.xlu0 %734
        %736 = vrot.lane.b32.xlu0 %v724, 112
        %v737 = vpop.permute.xlu0 %736
        %740 = vrot.lane.b32.xlu0 %v722, 104
        %v741 = vpop.permute.xlu0 %740
        %742 = vrot.lane.b32.xlu0 %v724, 104
        %v743 = vpop.permute.xlu0 %742
        %v746 = vpack.c.bf16 %v722, %v722
        %v747 = vpack.c.bf16 %v724, %v724
        %v748 = vpack.c.bf16 %v729, %v729
        %v749 = vpack.c.bf16 %v731, %v731
        %v750 = vpack.c.bf16 %v735, %v735
        %v751 = vpack.c.bf16 %v737, %v737
        %v752 = vpack.c.bf16 %v741, %v741
        %v753 = vpack.c.bf16 %v743, %v743
        %v755 = vunpack.c.l.b16 %v746
        %v756 = vpack.c.b16 %v755, %v755
        %757 = vrot.lane.b32.xlu0 %v756, 96
        %v758 = vpop.permute.xlu0 %757
        %vm759 = vcmask 64512
        %v761 = vsel %vm759, %v746, 0
        %v764 = vsel %vm759, %v758, 0
        %766 = vmatpush.bf16.xpose.msra.mxu0 0
        %767 = vmatpush.bf16.xpose.msra.mxu0 0
        %768 = vmatpush.bf16.xpose.msra.mxu0 0
        %769 = vmatpush.bf16.xpose.msra.mxu0 0
        %770 = vmatpush.bf16.xpose.msra.mxu0 0
        %771 = vmatpush.bf16.xpose.msra.mxu0 0
        %772 = vmatpush.bf16.xpose.msra.mxu0 0
        %773 = vmatpush.bf16.xpose.msra.mxu0 %v764
        %774 = vmatmul.bf16.gmra.mxu0 %v761
        %v775 = vpop.f32.mrf.mxu0
        %v776 = vadd.f32 0.0, %v775
        %v777 = vpop.f32.mrf.mxu0
        %778 = vdwg.mxu0
        %v780 = vunpack.c.l.b16 %v747
        %v781 = vpack.c.b16 %v780, %v780
        %782 = vrot.lane.b32.xlu0 %v781, 96
        %v783 = vpop.permute.xlu0 %782
        %v785 = vsel %vm759, %v747, 0
        %v788 = vsel %vm759, %v783, 0
        %790 = vmatpush.bf16.xpose.msra.mxu0 0
        %791 = vmatpush.bf16.xpose.msra.mxu0 0
        %792 = vmatpush.bf16.xpose.msra.mxu0 0
        %793 = vmatpush.bf16.xpose.msra.mxu0 0
        %794 = vmatpush.bf16.xpose.msra.mxu0 0
        %795 = vmatpush.bf16.xpose.msra.mxu0 0
        %796 = vmatpush.bf16.xpose.msra.mxu0 0
        %797 = vmatpush.bf16.xpose.msra.mxu0 %v788
        %798 = vmatmul.bf16.gmra.mxu0 %v785
        %v799 = vpop.f32.mrf.mxu0
        %v800 = vadd.f32 0.0, %v799
        %v801 = vpop.f32.mrf.mxu0
        %802 = vdwg.mxu0
        %v804 = vunpack.c.l.b16 %v748
        %v805 = vpack.c.b16 %v804, %v804
        %806 = vrot.lane.b32.xlu0 %v805, 96
        %v807 = vpop.permute.xlu0 %806
        %v809 = vsel %vm759, %v748, 0
        %v812 = vsel %vm759, %v807, 0
        %814 = vmatpush.bf16.xpose.msra.mxu0 0
        %815 = vmatpush.bf16.xpose.msra.mxu0 0
        %816 = vmatpush.bf16.xpose.msra.mxu0 0
        %817 = vmatpush.bf16.xpose.msra.mxu0 0
        %818 = vmatpush.bf16.xpose.msra.mxu0 0
        %819 = vmatpush.bf16.xpose.msra.mxu0 0
        %820 = vmatpush.bf16.xpose.msra.mxu0 0
        %821 = vmatpush.bf16.xpose.msra.mxu0 %v812
        %822 = vmatmul.bf16.gmra.mxu0 %v809
        %v823 = vpop.f32.mrf.mxu0
        %v824 = vadd.f32 0.0, %v823
        %v825 = vpop.f32.mrf.mxu0
        %826 = vdwg.mxu0
        %v828 = vunpack.c.l.b16 %v749
        %v829 = vpack.c.b16 %v828, %v828
        %830 = vrot.lane.b32.xlu0 %v829, 96
        %v831 = vpop.permute.xlu0 %830
        %v833 = vsel %vm759, %v749, 0
        %v836 = vsel %vm759, %v831, 0
        %838 = vmatpush.bf16.xpose.msra.mxu0 0
        %839 = vmatpush.bf16.xpose.msra.mxu0 0
        %840 = vmatpush.bf16.xpose.msra.mxu0 0
        %841 = vmatpush.bf16.xpose.msra.mxu0 0
        %842 = vmatpush.bf16.xpose.msra.mxu0 0
        %843 = vmatpush.bf16.xpose.msra.mxu0 0
        %844 = vmatpush.bf16.xpose.msra.mxu0 0
        %845 = vmatpush.bf16.xpose.msra.mxu0 %v836
        %846 = vmatmul.bf16.gmra.mxu0 %v833
        %v847 = vpop.f32.mrf.mxu0
        %v848 = vadd.f32 0.0, %v847
        %v849 = vpop.f32.mrf.mxu0
        %850 = vdwg.mxu0
        %v852 = vunpack.c.l.b16 %v750
        %v853 = vpack.c.b16 %v852, %v852
        %854 = vrot.lane.b32.xlu0 %v853, 96
        %v855 = vpop.permute.xlu0 %854
        %v857 = vsel %vm759, %v750, 0
        %v860 = vsel %vm759, %v855, 0
        %862 = vmatpush.bf16.xpose.msra.mxu0 0
        %863 = vmatpush.bf16.xpose.msra.mxu0 0
        %864 = vmatpush.bf16.xpose.msra.mxu0 0
        %865 = vmatpush.bf16.xpose.msra.mxu0 0
        %866 = vmatpush.bf16.xpose.msra.mxu0 0
        %867 = vmatpush.bf16.xpose.msra.mxu0 0
        %868 = vmatpush.bf16.xpose.msra.mxu0 0
        %869 = vmatpush.bf16.xpose.msra.mxu0 %v860
        %870 = vmatmul.bf16.gmra.mxu0 %v857
        %v871 = vpop.f32.mrf.mxu0
        %v872 = vadd.f32 0.0, %v871
        %v873 = vpop.f32.mrf.mxu0
        %874 = vdwg.mxu0
        %v876 = vunpack.c.l.b16 %v751
        %v877 = vpack.c.b16 %v876, %v876
        %878 = vrot.lane.b32.xlu0 %v877, 96
        %v879 = vpop.permute.xlu0 %878
        %v881 = vsel %vm759, %v751, 0
        %v884 = vsel %vm759, %v879, 0
        %886 = vmatpush.bf16.xpose.msra.mxu0 0
        %887 = vmatpush.bf16.xpose.msra.mxu0 0
        %888 = vmatpush.bf16.xpose.msra.mxu0 0
        %889 = vmatpush.bf16.xpose.msra.mxu0 0
        %890 = vmatpush.bf16.xpose.msra.mxu0 0
        %891 = vmatpush.bf16.xpose.msra.mxu0 0
        %892 = vmatpush.bf16.xpose.msra.mxu0 0
        %893 = vmatpush.bf16.xpose.msra.mxu0 %v884
        %894 = vmatmul.bf16.gmra.mxu0 %v881
        %v895 = vpop.f32.mrf.mxu0
        %v896 = vadd.f32 0.0, %v895
        %v897 = vpop.f32.mrf.mxu0
        %898 = vdwg.mxu0
        %v900 = vunpack.c.l.b16 %v752
        %v901 = vpack.c.b16 %v900, %v900
        %902 = vrot.lane.b32.xlu0 %v901, 96
        %v903 = vpop.permute.xlu0 %902
        %v905 = vsel %vm759, %v752, 0
        %v908 = vsel %vm759, %v903, 0
        %910 = vmatpush.bf16.xpose.msra.mxu0 0
        %911 = vmatpush.bf16.xpose.msra.mxu0 0
        %912 = vmatpush.bf16.xpose.msra.mxu0 0
        %913 = vmatpush.bf16.xpose.msra.mxu0 0
        %914 = vmatpush.bf16.xpose.msra.mxu0 0
        %915 = vmatpush.bf16.xpose.msra.mxu0 0
        %916 = vmatpush.bf16.xpose.msra.mxu0 0
        %917 = vmatpush.bf16.xpose.msra.mxu0 %v908
        %918 = vmatmul.bf16.gmra.mxu0 %v905
        %v919 = vpop.f32.mrf.mxu0
        %v920 = vadd.f32 0.0, %v919
        %v921 = vpop.f32.mrf.mxu0
        %922 = vdwg.mxu0
        %v924 = vunpack.c.l.b16 %v753
        %v925 = vpack.c.b16 %v924, %v924
        %926 = vrot.lane.b32.xlu0 %v925, 96
        %v927 = vpop.permute.xlu0 %926
        %v929 = vsel %vm759, %v753, 0
        %v932 = vsel %vm759, %v927, 0
        %934 = vmatpush.bf16.xpose.msra.mxu0 0
        %935 = vmatpush.bf16.xpose.msra.mxu0 0
        %936 = vmatpush.bf16.xpose.msra.mxu0 0
        %937 = vmatpush.bf16.xpose.msra.mxu0 0
        %938 = vmatpush.bf16.xpose.msra.mxu0 0
        %939 = vmatpush.bf16.xpose.msra.mxu0 0
        %940 = vmatpush.bf16.xpose.msra.mxu0 0
        %941 = vmatpush.bf16.xpose.msra.mxu0 %v932
        %942 = vmatmul.bf16.gmra.mxu0 %v929
        %v943 = vpop.f32.mrf.mxu0
        %v944 = vadd.f32 0.0, %v943
        %v945 = vpop.f32.mrf.mxu0
        %946 = vdwg.mxu0
        %v947 = vsel %vm759, %v776, -inf
        %948 = vmax.xlane.f32.xlu0 %v947
        %v949 = vpop.xlane.xlu0 %948
        %v950 = vsel %vm759, %v800, -inf
        %951 = vmax.xlane.f32.xlu0 %v950
        %v952 = vpop.xlane.xlu0 %951
        %v953 = vsel %vm759, %v824, -inf
        %954 = vmax.xlane.f32.xlu0 %v953
        %v955 = vpop.xlane.xlu0 %954
        %v956 = vsel %vm759, %v848, -inf
        %957 = vmax.xlane.f32.xlu0 %v956
        %v958 = vpop.xlane.xlu0 %957
        %v959 = vsel %vm759, %v872, -inf
        %960 = vmax.xlane.f32.xlu0 %v959
        %v961 = vpop.xlane.xlu0 %960
        %v962 = vsel %vm759, %v896, -inf
        %963 = vmax.xlane.f32.xlu0 %v962
        %v964 = vpop.xlane.xlu0 %963
        %v965 = vsel %vm759, %v920, -inf
        %966 = vmax.xlane.f32.xlu0 %v965
        %v967 = vpop.xlane.xlu0 %966
        %v968 = vsel %vm759, %v944, -inf
        %969 = vmax.xlane.f32.xlu0 %v968
        %v970 = vpop.xlane.xlu0 %969
        %v971 = vsub.f32 %v776, %v949
        %v972 = vsub.f32 %v800, %v952
        %v973 = vsub.f32 %v824, %v955
        %v974 = vsub.f32 %v848, %v958
        %v975 = vsub.f32 %v872, %v961
        %v976 = vsub.f32 %v896, %v964
        %v977 = vsub.f32 %v920, %v967
        %v978 = vsub.f32 %v944, %v970
        %v979 = vmul.f32 %v971, 1.442695
        %v980 = vpow.pop %v979
        %v981 = vmul.f32 %v972, 1.442695
        %v982 = vpow.pop %v981
        %v983 = vmul.f32 %v973, 1.442695
        %v984 = vpow.pop %v983
        %v985 = vmul.f32 %v974, 1.442695
        %v986 = vpow.pop %v985
        %v987 = vmul.f32 %v975, 1.442695
        %v988 = vpow.pop %v987
        %v989 = vmul.f32 %v976, 1.442695
        %v990 = vpow.pop %v989
        %v991 = vmul.f32 %v977, 1.442695
        %v992 = vpow.pop %v991
        %v993 = vmul.f32 %v978, 1.442695
        %v994 = vpow.pop %v993
        %v995 = vsel %vm759, %v980, 0.0
        %996 = vadd.xlane.f32.xlu0 %v995
        %v997 = vpop.xlane.xlu0 %996
        %v998 = vsel %vm759, %v982, 0.0
        %999 = vadd.xlane.f32.xlu0 %v998
        %v1000 = vpop.xlane.xlu0 %999
        %v1001 = vsel %vm759, %v984, 0.0
        %1002 = vadd.xlane.f32.xlu0 %v1001
        %v1003 = vpop.xlane.xlu0 %1002
        %v1004 = vsel %vm759, %v986, 0.0
        %1005 = vadd.xlane.f32.xlu0 %v1004
        %v1006 = vpop.xlane.xlu0 %1005
        %v1007 = vsel %vm759, %v988, 0.0
        %1008 = vadd.xlane.f32.xlu0 %v1007
        %v1009 = vpop.xlane.xlu0 %1008
        %v1010 = vsel %vm759, %v990, 0.0
        %1011 = vadd.xlane.f32.xlu0 %v1010
        %v1012 = vpop.xlane.xlu0 %1011
        %v1013 = vsel %vm759, %v992, 0.0
        %1014 = vadd.xlane.f32.xlu0 %v1013
        %v1015 = vpop.xlane.xlu0 %1014
        %v1016 = vsel %vm759, %v994, 0.0
        %1017 = vadd.xlane.f32.xlu0 %v1016
        %v1018 = vpop.xlane.xlu0 %1017
        %v1019 = vrcp.pop %v997
        %v1020 = vrcp.pop %v1000
        %v1021 = vrcp.pop %v1003
        %v1022 = vrcp.pop %v1006
        %v1023 = vrcp.pop %v1009
        %v1024 = vrcp.pop %v1012
        %v1025 = vrcp.pop %v1015
        %v1026 = vrcp.pop %v1018
        %v1027 = vmul.f32 %v980, %v1019
        %v1028 = vmul.f32 %v982, %v1020
        %v1029 = vmul.f32 %v984, %v1021
        %v1030 = vmul.f32 %v986, %v1022
        %v1031 = vmul.f32 %v988, %v1023
        %v1032 = vmul.f32 %v990, %v1024
        %v1033 = vmul.f32 %v992, %v1025
        %v1034 = vmul.f32 %v994, %v1026
        %v1035 = vpack.c.bf16 %v1027, %v1027
        %v1036 = vpack.c.bf16 %v1028, %v1028
        %v1037 = vpack.c.bf16 %v1029, %v1029
        %v1038 = vpack.c.bf16 %v1030, %v1030
        %v1039 = vpack.c.bf16 %v1031, %v1031
        %v1040 = vpack.c.bf16 %v1032, %v1032
        %v1041 = vpack.c.bf16 %v1033, %v1033
        %v1042 = vpack.c.bf16 %v1034, %v1034
        %1043 = vrot.lane.b32.xlu0 %v756, 64
        %v1044 = vpop.permute.xlu0 %1043
        %v1046 = vsel %vm759, %v1035, 0
        %vm1048 = vcmask 1043456
        %v1050 = vsel %vm1048, %v1044, 0
        %1052 = vmatpush.bf16.msra.mxu0 0
        %1053 = vmatpush.bf16.msra.mxu0 0
        %1054 = vmatpush.bf16.msra.mxu0 0
        %1055 = vmatpush.bf16.msra.mxu0 0
        %1056 = vmatpush.bf16.msra.mxu0 0
        %1057 = vmatpush.bf16.msra.mxu0 0
        %1058 = vmatpush.bf16.msra.mxu0 0
        %1059 = vmatpush.bf16.msra.mxu0 %v1050
        %1060 = vmatmul.bf16.gmra.mxu0 %v1046
        %v1061 = vpop.f32.mrf.mxu0
        %v1062 = vadd.f32 0.0, %v1061
        %v1063 = vpop.f32.mrf.mxu0
        %1064 = vdwg.mxu0
        %1065 = vrot.lane.b32.xlu0 %v781, 64
        %v1066 = vpop.permute.xlu0 %1065
        %v1068 = vsel %vm759, %v1036, 0
        %v1071 = vsel %vm1048, %v1066, 0
        %1073 = vmatpush.bf16.msra.mxu0 0
        %1074 = vmatpush.bf16.msra.mxu0 0
        %1075 = vmatpush.bf16.msra.mxu0 0
        %1076 = vmatpush.bf16.msra.mxu0 0
        %1077 = vmatpush.bf16.msra.mxu0 0
        %1078 = vmatpush.bf16.msra.mxu0 0
        %1079 = vmatpush.bf16.msra.mxu0 0
        %1080 = vmatpush.bf16.msra.mxu0 %v1071
        %1081 = vmatmul.bf16.gmra.mxu0 %v1068
        %v1082 = vpop.f32.mrf.mxu0
        %v1083 = vadd.f32 0.0, %v1082
        %v1084 = vpop.f32.mrf.mxu0
        %1085 = vdwg.mxu0
        %1086 = vrot.lane.b32.xlu0 %v805, 64
        %v1087 = vpop.permute.xlu0 %1086
        %v1089 = vsel %vm759, %v1037, 0
        %v1092 = vsel %vm1048, %v1087, 0
        %1094 = vmatpush.bf16.msra.mxu0 0
        %1095 = vmatpush.bf16.msra.mxu0 0
        %1096 = vmatpush.bf16.msra.mxu0 0
        %1097 = vmatpush.bf16.msra.mxu0 0
        %1098 = vmatpush.bf16.msra.mxu0 0
        %1099 = vmatpush.bf16.msra.mxu0 0
        %1100 = vmatpush.bf16.msra.mxu0 0
        %1101 = vmatpush.bf16.msra.mxu0 %v1092
        %1102 = vmatmul.bf16.gmra.mxu0 %v1089
        %v1103 = vpop.f32.mrf.mxu0
        %v1104 = vadd.f32 0.0, %v1103
        %v1105 = vpop.f32.mrf.mxu0
        %1106 = vdwg.mxu0
        %1107 = vrot.lane.b32.xlu0 %v829, 64
        %v1108 = vpop.permute.xlu0 %1107
        %v1110 = vsel %vm759, %v1038, 0
        %v1113 = vsel %vm1048, %v1108, 0
        %1115 = vmatpush.bf16.msra.mxu0 0
        %1116 = vmatpush.bf16.msra.mxu0 0
        %1117 = vmatpush.bf16.msra.mxu0 0
        %1118 = vmatpush.bf16.msra.mxu0 0
        %1119 = vmatpush.bf16.msra.mxu0 0
        %1120 = vmatpush.bf16.msra.mxu0 0
        %1121 = vmatpush.bf16.msra.mxu0 0
        %1122 = vmatpush.bf16.msra.mxu0 %v1113
        %1123 = vmatmul.bf16.gmra.mxu0 %v1110
        %v1124 = vpop.f32.mrf.mxu0
        %v1125 = vadd.f32 0.0, %v1124
        %v1126 = vpop.f32.mrf.mxu0
        %1127 = vdwg.mxu0
        %1128 = vrot.lane.b32.xlu0 %v853, 64
        %v1129 = vpop.permute.xlu0 %1128
        %v1131 = vsel %vm759, %v1039, 0
        %v1134 = vsel %vm1048, %v1129, 0
        %1136 = vmatpush.bf16.msra.mxu0 0
        %1137 = vmatpush.bf16.msra.mxu0 0
        %1138 = vmatpush.bf16.msra.mxu0 0
        %1139 = vmatpush.bf16.msra.mxu0 0
        %1140 = vmatpush.bf16.msra.mxu0 0
        %1141 = vmatpush.bf16.msra.mxu0 0
        %1142 = vmatpush.bf16.msra.mxu0 0
        %1143 = vmatpush.bf16.msra.mxu0 %v1134
        %1144 = vmatmul.bf16.gmra.mxu0 %v1131
        %v1145 = vpop.f32.mrf.mxu0
        %v1146 = vadd.f32 0.0, %v1145
        %v1147 = vpop.f32.mrf.mxu0
        %1148 = vdwg.mxu0
        %1149 = vrot.lane.b32.xlu0 %v877, 64
        %v1150 = vpop.permute.xlu0 %1149
        %v1152 = vsel %vm759, %v1040, 0
        %v1155 = vsel %vm1048, %v1150, 0
        %1157 = vmatpush.bf16.msra.mxu0 0
        %1158 = vmatpush.bf16.msra.mxu0 0
        %1159 = vmatpush.bf16.msra.mxu0 0
        %1160 = vmatpush.bf16.msra.mxu0 0
        %1161 = vmatpush.bf16.msra.mxu0 0
        %1162 = vmatpush.bf16.msra.mxu0 0
        %1163 = vmatpush.bf16.msra.mxu0 0
        %1164 = vmatpush.bf16.msra.mxu0 %v1155
        %1165 = vmatmul.bf16.gmra.mxu0 %v1152
        %v1166 = vpop.f32.mrf.mxu0
        %v1167 = vadd.f32 0.0, %v1166
        %v1168 = vpop.f32.mrf.mxu0
        %1169 = vdwg.mxu0
        %1170 = vrot.lane.b32.xlu0 %v901, 64
        %v1171 = vpop.permute.xlu0 %1170
        %v1173 = vsel %vm759, %v1041, 0
        %v1176 = vsel %vm1048, %v1171, 0
        %1178 = vmatpush.bf16.msra.mxu0 0
        %1179 = vmatpush.bf16.msra.mxu0 0
        %1180 = vmatpush.bf16.msra.mxu0 0
        %1181 = vmatpush.bf16.msra.mxu0 0
        %1182 = vmatpush.bf16.msra.mxu0 0
        %1183 = vmatpush.bf16.msra.mxu0 0
        %1184 = vmatpush.bf16.msra.mxu0 0
        %1185 = vmatpush.bf16.msra.mxu0 %v1176
        %1186 = vmatmul.bf16.gmra.mxu0 %v1173
        %v1187 = vpop.f32.mrf.mxu0
        %v1188 = vadd.f32 0.0, %v1187
        %v1189 = vpop.f32.mrf.mxu0
        %1190 = vdwg.mxu0
        %1191 = vrot.lane.b32.xlu0 %v925, 64
        %v1192 = vpop.permute.xlu0 %1191
        %v1194 = vsel %vm759, %v1042, 0
        %v1197 = vsel %vm1048, %v1192, 0
        %1199 = vmatpush.bf16.msra.mxu0 0
        %1200 = vmatpush.bf16.msra.mxu0 0
        %1201 = vmatpush.bf16.msra.mxu0 0
        %1202 = vmatpush.bf16.msra.mxu0 0
        %1203 = vmatpush.bf16.msra.mxu0 0
        %1204 = vmatpush.bf16.msra.mxu0 0
        %1205 = vmatpush.bf16.msra.mxu0 0
        %1206 = vmatpush.bf16.msra.mxu0 %v1197
        %1207 = vmatmul.bf16.gmra.mxu0 %v1194
        %v1208 = vpop.f32.mrf.mxu0
        %v1209 = vadd.f32 0.0, %v1208
        %v1210 = vpop.f32.mrf.mxu0
        %1211 = vdwg.mxu0
        %1214 = vrot.lane.b32.xlu0 %v1104, 8
        %v1215 = vpop.permute.xlu0 %1214
        %1216 = vrot.lane.b32.xlu0 %v1125, 8
        %v1217 = vpop.permute.xlu0 %1216
        %1222 = vrot.lane.b32.xlu0 %v1146, 16
        %v1223 = vpop.permute.xlu0 %1222
        %1224 = vrot.lane.b32.xlu0 %v1167, 16
        %v1225 = vpop.permute.xlu0 %1224
        %1230 = vrot.lane.b32.xlu0 %v1188, 24
        %v1231 = vpop.permute.xlu0 %1230
        %1232 = vrot.lane.b32.xlu0 %v1209, 24
        %v1233 = vpop.permute.xlu0 %1232
        %v1236 = vsel %vm759, %v1062, %v1215
        %v1237 = vsel %vm759, %v1083, %v1217
        %vm1238 = vcmask 130048
        %v1239 = vsel %vm1238, %v1236, %v1223
        %v1240 = vsel %vm1238, %v1237, %v1225
        %vm1241 = vcmask 195584
        %v1242 = vsel %vm1241, %v1239, %v1231
        %v1243 = vsel %vm1241, %v1240, %v1233
        %v1244 = vld [vmem:[#allocation7] sm:$0xf]
        %v1245 = vld [vmem:[#allocation7 + $0x4] sm:$0xf]
        %v1246 = vld [vmem:[#allocation7 + $0x8] sm:$0xf]
        %v1247 = vld [vmem:[#allocation7 + $0xc] sm:$0xf]
        %v1248 = vpack.c.bf16 %v1243, %v1242
        %v1249 = vld [vmem:[%s5] sm:$0x1]
        %v1251 = vperm.slane %v1249, 0
        %v1257 = vunpack.c.l.b16 %v1244
        %v1258 = vunpack.c.l.b16 %v1245
        %v1259 = vunpack.c.l.b16 %v1246
        %v1260 = vunpack.c.l.b16 %v1247
        %v1261 = vpack.c.b16 %v1258, %v1257
        %v1262 = vpack.c.b16 %v1260, %v1259
        %v1266 = vsel %vm708, %v1248, 0
        %1268 = vmatpush.bf16.msra.mxu0 0
        %1269 = vmatpush.bf16.msra.mxu0 0
        %1270 = vmatpush.bf16.msra.mxu0 0
        %1271 = vmatpush.bf16.msra.mxu0 0
        %1272 = vmatpush.bf16.msra.mxu0 0
        %1273 = vmatpush.bf16.msra.mxu0 0
        %1274 = vmatpush.bf16.msra.mxu0 %v1262
        %1275 = vmatpush.bf16.msra.mxu0 %v1261
        %1276 = vmatmul.bf16.gmra.mxu0 %v1266
        %v1277 = vpop.f32.mrf.mxu0
        %v1278 = vadd.f32 %v1251, %v1277
        %v1279 = vpop.f32.mrf.mxu0
        %v1280 = vadd.f32 %v1251, %v1279
        %1281 = vdwg.mxu0
        %v1282 = vadd.f32 %v683, %v1278
        %v1283 = vadd.f32 %v684, %v1280
        %v1284 = vld [vmem:[#allocation8] sm:$0xf]
        %v1285 = vld [vmem:[#allocation8 + $0x4] sm:$0xf]
        %v1286 = vld [vmem:[#allocation8 + $0x8] sm:$0xf]
        %v1287 = vld [vmem:[#allocation8 + $0xc] sm:$0xf]
        %v1288 = vpack.c.bf16 %v1283, %v1282
        %v1289 = vld [vmem:[%s7] sm:$0x1]
        %v1291 = vperm.slane %v1289, 0
        %v1297 = vunpack.c.l.b16 %v1284
        %v1298 = vunpack.c.l.b16 %v1285
        %v1299 = vunpack.c.l.b16 %v1286
        %v1300 = vunpack.c.l.b16 %v1287
        %v1301 = vpack.c.b16 %v1298, %v1297
        %v1302 = vpack.c.b16 %v1300, %v1299
        %v1306 = vsel %vm708, %v1288, 0
        %1308 = vmatpush.bf16.msra.mxu0 0
        %1309 = vmatpush.bf16.msra.mxu0 0
        %1310 = vmatpush.bf16.msra.mxu0 0
        %1311 = vmatpush.bf16.msra.mxu0 0
        %1312 = vmatpush.bf16.msra.mxu0 0
        %1313 = vmatpush.bf16.msra.mxu0 0
        %1314 = vmatpush.bf16.msra.mxu0 %v1302
        %1315 = vmatpush.bf16.msra.mxu0 %v1301
        %1316 = vmatmul.bf16.gmra.mxu0 %v1306
        %v1317 = vpop.f32.mrf.mxu0
        %v1318 = vadd.f32 %v1291, %v1317
        %v1319 = vpop.f32.mrf.mxu0
        %v1320 = vadd.f32 %v1291, %v1319
        %1321 = vdwg.mxu0
        %v1322 = vld [vmem:[#allocation10] sm:$0xf]
        %v1323 = vld [vmem:[#allocation10 + $0x4] sm:$0xf]
        %v1324 = vld [vmem:[#allocation10 + $0x8] sm:$0xf]
        %v1325 = vld [vmem:[#allocation10 + $0xc] sm:$0xf]
        %v1326 = vpack.c.bf16 %v686, %v685
        %v1327 = vld [vmem:[#allocation11] sm:$0x1]
        %v1329 = vperm.slane %v1327, 0
        %v1335 = vunpack.c.l.b16 %v1322
        %v1336 = vunpack.c.l.b16 %v1323
        %v1337 = vunpack.c.l.b16 %v1324
        %v1338 = vunpack.c.l.b16 %v1325
        %v1339 = vpack.c.b16 %v1336, %v1335
        %v1340 = vpack.c.b16 %v1338, %v1337
        %v1344 = vsel %vm708, %v1326, 0
        %1346 = vmatpush.bf16.msra.mxu0 0
        %1347 = vmatpush.bf16.msra.mxu0 0
        %1348 = vmatpush.bf16.msra.mxu0 0
        %1349 = vmatpush.bf16.msra.mxu0 0
        %1350 = vmatpush.bf16.msra.mxu0 0
        %1351 = vmatpush.bf16.msra.mxu0 0
        %1352 = vmatpush.bf16.msra.mxu0 %v1340
        %1353 = vmatpush.bf16.msra.mxu0 %v1339
        %1354 = vmatmul.bf16.gmra.mxu0 %v1344
        %v1355 = vpop.f32.mrf.mxu0
        %v1356 = vadd.f32 %v1329, %v1355
        %v1357 = vpop.f32.mrf.mxu0
        %v1358 = vadd.f32 %v1329, %v1357
        %1359 = vdwg.mxu0
        %1362 = vrot.lane.b32.xlu0 %v1318, 120
        %v1363 = vpop.permute.xlu0 %1362
        %1364 = vrot.lane.b32.xlu0 %v1320, 120
        %v1365 = vpop.permute.xlu0 %1364
        %1368 = vrot.lane.b32.xlu0 %v1318, 112
        %v1369 = vpop.permute.xlu0 %1368
        %1370 = vrot.lane.b32.xlu0 %v1320, 112
        %v1371 = vpop.permute.xlu0 %1370
        %1374 = vrot.lane.b32.xlu0 %v1318, 104
        %v1375 = vpop.permute.xlu0 %1374
        %1376 = vrot.lane.b32.xlu0 %v1320, 104
        %v1377 = vpop.permute.xlu0 %1376
        %1382 = vrot.lane.b32.xlu0 %v1356, 120
        %v1383 = vpop.permute.xlu0 %1382
        %1384 = vrot.lane.b32.xlu0 %v1358, 120
        %v1385 = vpop.permute.xlu0 %1384
        %1388 = vrot.lane.b32.xlu0 %v1356, 112
        %v1389 = vpop.permute.xlu0 %1388
        %1390 = vrot.lane.b32.xlu0 %v1358, 112
        %v1391 = vpop.permute.xlu0 %1390
        %1394 = vrot.lane.b32.xlu0 %v1356, 104
        %v1395 = vpop.permute.xlu0 %1394
        %1396 = vrot.lane.b32.xlu0 %v1358, 104
        %v1397 = vpop.permute.xlu0 %1396
        %v1400 = vpack.c.bf16 %v1318, %v1318
        %v1401 = vpack.c.bf16 %v1320, %v1320
        %v1402 = vpack.c.bf16 %v1363, %v1363
        %v1403 = vpack.c.bf16 %v1365, %v1365
        %v1404 = vpack.c.bf16 %v1369, %v1369
        %v1405 = vpack.c.bf16 %v1371, %v1371
        %v1406 = vpack.c.bf16 %v1375, %v1375
        %v1407 = vpack.c.bf16 %v1377, %v1377
        %v1408 = vpack.c.bf16 %v1356, %v1356
        %v1409 = vpack.c.bf16 %v1358, %v1358
        %v1410 = vpack.c.bf16 %v1383, %v1383
        %v1411 = vpack.c.bf16 %v1385, %v1385
        %v1412 = vpack.c.bf16 %v1389, %v1389
        %v1413 = vpack.c.bf16 %v1391, %v1391
        %v1414 = vpack.c.bf16 %v1395, %v1395
        %v1415 = vpack.c.bf16 %v1397, %v1397
        %v1417 = vsel %vm759, %v1400, 0
        %v1420 = vsel %vm759, %v1408, 0
        %1422 = vmatpush.bf16.xpose.msra.mxu0 0
        %1423 = vmatpush.bf16.xpose.msra.mxu0 0
        %1424 = vmatpush.bf16.xpose.msra.mxu0 0
        %1425 = vmatpush.bf16.xpose.msra.mxu0 0
        %1426 = vmatpush.bf16.xpose.msra.mxu0 0
        %1427 = vmatpush.bf16.xpose.msra.mxu0 0
        %1428 = vmatpush.bf16.xpose.msra.mxu0 0
        %1429 = vmatpush.bf16.xpose.msra.mxu0 %v1420
        %1430 = vmatmul.bf16.gmra.mxu0 %v1417
        %v1431 = vpop.f32.mrf.mxu0
        %v1432 = vadd.f32 0.0, %v1431
        %v1433 = vpop.f32.mrf.mxu0
        %1434 = vdwg.mxu0
        %v1436 = vsel %vm759, %v1401, 0
        %v1439 = vsel %vm759, %v1409, 0
        %1441 = vmatpush.bf16.xpose.msra.mxu0 0
        %1442 = vmatpush.bf16.xpose.msra.mxu0 0
        %1443 = vmatpush.bf16.xpose.msra.mxu0 0
        %1444 = vmatpush.bf16.xpose.msra.mxu0 0
        %1445 = vmatpush.bf16.xpose.msra.mxu0 0
        %1446 = vmatpush.bf16.xpose.msra.mxu0 0
        %1447 = vmatpush.bf16.xpose.msra.mxu0 0
        %1448 = vmatpush.bf16.xpose.msra.mxu0 %v1439
        %1449 = vmatmul.bf16.gmra.mxu0 %v1436
        %v1450 = vpop.f32.mrf.mxu0
        %v1451 = vadd.f32 0.0, %v1450
        %v1452 = vpop.f32.mrf.mxu0
        %1453 = vdwg.mxu0
        %v1455 = vsel %vm759, %v1402, 0
        %v1458 = vsel %vm759, %v1410, 0
        %1460 = vmatpush.bf16.xpose.msra.mxu0 0
        %1461 = vmatpush.bf16.xpose.msra.mxu0 0
        %1462 = vmatpush.bf16.xpose.msra.mxu0 0
        %1463 = vmatpush.bf16.xpose.msra.mxu0 0
        %1464 = vmatpush.bf16.xpose.msra.mxu0 0
        %1465 = vmatpush.bf16.xpose.msra.mxu0 0
        %1466 = vmatpush.bf16.xpose.msra.mxu0 0
        %1467 = vmatpush.bf16.xpose.msra.mxu0 %v1458
        %1468 = vmatmul.bf16.gmra.mxu0 %v1455
        %v1469 = vpop.f32.mrf.mxu0
        %v1470 = vadd.f32 0.0, %v1469
        %v1471 = vpop.f32.mrf.mxu0
        %1472 = vdwg.mxu0
        %v1474 = vsel %vm759, %v1403, 0
        %v1477 = vsel %vm759, %v1411, 0
        %1479 = vmatpush.bf16.xpose.msra.mxu0 0
        %1480 = vmatpush.bf16.xpose.msra.mxu0 0
        %1481 = vmatpush.bf16.xpose.msra.mxu0 0
        %1482 = vmatpush.bf16.xpose.msra.mxu0 0
        %1483 = vmatpush.bf16.xpose.msra.mxu0 0
        %1484 = vmatpush.bf16.xpose.msra.mxu0 0
        %1485 = vmatpush.bf16.xpose.msra.mxu0 0
        %1486 = vmatpush.bf16.xpose.msra.mxu0 %v1477
        %1487 = vmatmul.bf16.gmra.mxu0 %v1474
        %v1488 = vpop.f32.mrf.mxu0
        %v1489 = vadd.f32 0.0, %v1488
        %v1490 = vpop.f32.mrf.mxu0
        %1491 = vdwg.mxu0
        %v1493 = vsel %vm759, %v1404, 0
        %v1496 = vsel %vm759, %v1412, 0
        %1498 = vmatpush.bf16.xpose.msra.mxu0 0
        %1499 = vmatpush.bf16.xpose.msra.mxu0 0
        %1500 = vmatpush.bf16.xpose.msra.mxu0 0
        %1501 = vmatpush.bf16.xpose.msra.mxu0 0
        %1502 = vmatpush.bf16.xpose.msra.mxu0 0
        %1503 = vmatpush.bf16.xpose.msra.mxu0 0
        %1504 = vmatpush.bf16.xpose.msra.mxu0 0
        %1505 = vmatpush.bf16.xpose.msra.mxu0 %v1496
        %1506 = vmatmul.bf16.gmra.mxu0 %v1493
        %v1507 = vpop.f32.mrf.mxu0
        %v1508 = vadd.f32 0.0, %v1507
        %v1509 = vpop.f32.mrf.mxu0
        %1510 = vdwg.mxu0
        %v1512 = vsel %vm759, %v1405, 0
        %v1515 = vsel %vm759, %v1413, 0
        %1517 = vmatpush.bf16.xpose.msra.mxu0 0
        %1518 = vmatpush.bf16.xpose.msra.mxu0 0
        %1519 = vmatpush.bf16.xpose.msra.mxu0 0
        %1520 = vmatpush.bf16.xpose.msra.mxu0 0
        %1521 = vmatpush.bf16.xpose.msra.mxu0 0
        %1522 = vmatpush.bf16.xpose.msra.mxu0 0
        %1523 = vmatpush.bf16.xpose.msra.mxu0 0
        %1524 = vmatpush.bf16.xpose.msra.mxu0 %v1515
        %1525 = vmatmul.bf16.gmra.mxu0 %v1512
        %v1526 = vpop.f32.mrf.mxu0
        %v1527 = vadd.f32 0.0, %v1526
        %v1528 = vpop.f32.mrf.mxu0
        %1529 = vdwg.mxu0
        %v1531 = vsel %vm759, %v1406, 0
        %v1534 = vsel %vm759, %v1414, 0
        %1536 = vmatpush.bf16.xpose.msra.mxu0 0
        %1537 = vmatpush.bf16.xpose.msra.mxu0 0
        %1538 = vmatpush.bf16.xpose.msra.mxu0 0
        %1539 = vmatpush.bf16.xpose.msra.mxu0 0
        %1540 = vmatpush.bf16.xpose.msra.mxu0 0
        %1541 = vmatpush.bf16.xpose.msra.mxu0 0
        %1542 = vmatpush.bf16.xpose.msra.mxu0 0
        %1543 = vmatpush.bf16.xpose.msra.mxu0 %v1534
        %1544 = vmatmul.bf16.gmra.mxu0 %v1531
        %v1545 = vpop.f32.mrf.mxu0
        %v1546 = vadd.f32 0.0, %v1545
        %v1547 = vpop.f32.mrf.mxu0
        %1548 = vdwg.mxu0
        %v1550 = vsel %vm759, %v1407, 0
        %v1553 = vsel %vm759, %v1415, 0
        %1555 = vmatpush.bf16.xpose.msra.mxu0 0
        %1556 = vmatpush.bf16.xpose.msra.mxu0 0
        %1557 = vmatpush.bf16.xpose.msra.mxu0 0
        %1558 = vmatpush.bf16.xpose.msra.mxu0 0
        %1559 = vmatpush.bf16.xpose.msra.mxu0 0
        %1560 = vmatpush.bf16.xpose.msra.mxu0 0
        %1561 = vmatpush.bf16.xpose.msra.mxu0 0
        %1562 = vmatpush.bf16.xpose.msra.mxu0 %v1553
        %1563 = vmatmul.bf16.gmra.mxu0 %v1550
        %v1564 = vpop.f32.mrf.mxu0
        %v1565 = vadd.f32 0.0, %v1564
        %v1566 = vpop.f32.mrf.mxu0
        %1567 = vdwg.mxu0
        %v1568 = vsel %vm759, %v1432, -inf
        %1569 = vmax.xlane.f32.xlu0 %v1568
        %v1570 = vpop.xlane.xlu0 %1569
        %v1571 = vsel %vm759, %v1451, -inf
        %1572 = vmax.xlane.f32.xlu0 %v1571
        %v1573 = vpop.xlane.xlu0 %1572
        %v1574 = vsel %vm759, %v1470, -inf
        %1575 = vmax.xlane.f32.xlu0 %v1574
        %v1576 = vpop.xlane.xlu0 %1575
        %v1577 = vsel %vm759, %v1489, -inf
        %1578 = vmax.xlane.f32.xlu0 %v1577
        %v1579 = vpop.xlane.xlu0 %1578
        %v1580 = vsel %vm759, %v1508, -inf
        %1581 = vmax.xlane.f32.xlu0 %v1580
        %v1582 = vpop.xlane.xlu0 %1581
        %v1583 = vsel %vm759, %v1527, -inf
        %1584 = vmax.xlane.f32.xlu0 %v1583
        %v1585 = vpop.xlane.xlu0 %1584
        %v1586 = vsel %vm759, %v1546, -inf
        %1587 = vmax.xlane.f32.xlu0 %v1586
        %v1588 = vpop.xlane.xlu0 %1587
        %v1589 = vsel %vm759, %v1565, -inf
        %1590 = vmax.xlane.f32.xlu0 %v1589
        %v1591 = vpop.xlane.xlu0 %1590
        %v1592 = vsub.f32 %v1432, %v1570
        %v1593 = vsub.f32 %v1451, %v1573
        %v1594 = vsub.f32 %v1470, %v1576
        %v1595 = vsub.f32 %v1489, %v1579
        %v1596 = vsub.f32 %v1508, %v1582
        %v1597 = vsub.f32 %v1527, %v1585
        %v1598 = vsub.f32 %v1546, %v1588
        %v1599 = vsub.f32 %v1565, %v1591
        %v1600 = vmul.f32 %v1592, 1.442695
        %v1601 = vpow.pop %v1600
        %v1602 = vmul.f32 %v1593, 1.442695
        %v1603 = vpow.pop %v1602
        %v1604 = vmul.f32 %v1594, 1.442695
        %v1605 = vpow.pop %v1604
        %v1606 = vmul.f32 %v1595, 1.442695
        %v1607 = vpow.pop %v1606
        %v1608 = vmul.f32 %v1596, 1.442695
        %v1609 = vpow.pop %v1608
        %v1610 = vmul.f32 %v1597, 1.442695
        %v1611 = vpow.pop %v1610
        %v1612 = vmul.f32 %v1598, 1.442695
        %v1613 = vpow.pop %v1612
        %v1614 = vmul.f32 %v1599, 1.442695
        %v1615 = vpow.pop %v1614
        %v1616 = vsel %vm759, %v1601, 0.0
        %1617 = vadd.xlane.f32.xlu0 %v1616
        %v1618 = vpop.xlane.xlu0 %1617
        %v1619 = vsel %vm759, %v1603, 0.0
        %1620 = vadd.xlane.f32.xlu0 %v1619
        %v1621 = vpop.xlane.xlu0 %1620
        %v1622 = vsel %vm759, %v1605, 0.0
        %1623 = vadd.xlane.f32.xlu0 %v1622
        %v1624 = vpop.xlane.xlu0 %1623
        %v1625 = vsel %vm759, %v1607, 0.0
        %1626 = vadd.xlane.f32.xlu0 %v1625
        %v1627 = vpop.xlane.xlu0 %1626
        %v1628 = vsel %vm759, %v1609, 0.0
        %1629 = vadd.xlane.f32.xlu0 %v1628
        %v1630 = vpop.xlane.xlu0 %1629
        %v1631 = vsel %vm759, %v1611, 0.0
        %1632 = vadd.xlane.f32.xlu0 %v1631
        %v1633 = vpop.xlane.xlu0 %1632
        %v1634 = vsel %vm759, %v1613, 0.0
        %1635 = vadd.xlane.f32.xlu0 %v1634
        %v1636 = vpop.xlane.xlu0 %1635
        %v1637 = vsel %vm759, %v1615, 0.0
        %1638 = vadd.xlane.f32.xlu0 %v1637
        %v1639 = vpop.xlane.xlu0 %1638
        %v1640 = vrcp.pop %v1618
        %v1641 = vrcp.pop %v1621
        %v1642 = vrcp.pop %v1624
        %v1643 = vrcp.pop %v1627
        %v1644 = vrcp.pop %v1630
        %v1645 = vrcp.pop %v1633
        %v1646 = vrcp.pop %v1636
        %v1647 = vrcp.pop %v1639
        %v1648 = vmul.f32 %v1601, %v1640
        %v1649 = vmul.f32 %v1603, %v1641
        %v1650 = vmul.f32 %v1605, %v1642
        %v1651 = vmul.f32 %v1607, %v1643
        %v1652 = vmul.f32 %v1609, %v1644
        %v1653 = vmul.f32 %v1611, %v1645
        %v1654 = vmul.f32 %v1613, %v1646
        %v1655 = vmul.f32 %v1615, %v1647
        %v1656 = vpack.c.bf16 %v1648, %v1648
        %v1657 = vpack.c.bf16 %v1649, %v1649
        %v1658 = vpack.c.bf16 %v1650, %v1650
        %v1659 = vpack.c.bf16 %v1651, %v1651
        %v1660 = vpack.c.bf16 %v1652, %v1652
        %v1661 = vpack.c.bf16 %v1653, %v1653
        %v1662 = vpack.c.bf16 %v1654, %v1654
        %v1663 = vpack.c.bf16 %v1655, %v1655
        %v1665 = vunpack.c.l.b16 %v1408
        %v1666 = vpack.c.b16 %v1665, %v1665
        %1667 = vrot.lane.b32.xlu0 %v1666, 96
        %v1668 = vpop.permute.xlu0 %1667
        %v1670 = vsel %vm759, %v1656, 0
        %v1673 = vsel %vm1048, %v1668, 0
        %1675 = vmatpush.bf16.msra.mxu0 0
        %1676 = vmatpush.bf16.msra.mxu0 0
        %1677 = vmatpush.bf16.msra.mxu0 0
        %1678 = vmatpush.bf16.msra.mxu0 0
        %1679 = vmatpush.bf16.msra.mxu0 0
        %1680 = vmatpush.bf16.msra.mxu0 0
        %1681 = vmatpush.bf16.msra.mxu0 0
        %1682 = vmatpush.bf16.msra.mxu0 %v1673
        %1683 = vmatmul.bf16.gmra.mxu0 %v1670
        %v1684 = vpop.f32.mrf.mxu0
        %v1685 = vadd.f32 0.0, %v1684
        %v1686 = vpop.f32.mrf.mxu0
        %1687 = vdwg.mxu0
        %v1689 = vunpack.c.l.b16 %v1409
        %v1690 = vpack.c.b16 %v1689, %v1689
        %1691 = vrot.lane.b32.xlu0 %v1690, 96
        %v1692 = vpop.permute.xlu0 %1691
        %v1694 = vsel %vm759, %v1657, 0
        %v1697 = vsel %vm1048, %v1692, 0
        %1699 = vmatpush.bf16.msra.mxu0 0
        %1700 = vmatpush.bf16.msra.mxu0 0
        %1701 = vmatpush.bf16.msra.mxu0 0
        %1702 = vmatpush.bf16.msra.mxu0 0
        %1703 = vmatpush.bf16.msra.mxu0 0
        %1704 = vmatpush.bf16.msra.mxu0 0
        %1705 = vmatpush.bf16.msra.mxu0 0
        %1706 = vmatpush.bf16.msra.mxu0 %v1697
        %1707 = vmatmul.bf16.gmra.mxu0 %v1694
        %v1708 = vpop.f32.mrf.mxu0
        %v1709 = vadd.f32 0.0, %v1708
        %v1710 = vpop.f32.mrf.mxu0
        %1711 = vdwg.mxu0
        %v1713 = vunpack.c.l.b16 %v1410
        %v1714 = vpack.c.b16 %v1713, %v1713
        %1715 = vrot.lane.b32.xlu0 %v1714, 96
        %v1716 = vpop.permute.xlu0 %1715
        %v1718 = vsel %vm759, %v1658, 0
        %v1721 = vsel %vm1048, %v1716, 0
        %1723 = vmatpush.bf16.msra.mxu0 0
        %1724 = vmatpush.bf16.msra.mxu0 0
        %1725 = vmatpush.bf16.msra.mxu0 0
        %1726 = vmatpush.bf16.msra.mxu0 0
        %1727 = vmatpush.bf16.msra.mxu0 0
        %1728 = vmatpush.bf16.msra.mxu0 0
        %1729 = vmatpush.bf16.msra.mxu0 0
        %1730 = vmatpush.bf16.msra.mxu0 %v1721
        %1731 = vmatmul.bf16.gmra.mxu0 %v1718
        %v1732 = vpop.f32.mrf.mxu0
        %v1733 = vadd.f32 0.0, %v1732
        %v1734 = vpop.f32.mrf.mxu0
        %1735 = vdwg.mxu0
        %v1737 = vunpack.c.l.b16 %v1411
        %v1738 = vpack.c.b16 %v1737, %v1737
        %1739 = vrot.lane.b32.xlu0 %v1738, 96
        %v1740 = vpop.permute.xlu0 %1739
        %v1742 = vsel %vm759, %v1659, 0
        %v1745 = vsel %vm1048, %v1740, 0
        %1747 = vmatpush.bf16.msra.mxu0 0
        %1748 = vmatpush.bf16.msra.mxu0 0
        %1749 = vmatpush.bf16.msra.mxu0 0
        %1750 = vmatpush.bf16.msra.mxu0 0
        %1751 = vmatpush.bf16.msra.mxu0 0
        %1752 = vmatpush.bf16.msra.mxu0 0
        %1753 = vmatpush.bf16.msra.mxu0 0
        %1754 = vmatpush.bf16.msra.mxu0 %v1745
        %1755 = vmatmul.bf16.gmra.mxu0 %v1742
        %v1756 = vpop.f32.mrf.mxu0
        %v1757 = vadd.f32 0.0, %v1756
        %v1758 = vpop.f32.mrf.mxu0
        %1759 = vdwg.mxu0
        %v1761 = vunpack.c.l.b16 %v1412
        %v1762 = vpack.c.b16 %v1761, %v1761
        %1763 = vrot.lane.b32.xlu0 %v1762, 96
        %v1764 = vpop.permute.xlu0 %1763
        %v1766 = vsel %vm759, %v1660, 0
        %v1769 = vsel %vm1048, %v1764, 0
        %1771 = vmatpush.bf16.msra.mxu0 0
        %1772 = vmatpush.bf16.msra.mxu0 0
        %1773 = vmatpush.bf16.msra.mxu0 0
        %1774 = vmatpush.bf16.msra.mxu0 0
        %1775 = vmatpush.bf16.msra.mxu0 0
        %1776 = vmatpush.bf16.msra.mxu0 0
        %1777 = vmatpush.bf16.msra.mxu0 0
        %1778 = vmatpush.bf16.msra.mxu0 %v1769
        %1779 = vmatmul.bf16.gmra.mxu0 %v1766
        %v1780 = vpop.f32.mrf.mxu0
        %v1781 = vadd.f32 0.0, %v1780
        %v1782 = vpop.f32.mrf.mxu0
        %1783 = vdwg.mxu0
        %v1785 = vunpack.c.l.b16 %v1413
        %v1786 = vpack.c.b16 %v1785, %v1785
        %1787 = vrot.lane.b32.xlu0 %v1786, 96
        %v1788 = vpop.permute.xlu0 %1787
        %v1790 = vsel %vm759, %v1661, 0
        %v1793 = vsel %vm1048, %v1788, 0
        %1795 = vmatpush.bf16.msra.mxu0 0
        %1796 = vmatpush.bf16.msra.mxu0 0
        %1797 = vmatpush.bf16.msra.mxu0 0
        %1798 = vmatpush.bf16.msra.mxu0 0
        %1799 = vmatpush.bf16.msra.mxu0 0
        %1800 = vmatpush.bf16.msra.mxu0 0
        %1801 = vmatpush.bf16.msra.mxu0 0
        %1802 = vmatpush.bf16.msra.mxu0 %v1793
        %1803 = vmatmul.bf16.gmra.mxu0 %v1790
        %v1804 = vpop.f32.mrf.mxu0
        %v1805 = vadd.f32 0.0, %v1804
        %v1806 = vpop.f32.mrf.mxu0
        %1807 = vdwg.mxu0
        %v1809 = vunpack.c.l.b16 %v1414
        %v1810 = vpack.c.b16 %v1809, %v1809
        %1811 = vrot.lane.b32.xlu0 %v1810, 96
        %v1812 = vpop.permute.xlu0 %1811
        %v1814 = vsel %vm759, %v1662, 0
        %v1817 = vsel %vm1048, %v1812, 0
        %1819 = vmatpush.bf16.msra.mxu0 0
        %1820 = vmatpush.bf16.msra.mxu0 0
        %1821 = vmatpush.bf16.msra.mxu0 0
        %1822 = vmatpush.bf16.msra.mxu0 0
        %1823 = vmatpush.bf16.msra.mxu0 0
        %1824 = vmatpush.bf16.msra.mxu0 0
        %1825 = vmatpush.bf16.msra.mxu0 0
        %1826 = vmatpush.bf16.msra.mxu0 %v1817
        %1827 = vmatmul.bf16.gmra.mxu0 %v1814
        %v1828 = vpop.f32.mrf.mxu0
        %v1829 = vadd.f32 0.0, %v1828
        %v1830 = vpop.f32.mrf.mxu0
        %1831 = vdwg.mxu0
        %v1833 = vunpack.c.l.b16 %v1415
        %v1834 = vpack.c.b16 %v1833, %v1833
        %1835 = vrot.lane.b32.xlu0 %v1834, 96
        %v1836 = vpop.permute.xlu0 %1835
        %v1838 = vsel %vm759, %v1663, 0
        %v1841 = vsel %vm1048, %v1836, 0
        %1843 = vmatpush.bf16.msra.mxu0 0
        %1844 = vmatpush.bf16.msra.mxu0 0
        %1845 = vmatpush.bf16.msra.mxu0 0
        %1846 = vmatpush.bf16.msra.mxu0 0
        %1847 = vmatpush.bf16.msra.mxu0 0
        %1848 = vmatpush.bf16.msra.mxu0 0
        %1849 = vmatpush.bf16.msra.mxu0 0
        %1850 = vmatpush.bf16.msra.mxu0 %v1841
        %1851 = vmatmul.bf16.gmra.mxu0 %v1838
        %v1852 = vpop.f32.mrf.mxu0
        %v1853 = vadd.f32 0.0, %v1852
        %v1854 = vpop.f32.mrf.mxu0
        %1855 = vdwg.mxu0
        %1858 = vrot.lane.b32.xlu0 %v1733, 8
        %v1859 = vpop.permute.xlu0 %1858
        %1860 = vrot.lane.b32.xlu0 %v1757, 8
        %v1861 = vpop.permute.xlu0 %1860
        %1866 = vrot.lane.b32.xlu0 %v1781, 16
        %v1867 = vpop.permute.xlu0 %1866
        %1868 = vrot.lane.b32.xlu0 %v1805, 16
        %v1869 = vpop.permute.xlu0 %1868
        %1874 = vrot.lane.b32.xlu0 %v1829, 24
        %v1875 = vpop.permute.xlu0 %1874
        %1876 = vrot.lane.b32.xlu0 %v1853, 24
        %v1877 = vpop.permute.xlu0 %1876
        %v1880 = vsel %vm759, %v1685, %v1859
        %v1881 = vsel %vm759, %v1709, %v1861
        %v1882 = vsel %vm1238, %v1880, %v1867
        %v1883 = vsel %vm1238, %v1881, %v1869
        %v1884 = vsel %vm1241, %v1882, %v1875
        %v1885 = vsel %vm1241, %v1883, %v1877
        %v1886 = vld [vmem:[#allocation13] sm:$0xf]
        %v1887 = vld [vmem:[#allocation13 + $0x4] sm:$0xf]
        %v1888 = vld [vmem:[#allocation13 + $0x8] sm:$0xf]
        %v1889 = vld [vmem:[#allocation13 + $0xc] sm:$0xf]
        %v1890 = vpack.c.bf16 %v1885, %v1884
        %v1891 = vld [vmem:[#allocation14] sm:$0x1]
        %v1893 = vperm.slane %v1891, 0
        %v1899 = vunpack.c.l.b16 %v1886
        %v1900 = vunpack.c.l.b16 %v1887
        %v1901 = vunpack.c.l.b16 %v1888
        %v1902 = vunpack.c.l.b16 %v1889
        %v1903 = vpack.c.b16 %v1900, %v1899
        %v1904 = vpack.c.b16 %v1902, %v1901
        %v1908 = vsel %vm708, %v1890, 0
        %1910 = vmatpush.bf16.msra.mxu0 0
        %1911 = vmatpush.bf16.msra.mxu0 0
        %1912 = vmatpush.bf16.msra.mxu0 0
        %1913 = vmatpush.bf16.msra.mxu0 0
        %1914 = vmatpush.bf16.msra.mxu0 0
        %1915 = vmatpush.bf16.msra.mxu0 0
        %1916 = vmatpush.bf16.msra.mxu0 %v1904
        %1917 = vmatpush.bf16.msra.mxu0 %v1903
        %1918 = vmatmul.bf16.gmra.mxu0 %v1908
        %v1919 = vpop.f32.mrf.mxu0
        %v1920 = vadd.f32 %v1893, %v1919
        %v1921 = vpop.f32.mrf.mxu0
        %v1922 = vadd.f32 %v1893, %v1921
        %1923 = vdwg.mxu0
        %v1924 = vadd.f32 %v1282, %v1920
        %v1925 = vadd.f32 %v1283, %v1922
        %v1926 = vld [vmem:[%s12] sm:$0xf]
        %v1927 = vld [vmem:[%s12 + $0x4] sm:$0xf]
        %v1928 = vld [vmem:[%s12 + $0x8] sm:$0xf]
        %v1929 = vld [vmem:[%s12 + $0xc] sm:$0xf]
        %v1930 = vpack.c.bf16 %v1925, %v1924
        %v1931 = vld [vmem:[%s13] sm:$0x1]
        %v1933 = vperm.slane %v1931, 0
        %v1939 = vunpack.c.l.b16 %v1926
        %v1940 = vunpack.c.l.b16 %v1927
        %v1941 = vunpack.c.l.b16 %v1928
        %v1942 = vunpack.c.l.b16 %v1929
        %v1943 = vpack.c.b16 %v1940, %v1939
        %v1944 = vpack.c.b16 %v1942, %v1941
        %v1948 = vsel %vm708, %v1930, 0
        %1950 = vmatpush.bf16.msra.mxu0 0
        %1951 = vmatpush.bf16.msra.mxu0 0
        %1952 = vmatpush.bf16.msra.mxu0 0
        %1953 = vmatpush.bf16.msra.mxu0 0
        %1954 = vmatpush.bf16.msra.mxu0 0
        %1955 = vmatpush.bf16.msra.mxu0 0
        %1956 = vmatpush.bf16.msra.mxu0 %v1944
        %1957 = vmatpush.bf16.msra.mxu0 %v1943
        %1958 = vmatmul.bf16.gmra.mxu0 %v1948
        %v1959 = vpop.f32.mrf.mxu0
        %v1960 = vadd.f32 %v1933, %v1959
        %v1961 = vpop.f32.mrf.mxu0
        %v1962 = vadd.f32 %v1933, %v1961
        %1963 = vdwg.mxu0
        %v1964 = vld [vmem:[%s14] sm:$0xf]
        %v1965 = vld [vmem:[%s14 + $0x4] sm:$0xf]
        %v1966 = vpack.c.bf16 %v1962, %v1960
        %v1967 = vld [vmem:[%s15] sm:$0x1]
        %v1969 = vperm.slane %v1967, 0
        %v1973 = vunpack.c.l.b16 %v1964
        %v1974 = vunpack.c.l.b16 %v1965
        %v1975 = vpack.c.b16 %v1974, %v1973
        %v1978 = vsel %vm1238, %v1966, 0
        %1980 = vmatpush.bf16.msra.mxu0 0
        %1981 = vmatpush.bf16.msra.mxu0 0
        %1982 = vmatpush.bf16.msra.mxu0 0
        %1983 = vmatpush.bf16.msra.mxu0 0
        %1984 = vmatpush.bf16.msra.mxu0 0
        %1985 = vmatpush.bf16.msra.mxu0 0
        %1986 = vmatpush.bf16.msra.mxu0 0
        %1987 = vmatpush.bf16.msra.mxu0 %v1975
        %1988 = vmatmul.bf16.gmra.mxu0 %v1978
        %v1989 = vpop.f32.mrf.mxu0
        %v1990 = vadd.f32 %v1969, %v1989
        %v1991 = vpop.f32.mrf.mxu0
        %v1992 = vadd.f32 %v1969, %v1991
        %1993 = vdwg.mxu0
        %v1994 = vadd.f32 %v1924, %v1990
        %v1995 = vadd.f32 %v1925, %v1992
        %1996 = vst.msk [vmem:[%s678] sm:$0xff] %vm708, %v1994
        %1997 = vst.msk [vmem:[%s678 + $0x8] sm:$0xff] %vm708, %v1995
        %s1998 = sand.u32 %s393, 1
        %s1999 = scalar_lea.sflag [#allocation4], %s1998
        %s2000 = sand.u32 %s393, 1
        %s2001 = smul.addr %s2000, 16
        %s2002 = scalar_lea.vmem [#allocation16], %s2001
        // Predicated region
        $region117: #{tpu_custom_call.1} parent=83 // pred_check
          %p2003 = pneg %p403
        $region118: #{tpu_custom_call.1} parent=83 // pred_check_branch
          %2005 = sbr.rel (%p2003) target = $region120
        $region119: #{tpu_custom_call.1} parent=83 // pred_region
          %s2006 = smul.u32 2, %s39
          %2008 = vsyncadd %s1999, 0
          %s2009 = smul.addr %s2006, 8
          %s2010 = scalar_lea.hbm %s16, %s2009
          %s2011 = sshll.u32 %s2002, 4
          %s2012 = int_to_ptr.vmem [resolvable:$true] %s2011
          %s2013 = sshll.u32 %s2010, 4
          %s2014 = int_to_ptr.hbm [resolvable:$true] %s2013
          %2019 = dma.vmem_to_hbm [thread:$0]  %s2012, 256, %s2014, %s1999, 128, 128, 8
        $region120: #{tpu_custom_call.1} parent=83 // pred_fallthru
          _
      $region84: #{tpu_custom_call.1} parent=5 // pred_fallthru
        _
      %p2020 = scmp.le.s32.totalorder 2, %s34
      // Predicated region
      $region121: #{tpu_custom_call.1} parent=5 // pred_check
        %p2021 = pneg %p2020
      $region122: #{tpu_custom_call.1} parent=5 // pred_check_branch
        %2023 = sbr.rel (%p2021) target = $region124
      $region123: #{tpu_custom_call.1} parent=5 // pred_region
        %s2024 = ssub.s32 %s34, 2
        // Predicated region
        $region125: #{tpu_custom_call.1} parent=123 // pred_check
          %p2025 = pneg %p409
        $region126: #{tpu_custom_call.1} parent=123 // pred_check_branch
          %2027 = sbr.rel (%p2025) target = $region128
        $region127: #{tpu_custom_call.1} parent=123 // pred_region
          %s2028 = sand.u32 %s394, 1
          %s2029 = scalar_lea.sflag [#allocation4], %s2028
          %s2030 = sand.u32 %s394, 1
          %s2031 = smul.addr %s2030, 16
          %s2032 = scalar_lea.vmem [#allocation16], %s2031
          %2034 = dma.done %s2029, 256
        $region128: #{tpu_custom_call.1} parent=123 // pred_fallthru
          _
      $region124: #{tpu_custom_call.1} parent=5 // pred_fallthru
        _
    $region6: #{tpu_custom_call.1} parent=1 // loop_footer
      %s38 = sadd.s32 1, %s34
    $region7: #{tpu_custom_call.1} parent=1 // loop_footer_branch
      %33 = sbr.rel target = $region3
    $region8: #{tpu_custom_call.1} parent=1 // loop_exit
      _
    %2035 = vsyncpa [#allocation3], 1
    %s2036 = scalar_lea.sflag [#allocation3], 1
    %2037 = vsyncpa %s2036, 1
    %2038 = vsyncpa [#allocation6], 1
    %s2039 = scalar_lea.sflag [#allocation6], 1
    %2040 = vsyncpa %s2039, 1
    %2041 = vsyncpa [#allocation9], 1
    %2042 = vsyncpa [#allocation12], 1
    %2043 = vsyncpa [#allocation15], 1
    %2044 = vsyncpa [#allocation4], 1
    %s2045 = scalar_lea.sflag [#allocation4], 1
    %2046 = vsyncpa %s2045, 1

</llo_original>
